<compile_context>
chip_gen: v6e
topology: v6e:2x2x1
jax: 0.10.0
libtpu: 0.0.40
codegen_flags: <defaults>
</compile_context>

<pallas_src>
import functools

import jax
import jax.numpy as jnp
from jax.experimental import pallas as pl
from jax.experimental.pallas import tpu as pltpu


def head_kernel(x_ref, w_ref, b_ref, o_ref):
    # x_ref: (B, C, HW)  f32   -- NCHW activation with H*W flattened (free reshape)
    # w_ref: (C, Nblk)   bf16  -- fc weight^T with 1/(H*W) folded in, zero-padded
    # b_ref: (1, Nblk)   f32   -- fc bias, zero-padded
    # o_ref: (B, Nblk)   f32
    pooled = jnp.sum(x_ref[...], axis=-1)                     # (B, C) f32; avg scale is in w
    acc = jnp.dot(pooled.astype(jnp.bfloat16), w_ref[...],
                  preferred_element_type=jnp.float32)         # MXU, f32 accumulate
    o_ref[...] = acc + b_ref[...]                             # bias add in f32


def prepare_head_params(fc_weight, fc_bias, hw):
    """One-time (model-load) param prep: transpose, fold pool scale, pad, cast to bf16.

    fc_weight: (N, C) f32, fc_bias: (N,) f32, hw: pooled window size (H*W).
    Returns (w_t: (C, Npad) bf16, b2d: (1, Npad) f32) -- cache these across calls.
    """
    n_out, c = fc_weight.shape
    n_pad = ((n_out + 127) // 128) * 128  # 1000 -> 1024: lane-dense weight tiles / stores
    inv_hw = 1.0 / float(hw)
    w_t = jnp.pad(fc_weight.T * inv_hw,
                  ((0, 0), (0, n_pad - n_out))).astype(jnp.bfloat16)     # (C, Npad) bf16
    b2d = jnp.pad(fc_bias, (0, n_pad - n_out)).reshape(1, n_pad).astype(jnp.float32)
    return w_t, b2d


def _n_splits_for_device():
    """2-way N split only where there are 2 TensorCores per chip (v7x); else 1."""
    try:
        kind = jax.devices()[0].device_kind.lower()
    except Exception:  # pragma: no cover
        return 1
    return 2 if "v7" in kind else 1


def head4imagenet_forward(x_nchw, w_t, b2d, *, n_out, split_n=1):
    """x_nchw: (B, C, H, W) f32; w_t/b2d from prepare_head_params; returns (B, n_out) f32."""
    B, C, H, W = x_nchw.shape
    HW = H * W
    Npad = w_t.shape[1]
    assert Npad % split_n == 0 and (Npad // split_n) % 128 == 0
    n_blk = Npad // split_n

    # Contiguous reshape (free); no transpose pass over the activation.
    x_flat = x_nchw.reshape(B, C, HW)

    cost = pl.CostEstimate(
        flops=2 * B * C * Npad + B * C * HW,
        transcendentals=0,
        bytes_accessed=(x_flat.size * 4 + w_t.size * 2 + b2d.size * 4 + B * Npad * 4),
    )

    out_pad = pl.pallas_call(
        head_kernel,
        out_shape=jax.ShapeDtypeStruct((B, Npad), jnp.float32),
        # Single grid point on v5e/v6e (DMA-bound; pipelining would only add overhead);
        # grid=(2,) "parallel" over N on v7x so both TCs stream half the weight.
        grid=(split_n,),
        in_specs=[
            pl.BlockSpec((B, C, HW), lambda j: (0, 0, 0)),
            pl.BlockSpec((C, n_blk), lambda j: (0, j)),
            pl.BlockSpec((1, n_blk), lambda j: (0, j)),
        ],
        out_specs=pl.BlockSpec((B, n_blk), lambda j: (0, j)),
        compiler_params=pltpu.CompilerParams(dimension_semantics=("parallel",)),
        cost_estimate=cost,
    )(x_flat, w_t, b2d)

    # Padded columns are exactly 0 (zero weight + zero bias); slice them off so the
    # consumer never sees them (they would corrupt argmax/softmax over negative logits).
    return out_pad[:, :n_out]


if __name__ == "__main__":
    # Shapes are forced by the module: Linear(1024, 1000) fed by AvgPool2d(7,7)
    # implies input (B, 1024, 7, 7). Keep batch small (B=2).
    B, C, H, W, N = 2, 1024, 7, 7, 1000

    key = jax.random.PRNGKey(0)
    kx, kw, kb = jax.random.split(key, 3)
    x = jax.random.normal(kx, (B, C, H, W), dtype=jnp.float32)

    # Deterministic synthetic parameters (nn.Linear default init style).
    bound = 1.0 / jnp.sqrt(jnp.float32(C))
    fc_weight = jax.random.uniform(kw, (N, C), jnp.float32, -bound, bound)
    fc_bias = jax.random.uniform(kb, (N,), jnp.float32, -bound, bound)

    # --- model-load time: prepare & cache the kernel-ready params (hoisted prep) ---
    w_t, b2d = jax.block_until_ready(prepare_head_params(fc_weight, fc_bias, H * W))

    # --- per-call path: just the pallas_call (+ output slice), jitted ---
    split = _n_splits_for_device()
    fwd = jax.jit(functools.partial(head4imagenet_forward, n_out=N, split_n=split))
    out = jax.block_until_ready(fwd(x, w_t, b2d))

    # Pure-JAX (f32) reference of the PyTorch forward. Relaxed tolerance: the kernel
    # uses a bf16 weight / bf16 LHS on the MXU with f32 accumulation.
    ref = jnp.mean(x, axis=(2, 3)) @ fc_weight.T + fc_bias
    assert out.shape == (B, N)
    assert jnp.allclose(out, ref, atol=1e-2, rtol=1e-2), "mismatch vs reference"

    print("KERNEL_OK")
</pallas_src>

<mosaic_0001>
module attributes {stable_mosaic.version = 11 : i64} {
  func.func @head_kernel(%arg0: i32, %arg1: memref<2x1024x49xf32, #tpu.memory_space<vmem>>, %arg2: memref<1024x1024xbf16, #tpu.memory_space<vmem>>, %arg3: memref<1x1024xf32, #tpu.memory_space<vmem>>, %arg4: memref<2x1024xf32, #tpu.memory_space<vmem>>) attributes {dimension_semantics = [#tpu.dimension_semantics<parallel>], iteration_bounds = array<i64: 1>, scalar_prefetch = 0 : i64, scratch_operands = 0 : i64, tpu.core_type = #tpu.core_type<tc>, window_params = [{pipeline_mode = #tpu.pipeline_mode<synchronous>, transform_indices = @transform_0, window_bounds = array<i64: 2, 1024, 49>}, {transform_indices = @transform_1, window_bounds = array<i64: 1024, 1024>}, {transform_indices = @transform_2, window_bounds = array<i64: 1, 1024>}, {transform_indices = @transform_3, window_bounds = array<i64: 2, 1024>}]} {
    %c0 = arith.constant 0 : index
    %c0_0 = arith.constant 0 : index
    %c0_1 = arith.constant 0 : index
    %0 = vector.load %arg1[%c0, %c0_0, %c0_1] : memref<2x1024x49xf32, #tpu.memory_space<vmem>>, vector<2x1024x49xf32>
    %cst = arith.constant dense<0.000000e+00> : vector<2x1024xf32>
    %1 = vector.multi_reduction <add>, %0, %cst [2] : vector<2x1024x49xf32> to vector<2x1024xf32>
    %2 = arith.truncf %1 : vector<2x1024xf32> to vector<2x1024xbf16>
    %c0_2 = arith.constant 0 : index
    %c0_3 = arith.constant 0 : index
    %3 = vector.load %arg2[%c0_2, %c0_3] : memref<1024x1024xbf16, #tpu.memory_space<vmem>>, vector<1024x1024xbf16>
    %cst_4 = arith.constant dense<0.000000e+00> : vector<2x1024xf32>
    %4 = tpu.matmul %2, %3, %cst_4 {dimension_numbers = #tpu.dot_dimension_numbers<[1], [0], [0], [1], [0, 0, 1, 1], [], []>} : vector<2x1024xbf16>, vector<1024x1024xbf16>, vector<2x1024xf32> -> vector<2x1024xf32>
    %c0_5 = arith.constant 0 : index
    %c0_6 = arith.constant 0 : index
    %5 = vector.load %arg3[%c0_5, %c0_6] : memref<1x1024xf32, #tpu.memory_space<vmem>>, vector<1x1024xf32>
    %6 = vector.broadcast %5 : vector<1x1024xf32> to vector<2x1024xf32>
    %7 = arith.addf %4, %6 : vector<2x1024xf32>
    %c0_7 = arith.constant 0 : index
    %c0_8 = arith.constant 0 : index
    %8 = vector.load %arg4[%c0_7, %c0_8] : memref<2x1024xf32, #tpu.memory_space<vmem>>, vector<2x1024xf32>
    tpu.vector_store %arg4[%c0_7, %c0_8], %7 {strides = array<i32>} : memref<2x1024xf32, #tpu.memory_space<vmem>>, vector<2x1024xf32>,
    return
  }
  func.func @transform_0(%arg0: i32) -> (i32, i32, i32) {
    %c0_i32 = arith.constant 0 : i32
    %c0_i32_0 = arith.constant 0 : i32
    %c0_i32_1 = arith.constant 0 : i32
    %c0_i32_2 = arith.constant 0 : i32
    return %c0_i32, %c0_i32_0, %c0_i32_1 : i32, i32, i32
  }
  func.func @transform_1(%arg0: i32) -> (i32, i32) {
    %c0_i32 = arith.constant 0 : i32
    %c0_i32_0 = arith.constant 0 : i32
    return %c0_i32, %arg0 : i32, i32
  }
  func.func @transform_2(%arg0: i32) -> (i32, i32) {
    %c0_i32 = arith.constant 0 : i32
    %c0_i32_0 = arith.constant 0 : i32
    return %c0_i32, %arg0 : i32, i32
  }
  func.func @transform_3(%arg0: i32) -> (i32, i32) {
    %c0_i32 = arith.constant 0 : i32
    %c0_i32_0 = arith.constant 0 : i32
    return %c0_i32, %arg0 : i32, i32
  }
}

</mosaic_0001>

<llo_original>
// kernel: head4imagenet_forward.1
$region0: #{head4imagenet_forward.1}
  #allocation0 [shape = 'u32[]', space=smem, size = 0x4, offset = 0x4, fixed_abs, tag = 'smem constant byte address 0x4 - core index']
  #allocation1 [shape = 'u32[144,128]{1,0:T(1,128)}', space=vmem, size = 0x12000, scoped, tag = 'internal scratch']
  %s0 = inlined_call_operand.vmem [shape: f32[2,1024,49], index: 0, kind: input, shape index: {}]
  %s1 = inlined_call_operand.hbm [shape: bf16[1024,1024], index: 1, kind: input, shape index: {}]
  %s2 = inlined_call_operand.hbm [shape: f32[1,1024], index: 2, kind: input, shape index: {}]
  %s3 = inlined_call_operand.hbm [shape: f32[2,1024], index: 3, kind: output, shape index: {}]
  %s4 = sld [smem:[#allocation0]]
  $region30: #{head4imagenet_forward.1} parent=0
    _
  %s6 = ssub.s32 1, %s4
  %s7 = scalar_select 0, %s6, %s4
  $region1: #{head4imagenet_forward.1} parent=0
    #allocation2 [shape = 'u8[2097152]{0}', space=vmem, size = 0x200000, scoped, tag = 'input window, operand 1, single buffered']
    #allocation3 [shape = 's32[1]{0}', space=sflag, size = 0x4, scoped, tag = 'scoped memory for head4imagenet_forward.1']
    #allocation4 [shape = 's32[1]{0}', space=sflag, size = 0x4, scoped, tag = 'scoped memory for head4imagenet_forward.1']
    #allocation5 [shape = 'u8[4096]{0}', space=vmem, size = 0x1000, scoped, tag = 'input window, operand 2, single buffered']
    #allocation6 [shape = 's32[1]{0}', space=sflag, size = 0x4, scoped, tag = 'scoped memory for head4imagenet_forward.1']
    #allocation7 [shape = 'u8[8192]{0}', space=vmem, size = 0x2000, scoped, tag = 'output window, operand 0, single buffered']
    %8 = vsyncpa [#allocation3], 0
    %9 = vsyncpa [#allocation6], 0
    %10 = vsyncpa [#allocation4], 0
    // Predicated region
    $region2: #{head4imagenet_forward.1} parent=1 // pred_check
      _
    $region3: #{head4imagenet_forward.1} parent=1 // pred_check_branch
      %12 = sbr.rel (0) target = $region5
    $region4: #{head4imagenet_forward.1} parent=1 // pred_region
      _
    $region5: #{head4imagenet_forward.1} parent=1 // pred_fallthru
      _
    // Predicated region
    $region6: #{head4imagenet_forward.1} parent=1 // pred_check
      _
    $region7: #{head4imagenet_forward.1} parent=1 // pred_check_branch
      %14 = sbr.rel (0) target = $region9
    $region8: #{head4imagenet_forward.1} parent=1 // pred_region
      %s16 = ssub.s32 65536, 65536
      %17 = vsyncadd [#allocation3], %s16
      %s18 = sshll.u32 [#allocation2], 4
      %s19 = int_to_ptr.vmem [resolvable:$true] %s18
      %24 = dma.hbm_to_vmem [thread:$0]  %s1, 65536, %s19, [#allocation3], 512, 512, 32
    $region9: #{head4imagenet_forward.1} parent=1 // pred_fallthru
      _
    // Predicated region
    $region10: #{head4imagenet_forward.1} parent=1 // pred_check
      _
    $region11: #{head4imagenet_forward.1} parent=1 // pred_check_branch
      %26 = sbr.rel (0) target = $region13
    $region12: #{head4imagenet_forward.1} parent=1 // pred_region
      %s28 = ssub.s32 128, 128
      %29 = vsyncadd [#allocation6], %s28
      %s31 = sshll.u32 [#allocation5], 4
      %s32 = int_to_ptr.vmem [resolvable:$true] %s31
      %34 = dma.hbm_to_vmem [thread:$0]  %s2, 128, %s32, [#allocation6]
    $region13: #{head4imagenet_forward.1} parent=1 // pred_fallthru
      _
    // Predicated region
    $region14: #{head4imagenet_forward.1} parent=1 // pred_check
      _
    $region15: #{head4imagenet_forward.1} parent=1 // pred_check_branch
      %36 = sbr.rel (0) target = $region17
    $region16: #{head4imagenet_forward.1} parent=1 // pred_region
      %37 = dma.done [#allocation3], 65536
    $region17: #{head4imagenet_forward.1} parent=1 // pred_fallthru
      _
    // Predicated region
    $region18: #{head4imagenet_forward.1} parent=1 // pred_check
      _
    $region19: #{head4imagenet_forward.1} parent=1 // pred_check_branch
      %39 = sbr.rel (0) target = $region21
    $region20: #{head4imagenet_forward.1} parent=1 // pred_region
      %40 = dma.done [#allocation6], 128
    $region21: #{head4imagenet_forward.1} parent=1 // pred_fallthru
      _
    %v41 = vld [vmem:[%s0] sm:$0xff]
    %v42 = vld [vmem:[%s0 + $0x8] sm:$0xff]
    %v43 = vld [vmem:[%s0 + $0x10] sm:$0xff]
    %v44 = vld [vmem:[%s0 + $0x18] sm:$0xff]
    %v45 = vld [vmem:[%s0 + $0x20] sm:$0xff]
    %v46 = vld [vmem:[%s0 + $0x28] sm:$0xff]
    %v47 = vld [vmem:[%s0 + $0x30] sm:$0xff]
    %v48 = vld [vmem:[%s0 + $0x38] sm:$0xff]
    %v49 = vld [vmem:[%s0 + $0x40] sm:$0xff]
    %v50 = vld [vmem:[%s0 + $0x48] sm:$0xff]
    %v51 = vld [vmem:[%s0 + $0x50] sm:$0xff]
    %v52 = vld [vmem:[%s0 + $0x58] sm:$0xff]
    %v53 = vld [vmem:[%s0 + $0x60] sm:$0xff]
    %v54 = vld [vmem:[%s0 + $0x68] sm:$0xff]
    %v55 = vld [vmem:[%s0 + $0x70] sm:$0xff]
    %v56 = vld [vmem:[%s0 + $0x78] sm:$0xff]
    %v57 = vld [vmem:[%s0 + $0x80] sm:$0xff]
    %v58 = vld [vmem:[%s0 + $0x88] sm:$0xff]
    %v59 = vld [vmem:[%s0 + $0x90] sm:$0xff]
    %v60 = vld [vmem:[%s0 + $0x98] sm:$0xff]
    %v61 = vld [vmem:[%s0 + $0xa0] sm:$0xff]
    %v62 = vld [vmem:[%s0 + $0xa8] sm:$0xff]
    %v63 = vld [vmem:[%s0 + $0xb0] sm:$0xff]
    %v64 = vld [vmem:[%s0 + $0xb8] sm:$0xff]
    %v65 = vld [vmem:[%s0 + $0xc0] sm:$0xff]
    %v66 = vld [vmem:[%s0 + $0xc8] sm:$0xff]
    %v67 = vld [vmem:[%s0 + $0xd0] sm:$0xff]
    %v68 = vld [vmem:[%s0 + $0xd8] sm:$0xff]
    %v69 = vld [vmem:[%s0 + $0xe0] sm:$0xff]
    %v70 = vld [vmem:[%s0 + $0xe8] sm:$0xff]
    %v71 = vld [vmem:[%s0 + $0xf0] sm:$0xff]
    %v72 = vld [vmem:[%s0 + $0xf8] sm:$0xff]
    %v73 = vld [vmem:[%s0 + $0x100] sm:$0xff]
    %v74 = vld [vmem:[%s0 + $0x108] sm:$0xff]
    %v75 = vld [vmem:[%s0 + $0x110] sm:$0xff]
    %v76 = vld [vmem:[%s0 + $0x118] sm:$0xff]
    %v77 = vld [vmem:[%s0 + $0x120] sm:$0xff]
    %v78 = vld [vmem:[%s0 + $0x128] sm:$0xff]
    %v79 = vld [vmem:[%s0 + $0x130] sm:$0xff]
    %v80 = vld [vmem:[%s0 + $0x138] sm:$0xff]
    %v81 = vld [vmem:[%s0 + $0x140] sm:$0xff]
    %v82 = vld [vmem:[%s0 + $0x148] sm:$0xff]
    %v83 = vld [vmem:[%s0 + $0x150] sm:$0xff]
    %v84 = vld [vmem:[%s0 + $0x158] sm:$0xff]
    %v85 = vld [vmem:[%s0 + $0x160] sm:$0xff]
    %v86 = vld [vmem:[%s0 + $0x168] sm:$0xff]
    %v87 = vld [vmem:[%s0 + $0x170] sm:$0xff]
    %v88 = vld [vmem:[%s0 + $0x178] sm:$0xff]
    %v89 = vld [vmem:[%s0 + $0x180] sm:$0xff]
    %v90 = vld [vmem:[%s0 + $0x188] sm:$0xff]
    %v91 = vld [vmem:[%s0 + $0x190] sm:$0xff]
    %v92 = vld [vmem:[%s0 + $0x198] sm:$0xff]
    %v93 = vld [vmem:[%s0 + $0x1a0] sm:$0xff]
    %v94 = vld [vmem:[%s0 + $0x1a8] sm:$0xff]
    %v95 = vld [vmem:[%s0 + $0x1b0] sm:$0xff]
    %v96 = vld [vmem:[%s0 + $0x1b8] sm:$0xff]
    %v97 = vld [vmem:[%s0 + $0x1c0] sm:$0xff]
    %v98 = vld [vmem:[%s0 + $0x1c8] sm:$0xff]
    %v99 = vld [vmem:[%s0 + $0x1d0] sm:$0xff]
    %v100 = vld [vmem:[%s0 + $0x1d8] sm:$0xff]
    %v101 = vld [vmem:[%s0 + $0x1e0] sm:$0xff]
    %v102 = vld [vmem:[%s0 + $0x1e8] sm:$0xff]
    %v103 = vld [vmem:[%s0 + $0x1f0] sm:$0xff]
    %v104 = vld [vmem:[%s0 + $0x1f8] sm:$0xff]
    %v105 = vld [vmem:[%s0 + $0x200] sm:$0xff]
    %v106 = vld [vmem:[%s0 + $0x208] sm:$0xff]
    %v107 = vld [vmem:[%s0 + $0x210] sm:$0xff]
    %v108 = vld [vmem:[%s0 + $0x218] sm:$0xff]
    %v109 = vld [vmem:[%s0 + $0x220] sm:$0xff]
    %v110 = vld [vmem:[%s0 + $0x228] sm:$0xff]
    %v111 = vld [vmem:[%s0 + $0x230] sm:$0xff]
    %v112 = vld [vmem:[%s0 + $0x238] sm:$0xff]
    %v113 = vld [vmem:[%s0 + $0x240] sm:$0xff]
    %v114 = vld [vmem:[%s0 + $0x248] sm:$0xff]
    %v115 = vld [vmem:[%s0 + $0x250] sm:$0xff]
    %v116 = vld [vmem:[%s0 + $0x258] sm:$0xff]
    %v117 = vld [vmem:[%s0 + $0x260] sm:$0xff]
    %v118 = vld [vmem:[%s0 + $0x268] sm:$0xff]
    %v119 = vld [vmem:[%s0 + $0x270] sm:$0xff]
    %v120 = vld [vmem:[%s0 + $0x278] sm:$0xff]
    %v121 = vld [vmem:[%s0 + $0x280] sm:$0xff]
    %v122 = vld [vmem:[%s0 + $0x288] sm:$0xff]
    %v123 = vld [vmem:[%s0 + $0x290] sm:$0xff]
    %v124 = vld [vmem:[%s0 + $0x298] sm:$0xff]
    %v125 = vld [vmem:[%s0 + $0x2a0] sm:$0xff]
    %v126 = vld [vmem:[%s0 + $0x2a8] sm:$0xff]
    %v127 = vld [vmem:[%s0 + $0x2b0] sm:$0xff]
    %v128 = vld [vmem:[%s0 + $0x2b8] sm:$0xff]
    %v129 = vld [vmem:[%s0 + $0x2c0] sm:$0xff]
    %v130 = vld [vmem:[%s0 + $0x2c8] sm:$0xff]
    %v131 = vld [vmem:[%s0 + $0x2d0] sm:$0xff]
    %v132 = vld [vmem:[%s0 + $0x2d8] sm:$0xff]
    %v133 = vld [vmem:[%s0 + $0x2e0] sm:$0xff]
    %v134 = vld [vmem:[%s0 + $0x2e8] sm:$0xff]
    %v135 = vld [vmem:[%s0 + $0x2f0] sm:$0xff]
    %v136 = vld [vmem:[%s0 + $0x2f8] sm:$0xff]
    %v137 = vld [vmem:[%s0 + $0x300] sm:$0xff]
    %v138 = vld [vmem:[%s0 + $0x308] sm:$0xff]
    %v139 = vld [vmem:[%s0 + $0x310] sm:$0xff]
    %v140 = vld [vmem:[%s0 + $0x318] sm:$0xff]
    %v141 = vld [vmem:[%s0 + $0x320] sm:$0xff]
    %v142 = vld [vmem:[%s0 + $0x328] sm:$0xff]
    %v143 = vld [vmem:[%s0 + $0x330] sm:$0xff]
    %v144 = vld [vmem:[%s0 + $0x338] sm:$0xff]
    %v145 = vld [vmem:[%s0 + $0x340] sm:$0xff]
    %v146 = vld [vmem:[%s0 + $0x348] sm:$0xff]
    %v147 = vld [vmem:[%s0 + $0x350] sm:$0xff]
    %v148 = vld [vmem:[%s0 + $0x358] sm:$0xff]
    %v149 = vld [vmem:[%s0 + $0x360] sm:$0xff]
    %v150 = vld [vmem:[%s0 + $0x368] sm:$0xff]
    %v151 = vld [vmem:[%s0 + $0x370] sm:$0xff]
    %v152 = vld [vmem:[%s0 + $0x378] sm:$0xff]
    %v153 = vld [vmem:[%s0 + $0x380] sm:$0xff]
    %v154 = vld [vmem:[%s0 + $0x388] sm:$0xff]
    %v155 = vld [vmem:[%s0 + $0x390] sm:$0xff]
    %v156 = vld [vmem:[%s0 + $0x398] sm:$0xff]
    %v157 = vld [vmem:[%s0 + $0x3a0] sm:$0xff]
    %v158 = vld [vmem:[%s0 + $0x3a8] sm:$0xff]
    %v159 = vld [vmem:[%s0 + $0x3b0] sm:$0xff]
    %v160 = vld [vmem:[%s0 + $0x3b8] sm:$0xff]
    %v161 = vld [vmem:[%s0 + $0x3c0] sm:$0xff]
    %v162 = vld [vmem:[%s0 + $0x3c8] sm:$0xff]
    %v163 = vld [vmem:[%s0 + $0x3d0] sm:$0xff]
    %v164 = vld [vmem:[%s0 + $0x3d8] sm:$0xff]
    %v165 = vld [vmem:[%s0 + $0x3e0] sm:$0xff]
    %v166 = vld [vmem:[%s0 + $0x3e8] sm:$0xff]
    %v167 = vld [vmem:[%s0 + $0x3f0] sm:$0xff]
    %v168 = vld [vmem:[%s0 + $0x3f8] sm:$0xff]
    %v169 = vld [vmem:[%s0 + $0x400] sm:$0xff]
    %v170 = vld [vmem:[%s0 + $0x408] sm:$0xff]
    %v171 = vld [vmem:[%s0 + $0x410] sm:$0xff]
    %v172 = vld [vmem:[%s0 + $0x418] sm:$0xff]
    %v173 = vld [vmem:[%s0 + $0x420] sm:$0xff]
    %v174 = vld [vmem:[%s0 + $0x428] sm:$0xff]
    %v175 = vld [vmem:[%s0 + $0x430] sm:$0xff]
    %v176 = vld [vmem:[%s0 + $0x438] sm:$0xff]
    %v177 = vld [vmem:[%s0 + $0x440] sm:$0xff]
    %v178 = vld [vmem:[%s0 + $0x448] sm:$0xff]
    %v179 = vld [vmem:[%s0 + $0x450] sm:$0xff]
    %v180 = vld [vmem:[%s0 + $0x458] sm:$0xff]
    %v181 = vld [vmem:[%s0 + $0x460] sm:$0xff]
    %v182 = vld [vmem:[%s0 + $0x468] sm:$0xff]
    %v183 = vld [vmem:[%s0 + $0x470] sm:$0xff]
    %v184 = vld [vmem:[%s0 + $0x478] sm:$0xff]
    %v185 = vld [vmem:[%s0 + $0x480] sm:$0xff]
    %v186 = vld [vmem:[%s0 + $0x488] sm:$0xff]
    %v187 = vld [vmem:[%s0 + $0x490] sm:$0xff]
    %v188 = vld [vmem:[%s0 + $0x498] sm:$0xff]
    %v189 = vld [vmem:[%s0 + $0x4a0] sm:$0xff]
    %v190 = vld [vmem:[%s0 + $0x4a8] sm:$0xff]
    %v191 = vld [vmem:[%s0 + $0x4b0] sm:$0xff]
    %v192 = vld [vmem:[%s0 + $0x4b8] sm:$0xff]
    %v193 = vld [vmem:[%s0 + $0x4c0] sm:$0xff]
    %v194 = vld [vmem:[%s0 + $0x4c8] sm:$0xff]
    %v195 = vld [vmem:[%s0 + $0x4d0] sm:$0xff]
    %v196 = vld [vmem:[%s0 + $0x4d8] sm:$0xff]
    %v197 = vld [vmem:[%s0 + $0x4e0] sm:$0xff]
    %v198 = vld [vmem:[%s0 + $0x4e8] sm:$0xff]
    %v199 = vld [vmem:[%s0 + $0x4f0] sm:$0xff]
    %v200 = vld [vmem:[%s0 + $0x4f8] sm:$0xff]
    %v201 = vld [vmem:[%s0 + $0x500] sm:$0xff]
    %v202 = vld [vmem:[%s0 + $0x508] sm:$0xff]
    %v203 = vld [vmem:[%s0 + $0x510] sm:$0xff]
    %v204 = vld [vmem:[%s0 + $0x518] sm:$0xff]
    %v205 = vld [vmem:[%s0 + $0x520] sm:$0xff]
    %v206 = vld [vmem:[%s0 + $0x528] sm:$0xff]
    %v207 = vld [vmem:[%s0 + $0x530] sm:$0xff]
    %v208 = vld [vmem:[%s0 + $0x538] sm:$0xff]
    %v209 = vld [vmem:[%s0 + $0x540] sm:$0xff]
    %v210 = vld [vmem:[%s0 + $0x548] sm:$0xff]
    %v211 = vld [vmem:[%s0 + $0x550] sm:$0xff]
    %v212 = vld [vmem:[%s0 + $0x558] sm:$0xff]
    %v213 = vld [vmem:[%s0 + $0x560] sm:$0xff]
    %v214 = vld [vmem:[%s0 + $0x568] sm:$0xff]
    %v215 = vld [vmem:[%s0 + $0x570] sm:$0xff]
    %v216 = vld [vmem:[%s0 + $0x578] sm:$0xff]
    %v217 = vld [vmem:[%s0 + $0x580] sm:$0xff]
    %v218 = vld [vmem:[%s0 + $0x588] sm:$0xff]
    %v219 = vld [vmem:[%s0 + $0x590] sm:$0xff]
    %v220 = vld [vmem:[%s0 + $0x598] sm:$0xff]
    %v221 = vld [vmem:[%s0 + $0x5a0] sm:$0xff]
    %v222 = vld [vmem:[%s0 + $0x5a8] sm:$0xff]
    %v223 = vld [vmem:[%s0 + $0x5b0] sm:$0xff]
    %v224 = vld [vmem:[%s0 + $0x5b8] sm:$0xff]
    %v225 = vld [vmem:[%s0 + $0x5c0] sm:$0xff]
    %v226 = vld [vmem:[%s0 + $0x5c8] sm:$0xff]
    %v227 = vld [vmem:[%s0 + $0x5d0] sm:$0xff]
    %v228 = vld [vmem:[%s0 + $0x5d8] sm:$0xff]
    %v229 = vld [vmem:[%s0 + $0x5e0] sm:$0xff]
    %v230 = vld [vmem:[%s0 + $0x5e8] sm:$0xff]
    %v231 = vld [vmem:[%s0 + $0x5f0] sm:$0xff]
    %v232 = vld [vmem:[%s0 + $0x5f8] sm:$0xff]
    %v233 = vld [vmem:[%s0 + $0x600] sm:$0xff]
    %v234 = vld [vmem:[%s0 + $0x608] sm:$0xff]
    %v235 = vld [vmem:[%s0 + $0x610] sm:$0xff]
    %v236 = vld [vmem:[%s0 + $0x618] sm:$0xff]
    %v237 = vld [vmem:[%s0 + $0x620] sm:$0xff]
    %v238 = vld [vmem:[%s0 + $0x628] sm:$0xff]
    %v239 = vld [vmem:[%s0 + $0x630] sm:$0xff]
    %v240 = vld [vmem:[%s0 + $0x638] sm:$0xff]
    %v241 = vld [vmem:[%s0 + $0x640] sm:$0xff]
    %v242 = vld [vmem:[%s0 + $0x648] sm:$0xff]
    %v243 = vld [vmem:[%s0 + $0x650] sm:$0xff]
    %v244 = vld [vmem:[%s0 + $0x658] sm:$0xff]
    %v245 = vld [vmem:[%s0 + $0x660] sm:$0xff]
    %v246 = vld [vmem:[%s0 + $0x668] sm:$0xff]
    %v247 = vld [vmem:[%s0 + $0x670] sm:$0xff]
    %v248 = vld [vmem:[%s0 + $0x678] sm:$0xff]
    %v249 = vld [vmem:[%s0 + $0x680] sm:$0xff]
    %v250 = vld [vmem:[%s0 + $0x688] sm:$0xff]
    %v251 = vld [vmem:[%s0 + $0x690] sm:$0xff]
    %v252 = vld [vmem:[%s0 + $0x698] sm:$0xff]
    %v253 = vld [vmem:[%s0 + $0x6a0] sm:$0xff]
    %v254 = vld [vmem:[%s0 + $0x6a8] sm:$0xff]
    %v255 = vld [vmem:[%s0 + $0x6b0] sm:$0xff]
    %v256 = vld [vmem:[%s0 + $0x6b8] sm:$0xff]
    %v257 = vld [vmem:[%s0 + $0x6c0] sm:$0xff]
    %v258 = vld [vmem:[%s0 + $0x6c8] sm:$0xff]
    %v259 = vld [vmem:[%s0 + $0x6d0] sm:$0xff]
    %v260 = vld [vmem:[%s0 + $0x6d8] sm:$0xff]
    %v261 = vld [vmem:[%s0 + $0x6e0] sm:$0xff]
    %v262 = vld [vmem:[%s0 + $0x6e8] sm:$0xff]
    %v263 = vld [vmem:[%s0 + $0x6f0] sm:$0xff]
    %v264 = vld [vmem:[%s0 + $0x6f8] sm:$0xff]
    %v265 = vld [vmem:[%s0 + $0x700] sm:$0xff]
    %v266 = vld [vmem:[%s0 + $0x708] sm:$0xff]
    %v267 = vld [vmem:[%s0 + $0x710] sm:$0xff]
    %v268 = vld [vmem:[%s0 + $0x718] sm:$0xff]
    %v269 = vld [vmem:[%s0 + $0x720] sm:$0xff]
    %v270 = vld [vmem:[%s0 + $0x728] sm:$0xff]
    %v271 = vld [vmem:[%s0 + $0x730] sm:$0xff]
    %v272 = vld [vmem:[%s0 + $0x738] sm:$0xff]
    %v273 = vld [vmem:[%s0 + $0x740] sm:$0xff]
    %v274 = vld [vmem:[%s0 + $0x748] sm:$0xff]
    %v275 = vld [vmem:[%s0 + $0x750] sm:$0xff]
    %v276 = vld [vmem:[%s0 + $0x758] sm:$0xff]
    %v277 = vld [vmem:[%s0 + $0x760] sm:$0xff]
    %v278 = vld [vmem:[%s0 + $0x768] sm:$0xff]
    %v279 = vld [vmem:[%s0 + $0x770] sm:$0xff]
    %v280 = vld [vmem:[%s0 + $0x778] sm:$0xff]
    %v281 = vld [vmem:[%s0 + $0x780] sm:$0xff]
    %v282 = vld [vmem:[%s0 + $0x788] sm:$0xff]
    %v283 = vld [vmem:[%s0 + $0x790] sm:$0xff]
    %v284 = vld [vmem:[%s0 + $0x798] sm:$0xff]
    %v285 = vld [vmem:[%s0 + $0x7a0] sm:$0xff]
    %v286 = vld [vmem:[%s0 + $0x7a8] sm:$0xff]
    %v287 = vld [vmem:[%s0 + $0x7b0] sm:$0xff]
    %v288 = vld [vmem:[%s0 + $0x7b8] sm:$0xff]
    %v289 = vld [vmem:[%s0 + $0x7c0] sm:$0xff]
    %v290 = vld [vmem:[%s0 + $0x7c8] sm:$0xff]
    %v291 = vld [vmem:[%s0 + $0x7d0] sm:$0xff]
    %v292 = vld [vmem:[%s0 + $0x7d8] sm:$0xff]
    %v293 = vld [vmem:[%s0 + $0x7e0] sm:$0xff]
    %v294 = vld [vmem:[%s0 + $0x7e8] sm:$0xff]
    %v295 = vld [vmem:[%s0 + $0x7f0] sm:$0xff]
    %v296 = vld [vmem:[%s0 + $0x7f8] sm:$0xff]
    %vm297 = vcmask 400384
    %v298 = vsel %vm297, %v41, 0.0
    %299 = vadd.xlane.f32.xlu0 %v298
    %v300 = vpop.xlane.xlu0 %299
    %v301 = vsel %vm297, %v42, 0.0
    %302 = vadd.xlane.f32.xlu0 %v301
    %v303 = vpop.xlane.xlu0 %302
    %v304 = vsel %vm297, %v43, 0.0
    %305 = vadd.xlane.f32.xlu0 %v304
    %v306 = vpop.xlane.xlu0 %305
    %v307 = vsel %vm297, %v44, 0.0
    %308 = vadd.xlane.f32.xlu0 %v307
    %v309 = vpop.xlane.xlu0 %308
    %v310 = vsel %vm297, %v45, 0.0
    %311 = vadd.xlane.f32.xlu0 %v310
    %v312 = vpop.xlane.xlu0 %311
    %v313 = vsel %vm297, %v46, 0.0
    %314 = vadd.xlane.f32.xlu0 %v313
    %v315 = vpop.xlane.xlu0 %314
    %v316 = vsel %vm297, %v47, 0.0
    %317 = vadd.xlane.f32.xlu0 %v316
    %v318 = vpop.xlane.xlu0 %317
    %v319 = vsel %vm297, %v48, 0.0
    %320 = vadd.xlane.f32.xlu0 %v319
    %v321 = vpop.xlane.xlu0 %320
    %v322 = vsel %vm297, %v49, 0.0
    %323 = vadd.xlane.f32.xlu0 %v322
    %v324 = vpop.xlane.xlu0 %323
    %v325 = vsel %vm297, %v50, 0.0
    %326 = vadd.xlane.f32.xlu0 %v325
    %v327 = vpop.xlane.xlu0 %326
    %v328 = vsel %vm297, %v51, 0.0
    %329 = vadd.xlane.f32.xlu0 %v328
    %v330 = vpop.xlane.xlu0 %329
    %v331 = vsel %vm297, %v52, 0.0
    %332 = vadd.xlane.f32.xlu0 %v331
    %v333 = vpop.xlane.xlu0 %332
    %v334 = vsel %vm297, %v53, 0.0
    %335 = vadd.xlane.f32.xlu0 %v334
    %v336 = vpop.xlane.xlu0 %335
    %v337 = vsel %vm297, %v54, 0.0
    %338 = vadd.xlane.f32.xlu0 %v337
    %v339 = vpop.xlane.xlu0 %338
    %v340 = vsel %vm297, %v55, 0.0
    %341 = vadd.xlane.f32.xlu0 %v340
    %v342 = vpop.xlane.xlu0 %341
    %v343 = vsel %vm297, %v56, 0.0
    %344 = vadd.xlane.f32.xlu0 %v343
    %v345 = vpop.xlane.xlu0 %344
    %v346 = vsel %vm297, %v57, 0.0
    %347 = vadd.xlane.f32.xlu0 %v346
    %v348 = vpop.xlane.xlu0 %347
    %v349 = vsel %vm297, %v58, 0.0
    %350 = vadd.xlane.f32.xlu0 %v349
    %v351 = vpop.xlane.xlu0 %350
    %v352 = vsel %vm297, %v59, 0.0
    %353 = vadd.xlane.f32.xlu0 %v352
    %v354 = vpop.xlane.xlu0 %353
    %v355 = vsel %vm297, %v60, 0.0
    %356 = vadd.xlane.f32.xlu0 %v355
    %v357 = vpop.xlane.xlu0 %356
    %v358 = vsel %vm297, %v61, 0.0
    %359 = vadd.xlane.f32.xlu0 %v358
    %v360 = vpop.xlane.xlu0 %359
    %v361 = vsel %vm297, %v62, 0.0
    %362 = vadd.xlane.f32.xlu0 %v361
    %v363 = vpop.xlane.xlu0 %362
    %v364 = vsel %vm297, %v63, 0.0
    %365 = vadd.xlane.f32.xlu0 %v364
    %v366 = vpop.xlane.xlu0 %365
    %v367 = vsel %vm297, %v64, 0.0
    %368 = vadd.xlane.f32.xlu0 %v367
    %v369 = vpop.xlane.xlu0 %368
    %v370 = vsel %vm297, %v65, 0.0
    %371 = vadd.xlane.f32.xlu0 %v370
    %v372 = vpop.xlane.xlu0 %371
    %v373 = vsel %vm297, %v66, 0.0
    %374 = vadd.xlane.f32.xlu0 %v373
    %v375 = vpop.xlane.xlu0 %374
    %v376 = vsel %vm297, %v67, 0.0
    %377 = vadd.xlane.f32.xlu0 %v376
    %v378 = vpop.xlane.xlu0 %377
    %v379 = vsel %vm297, %v68, 0.0
    %380 = vadd.xlane.f32.xlu0 %v379
    %v381 = vpop.xlane.xlu0 %380
    %v382 = vsel %vm297, %v69, 0.0
    %383 = vadd.xlane.f32.xlu0 %v382
    %v384 = vpop.xlane.xlu0 %383
    %v385 = vsel %vm297, %v70, 0.0
    %386 = vadd.xlane.f32.xlu0 %v385
    %v387 = vpop.xlane.xlu0 %386
    %v388 = vsel %vm297, %v71, 0.0
    %389 = vadd.xlane.f32.xlu0 %v388
    %v390 = vpop.xlane.xlu0 %389
    %v391 = vsel %vm297, %v72, 0.0
    %392 = vadd.xlane.f32.xlu0 %v391
    %v393 = vpop.xlane.xlu0 %392
    %v394 = vsel %vm297, %v73, 0.0
    %395 = vadd.xlane.f32.xlu0 %v394
    %v396 = vpop.xlane.xlu0 %395
    %v397 = vsel %vm297, %v74, 0.0
    %398 = vadd.xlane.f32.xlu0 %v397
    %v399 = vpop.xlane.xlu0 %398
    %v400 = vsel %vm297, %v75, 0.0
    %401 = vadd.xlane.f32.xlu0 %v400
    %v402 = vpop.xlane.xlu0 %401
    %v403 = vsel %vm297, %v76, 0.0
    %404 = vadd.xlane.f32.xlu0 %v403
    %v405 = vpop.xlane.xlu0 %404
    %v406 = vsel %vm297, %v77, 0.0
    %407 = vadd.xlane.f32.xlu0 %v406
    %v408 = vpop.xlane.xlu0 %407
    %v409 = vsel %vm297, %v78, 0.0
    %410 = vadd.xlane.f32.xlu0 %v409
    %v411 = vpop.xlane.xlu0 %410
    %v412 = vsel %vm297, %v79, 0.0
    %413 = vadd.xlane.f32.xlu0 %v412
    %v414 = vpop.xlane.xlu0 %413
    %v415 = vsel %vm297, %v80, 0.0
    %416 = vadd.xlane.f32.xlu0 %v415
    %v417 = vpop.xlane.xlu0 %416
    %v418 = vsel %vm297, %v81, 0.0
    %419 = vadd.xlane.f32.xlu0 %v418
    %v420 = vpop.xlane.xlu0 %419
    %v421 = vsel %vm297, %v82, 0.0
    %422 = vadd.xlane.f32.xlu0 %v421
    %v423 = vpop.xlane.xlu0 %422
    %v424 = vsel %vm297, %v83, 0.0
    %425 = vadd.xlane.f32.xlu0 %v424
    %v426 = vpop.xlane.xlu0 %425
    %v427 = vsel %vm297, %v84, 0.0
    %428 = vadd.xlane.f32.xlu0 %v427
    %v429 = vpop.xlane.xlu0 %428
    %v430 = vsel %vm297, %v85, 0.0
    %431 = vadd.xlane.f32.xlu0 %v430
    %v432 = vpop.xlane.xlu0 %431
    %v433 = vsel %vm297, %v86, 0.0
    %434 = vadd.xlane.f32.xlu0 %v433
    %v435 = vpop.xlane.xlu0 %434
    %v436 = vsel %vm297, %v87, 0.0
    %437 = vadd.xlane.f32.xlu0 %v436
    %v438 = vpop.xlane.xlu0 %437
    %v439 = vsel %vm297, %v88, 0.0
    %440 = vadd.xlane.f32.xlu0 %v439
    %v441 = vpop.xlane.xlu0 %440
    %v442 = vsel %vm297, %v89, 0.0
    %443 = vadd.xlane.f32.xlu0 %v442
    %v444 = vpop.xlane.xlu0 %443
    %v445 = vsel %vm297, %v90, 0.0
    %446 = vadd.xlane.f32.xlu0 %v445
    %v447 = vpop.xlane.xlu0 %446
    %v448 = vsel %vm297, %v91, 0.0
    %449 = vadd.xlane.f32.xlu0 %v448
    %v450 = vpop.xlane.xlu0 %449
    %v451 = vsel %vm297, %v92, 0.0
    %452 = vadd.xlane.f32.xlu0 %v451
    %v453 = vpop.xlane.xlu0 %452
    %v454 = vsel %vm297, %v93, 0.0
    %455 = vadd.xlane.f32.xlu0 %v454
    %v456 = vpop.xlane.xlu0 %455
    %v457 = vsel %vm297, %v94, 0.0
    %458 = vadd.xlane.f32.xlu0 %v457
    %v459 = vpop.xlane.xlu0 %458
    %v460 = vsel %vm297, %v95, 0.0
    %461 = vadd.xlane.f32.xlu0 %v460
    %v462 = vpop.xlane.xlu0 %461
    %v463 = vsel %vm297, %v96, 0.0
    %464 = vadd.xlane.f32.xlu0 %v463
    %v465 = vpop.xlane.xlu0 %464
    %v466 = vsel %vm297, %v97, 0.0
    %467 = vadd.xlane.f32.xlu0 %v466
    %v468 = vpop.xlane.xlu0 %467
    %v469 = vsel %vm297, %v98, 0.0
    %470 = vadd.xlane.f32.xlu0 %v469
    %v471 = vpop.xlane.xlu0 %470
    %v472 = vsel %vm297, %v99, 0.0
    %473 = vadd.xlane.f32.xlu0 %v472
    %v474 = vpop.xlane.xlu0 %473
    %v475 = vsel %vm297, %v100, 0.0
    %476 = vadd.xlane.f32.xlu0 %v475
    %v477 = vpop.xlane.xlu0 %476
    %v478 = vsel %vm297, %v101, 0.0
    %479 = vadd.xlane.f32.xlu0 %v478
    %v480 = vpop.xlane.xlu0 %479
    %v481 = vsel %vm297, %v102, 0.0
    %482 = vadd.xlane.f32.xlu0 %v481
    %v483 = vpop.xlane.xlu0 %482
    %v484 = vsel %vm297, %v103, 0.0
    %485 = vadd.xlane.f32.xlu0 %v484
    %v486 = vpop.xlane.xlu0 %485
    %v487 = vsel %vm297, %v104, 0.0
    %488 = vadd.xlane.f32.xlu0 %v487
    %v489 = vpop.xlane.xlu0 %488
    %v490 = vsel %vm297, %v105, 0.0
    %491 = vadd.xlane.f32.xlu0 %v490
    %v492 = vpop.xlane.xlu0 %491
    %v493 = vsel %vm297, %v106, 0.0
    %494 = vadd.xlane.f32.xlu0 %v493
    %v495 = vpop.xlane.xlu0 %494
    %v496 = vsel %vm297, %v107, 0.0
    %497 = vadd.xlane.f32.xlu0 %v496
    %v498 = vpop.xlane.xlu0 %497
    %v499 = vsel %vm297, %v108, 0.0
    %500 = vadd.xlane.f32.xlu0 %v499
    %v501 = vpop.xlane.xlu0 %500
    %v502 = vsel %vm297, %v109, 0.0
    %503 = vadd.xlane.f32.xlu0 %v502
    %v504 = vpop.xlane.xlu0 %503
    %v505 = vsel %vm297, %v110, 0.0
    %506 = vadd.xlane.f32.xlu0 %v505
    %v507 = vpop.xlane.xlu0 %506
    %v508 = vsel %vm297, %v111, 0.0
    %509 = vadd.xlane.f32.xlu0 %v508
    %v510 = vpop.xlane.xlu0 %509
    %v511 = vsel %vm297, %v112, 0.0
    %512 = vadd.xlane.f32.xlu0 %v511
    %v513 = vpop.xlane.xlu0 %512
    %v514 = vsel %vm297, %v113, 0.0
    %515 = vadd.xlane.f32.xlu0 %v514
    %v516 = vpop.xlane.xlu0 %515
    %v517 = vsel %vm297, %v114, 0.0
    %518 = vadd.xlane.f32.xlu0 %v517
    %v519 = vpop.xlane.xlu0 %518
    %v520 = vsel %vm297, %v115, 0.0
    %521 = vadd.xlane.f32.xlu0 %v520
    %v522 = vpop.xlane.xlu0 %521
    %v523 = vsel %vm297, %v116, 0.0
    %524 = vadd.xlane.f32.xlu0 %v523
    %v525 = vpop.xlane.xlu0 %524
    %v526 = vsel %vm297, %v117, 0.0
    %527 = vadd.xlane.f32.xlu0 %v526
    %v528 = vpop.xlane.xlu0 %527
    %v529 = vsel %vm297, %v118, 0.0
    %530 = vadd.xlane.f32.xlu0 %v529
    %v531 = vpop.xlane.xlu0 %530
    %v532 = vsel %vm297, %v119, 0.0
    %533 = vadd.xlane.f32.xlu0 %v532
    %v534 = vpop.xlane.xlu0 %533
    %v535 = vsel %vm297, %v120, 0.0
    %536 = vadd.xlane.f32.xlu0 %v535
    %v537 = vpop.xlane.xlu0 %536
    %v538 = vsel %vm297, %v121, 0.0
    %539 = vadd.xlane.f32.xlu0 %v538
    %v540 = vpop.xlane.xlu0 %539
    %v541 = vsel %vm297, %v122, 0.0
    %542 = vadd.xlane.f32.xlu0 %v541
    %v543 = vpop.xlane.xlu0 %542
    %v544 = vsel %vm297, %v123, 0.0
    %545 = vadd.xlane.f32.xlu0 %v544
    %v546 = vpop.xlane.xlu0 %545
    %v547 = vsel %vm297, %v124, 0.0
    %548 = vadd.xlane.f32.xlu0 %v547
    %v549 = vpop.xlane.xlu0 %548
    %v550 = vsel %vm297, %v125, 0.0
    %551 = vadd.xlane.f32.xlu0 %v550
    %v552 = vpop.xlane.xlu0 %551
    %v553 = vsel %vm297, %v126, 0.0
    %554 = vadd.xlane.f32.xlu0 %v553
    %v555 = vpop.xlane.xlu0 %554
    %v556 = vsel %vm297, %v127, 0.0
    %557 = vadd.xlane.f32.xlu0 %v556
    %v558 = vpop.xlane.xlu0 %557
    %v559 = vsel %vm297, %v128, 0.0
    %560 = vadd.xlane.f32.xlu0 %v559
    %v561 = vpop.xlane.xlu0 %560
    %v562 = vsel %vm297, %v129, 0.0
    %563 = vadd.xlane.f32.xlu0 %v562
    %v564 = vpop.xlane.xlu0 %563
    %v565 = vsel %vm297, %v130, 0.0
    %566 = vadd.xlane.f32.xlu0 %v565
    %v567 = vpop.xlane.xlu0 %566
    %v568 = vsel %vm297, %v131, 0.0
    %569 = vadd.xlane.f32.xlu0 %v568
    %v570 = vpop.xlane.xlu0 %569
    %v571 = vsel %vm297, %v132, 0.0
    %572 = vadd.xlane.f32.xlu0 %v571
    %v573 = vpop.xlane.xlu0 %572
    %v574 = vsel %vm297, %v133, 0.0
    %575 = vadd.xlane.f32.xlu0 %v574
    %v576 = vpop.xlane.xlu0 %575
    %v577 = vsel %vm297, %v134, 0.0
    %578 = vadd.xlane.f32.xlu0 %v577
    %v579 = vpop.xlane.xlu0 %578
    %v580 = vsel %vm297, %v135, 0.0
    %581 = vadd.xlane.f32.xlu0 %v580
    %v582 = vpop.xlane.xlu0 %581
    %v583 = vsel %vm297, %v136, 0.0
    %584 = vadd.xlane.f32.xlu0 %v583
    %v585 = vpop.xlane.xlu0 %584
    %v586 = vsel %vm297, %v137, 0.0
    %587 = vadd.xlane.f32.xlu0 %v586
    %v588 = vpop.xlane.xlu0 %587
    %v589 = vsel %vm297, %v138, 0.0
    %590 = vadd.xlane.f32.xlu0 %v589
    %v591 = vpop.xlane.xlu0 %590
    %v592 = vsel %vm297, %v139, 0.0
    %593 = vadd.xlane.f32.xlu0 %v592
    %v594 = vpop.xlane.xlu0 %593
    %v595 = vsel %vm297, %v140, 0.0
    %596 = vadd.xlane.f32.xlu0 %v595
    %v597 = vpop.xlane.xlu0 %596
    %v598 = vsel %vm297, %v141, 0.0
    %599 = vadd.xlane.f32.xlu0 %v598
    %v600 = vpop.xlane.xlu0 %599
    %v601 = vsel %vm297, %v142, 0.0
    %602 = vadd.xlane.f32.xlu0 %v601
    %v603 = vpop.xlane.xlu0 %602
    %v604 = vsel %vm297, %v143, 0.0
    %605 = vadd.xlane.f32.xlu0 %v604
    %v606 = vpop.xlane.xlu0 %605
    %v607 = vsel %vm297, %v144, 0.0
    %608 = vadd.xlane.f32.xlu0 %v607
    %v609 = vpop.xlane.xlu0 %608
    %v610 = vsel %vm297, %v145, 0.0
    %611 = vadd.xlane.f32.xlu0 %v610
    %v612 = vpop.xlane.xlu0 %611
    %v613 = vsel %vm297, %v146, 0.0
    %614 = vadd.xlane.f32.xlu0 %v613
    %v615 = vpop.xlane.xlu0 %614
    %v616 = vsel %vm297, %v147, 0.0
    %617 = vadd.xlane.f32.xlu0 %v616
    %v618 = vpop.xlane.xlu0 %617
    %v619 = vsel %vm297, %v148, 0.0
    %620 = vadd.xlane.f32.xlu0 %v619
    %v621 = vpop.xlane.xlu0 %620
    %v622 = vsel %vm297, %v149, 0.0
    %623 = vadd.xlane.f32.xlu0 %v622
    %v624 = vpop.xlane.xlu0 %623
    %v625 = vsel %vm297, %v150, 0.0
    %626 = vadd.xlane.f32.xlu0 %v625
    %v627 = vpop.xlane.xlu0 %626
    %v628 = vsel %vm297, %v151, 0.0
    %629 = vadd.xlane.f32.xlu0 %v628
    %v630 = vpop.xlane.xlu0 %629
    %v631 = vsel %vm297, %v152, 0.0
    %632 = vadd.xlane.f32.xlu0 %v631
    %v633 = vpop.xlane.xlu0 %632
    %v634 = vsel %vm297, %v153, 0.0
    %635 = vadd.xlane.f32.xlu0 %v634
    %v636 = vpop.xlane.xlu0 %635
    %v637 = vsel %vm297, %v154, 0.0
    %638 = vadd.xlane.f32.xlu0 %v637
    %v639 = vpop.xlane.xlu0 %638
    %v640 = vsel %vm297, %v155, 0.0
    %641 = vadd.xlane.f32.xlu0 %v640
    %v642 = vpop.xlane.xlu0 %641
    %v643 = vsel %vm297, %v156, 0.0
    %644 = vadd.xlane.f32.xlu0 %v643
    %v645 = vpop.xlane.xlu0 %644
    %v646 = vsel %vm297, %v157, 0.0
    %647 = vadd.xlane.f32.xlu0 %v646
    %v648 = vpop.xlane.xlu0 %647
    %v649 = vsel %vm297, %v158, 0.0
    %650 = vadd.xlane.f32.xlu0 %v649
    %v651 = vpop.xlane.xlu0 %650
    %v652 = vsel %vm297, %v159, 0.0
    %653 = vadd.xlane.f32.xlu0 %v652
    %v654 = vpop.xlane.xlu0 %653
    %v655 = vsel %vm297, %v160, 0.0
    %656 = vadd.xlane.f32.xlu0 %v655
    %v657 = vpop.xlane.xlu0 %656
    %v658 = vsel %vm297, %v161, 0.0
    %659 = vadd.xlane.f32.xlu0 %v658
    %v660 = vpop.xlane.xlu0 %659
    %v661 = vsel %vm297, %v162, 0.0
    %662 = vadd.xlane.f32.xlu0 %v661
    %v663 = vpop.xlane.xlu0 %662
    %v664 = vsel %vm297, %v163, 0.0
    %665 = vadd.xlane.f32.xlu0 %v664
    %v666 = vpop.xlane.xlu0 %665
    %v667 = vsel %vm297, %v164, 0.0
    %668 = vadd.xlane.f32.xlu0 %v667
    %v669 = vpop.xlane.xlu0 %668
    %v670 = vsel %vm297, %v165, 0.0
    %671 = vadd.xlane.f32.xlu0 %v670
    %v672 = vpop.xlane.xlu0 %671
    %v673 = vsel %vm297, %v166, 0.0
    %674 = vadd.xlane.f32.xlu0 %v673
    %v675 = vpop.xlane.xlu0 %674
    %v676 = vsel %vm297, %v167, 0.0
    %677 = vadd.xlane.f32.xlu0 %v676
    %v678 = vpop.xlane.xlu0 %677
    %v679 = vsel %vm297, %v168, 0.0
    %680 = vadd.xlane.f32.xlu0 %v679
    %v681 = vpop.xlane.xlu0 %680
    %v682 = vsel %vm297, %v169, 0.0
    %683 = vadd.xlane.f32.xlu0 %v682
    %v684 = vpop.xlane.xlu0 %683
    %v685 = vsel %vm297, %v170, 0.0
    %686 = vadd.xlane.f32.xlu0 %v685
    %v687 = vpop.xlane.xlu0 %686
    %v688 = vsel %vm297, %v171, 0.0
    %689 = vadd.xlane.f32.xlu0 %v688
    %v690 = vpop.xlane.xlu0 %689
    %v691 = vsel %vm297, %v172, 0.0
    %692 = vadd.xlane.f32.xlu0 %v691
    %v693 = vpop.xlane.xlu0 %692
    %v694 = vsel %vm297, %v173, 0.0
    %695 = vadd.xlane.f32.xlu0 %v694
    %v696 = vpop.xlane.xlu0 %695
    %v697 = vsel %vm297, %v174, 0.0
    %698 = vadd.xlane.f32.xlu0 %v697
    %v699 = vpop.xlane.xlu0 %698
    %v700 = vsel %vm297, %v175, 0.0
    %701 = vadd.xlane.f32.xlu0 %v700
    %v702 = vpop.xlane.xlu0 %701
    %v703 = vsel %vm297, %v176, 0.0
    %704 = vadd.xlane.f32.xlu0 %v703
    %v705 = vpop.xlane.xlu0 %704
    %v706 = vsel %vm297, %v177, 0.0
    %707 = vadd.xlane.f32.xlu0 %v706
    %v708 = vpop.xlane.xlu0 %707
    %v709 = vsel %vm297, %v178, 0.0
    %710 = vadd.xlane.f32.xlu0 %v709
    %v711 = vpop.xlane.xlu0 %710
    %v712 = vsel %vm297, %v179, 0.0
    %713 = vadd.xlane.f32.xlu0 %v712
    %v714 = vpop.xlane.xlu0 %713
    %v715 = vsel %vm297, %v180, 0.0
    %716 = vadd.xlane.f32.xlu0 %v715
    %v717 = vpop.xlane.xlu0 %716
    %v718 = vsel %vm297, %v181, 0.0
    %719 = vadd.xlane.f32.xlu0 %v718
    %v720 = vpop.xlane.xlu0 %719
    %v721 = vsel %vm297, %v182, 0.0
    %722 = vadd.xlane.f32.xlu0 %v721
    %v723 = vpop.xlane.xlu0 %722
    %v724 = vsel %vm297, %v183, 0.0
    %725 = vadd.xlane.f32.xlu0 %v724
    %v726 = vpop.xlane.xlu0 %725
    %v727 = vsel %vm297, %v184, 0.0
    %728 = vadd.xlane.f32.xlu0 %v727
    %v729 = vpop.xlane.xlu0 %728
    %v730 = vsel %vm297, %v185, 0.0
    %731 = vadd.xlane.f32.xlu0 %v730
    %v732 = vpop.xlane.xlu0 %731
    %v733 = vsel %vm297, %v186, 0.0
    %734 = vadd.xlane.f32.xlu0 %v733
    %v735 = vpop.xlane.xlu0 %734
    %v736 = vsel %vm297, %v187, 0.0
    %737 = vadd.xlane.f32.xlu0 %v736
    %v738 = vpop.xlane.xlu0 %737
    %v739 = vsel %vm297, %v188, 0.0
    %740 = vadd.xlane.f32.xlu0 %v739
    %v741 = vpop.xlane.xlu0 %740
    %v742 = vsel %vm297, %v189, 0.0
    %743 = vadd.xlane.f32.xlu0 %v742
    %v744 = vpop.xlane.xlu0 %743
    %v745 = vsel %vm297, %v190, 0.0
    %746 = vadd.xlane.f32.xlu0 %v745
    %v747 = vpop.xlane.xlu0 %746
    %v748 = vsel %vm297, %v191, 0.0
    %749 = vadd.xlane.f32.xlu0 %v748
    %v750 = vpop.xlane.xlu0 %749
    %v751 = vsel %vm297, %v192, 0.0
    %752 = vadd.xlane.f32.xlu0 %v751
    %v753 = vpop.xlane.xlu0 %752
    %v754 = vsel %vm297, %v193, 0.0
    %755 = vadd.xlane.f32.xlu0 %v754
    %v756 = vpop.xlane.xlu0 %755
    %v757 = vsel %vm297, %v194, 0.0
    %758 = vadd.xlane.f32.xlu0 %v757
    %v759 = vpop.xlane.xlu0 %758
    %v760 = vsel %vm297, %v195, 0.0
    %761 = vadd.xlane.f32.xlu0 %v760
    %v762 = vpop.xlane.xlu0 %761
    %v763 = vsel %vm297, %v196, 0.0
    %764 = vadd.xlane.f32.xlu0 %v763
    %v765 = vpop.xlane.xlu0 %764
    %v766 = vsel %vm297, %v197, 0.0
    %767 = vadd.xlane.f32.xlu0 %v766
    %v768 = vpop.xlane.xlu0 %767
    %v769 = vsel %vm297, %v198, 0.0
    %770 = vadd.xlane.f32.xlu0 %v769
    %v771 = vpop.xlane.xlu0 %770
    %v772 = vsel %vm297, %v199, 0.0
    %773 = vadd.xlane.f32.xlu0 %v772
    %v774 = vpop.xlane.xlu0 %773
    %v775 = vsel %vm297, %v200, 0.0
    %776 = vadd.xlane.f32.xlu0 %v775
    %v777 = vpop.xlane.xlu0 %776
    %v778 = vsel %vm297, %v201, 0.0
    %779 = vadd.xlane.f32.xlu0 %v778
    %v780 = vpop.xlane.xlu0 %779
    %v781 = vsel %vm297, %v202, 0.0
    %782 = vadd.xlane.f32.xlu0 %v781
    %v783 = vpop.xlane.xlu0 %782
    %v784 = vsel %vm297, %v203, 0.0
    %785 = vadd.xlane.f32.xlu0 %v784
    %v786 = vpop.xlane.xlu0 %785
    %v787 = vsel %vm297, %v204, 0.0
    %788 = vadd.xlane.f32.xlu0 %v787
    %v789 = vpop.xlane.xlu0 %788
    %v790 = vsel %vm297, %v205, 0.0
    %791 = vadd.xlane.f32.xlu0 %v790
    %v792 = vpop.xlane.xlu0 %791
    %v793 = vsel %vm297, %v206, 0.0
    %794 = vadd.xlane.f32.xlu0 %v793
    %v795 = vpop.xlane.xlu0 %794
    %v796 = vsel %vm297, %v207, 0.0
    %797 = vadd.xlane.f32.xlu0 %v796
    %v798 = vpop.xlane.xlu0 %797
    %v799 = vsel %vm297, %v208, 0.0
    %800 = vadd.xlane.f32.xlu0 %v799
    %v801 = vpop.xlane.xlu0 %800
    %v802 = vsel %vm297, %v209, 0.0
    %803 = vadd.xlane.f32.xlu0 %v802
    %v804 = vpop.xlane.xlu0 %803
    %v805 = vsel %vm297, %v210, 0.0
    %806 = vadd.xlane.f32.xlu0 %v805
    %v807 = vpop.xlane.xlu0 %806
    %v808 = vsel %vm297, %v211, 0.0
    %809 = vadd.xlane.f32.xlu0 %v808
    %v810 = vpop.xlane.xlu0 %809
    %v811 = vsel %vm297, %v212, 0.0
    %812 = vadd.xlane.f32.xlu0 %v811
    %v813 = vpop.xlane.xlu0 %812
    %v814 = vsel %vm297, %v213, 0.0
    %815 = vadd.xlane.f32.xlu0 %v814
    %v816 = vpop.xlane.xlu0 %815
    %v817 = vsel %vm297, %v214, 0.0
    %818 = vadd.xlane.f32.xlu0 %v817
    %v819 = vpop.xlane.xlu0 %818
    %v820 = vsel %vm297, %v215, 0.0
    %821 = vadd.xlane.f32.xlu0 %v820
    %v822 = vpop.xlane.xlu0 %821
    %v823 = vsel %vm297, %v216, 0.0
    %824 = vadd.xlane.f32.xlu0 %v823
    %v825 = vpop.xlane.xlu0 %824
    %v826 = vsel %vm297, %v217, 0.0
    %827 = vadd.xlane.f32.xlu0 %v826
    %v828 = vpop.xlane.xlu0 %827
    %v829 = vsel %vm297, %v218, 0.0
    %830 = vadd.xlane.f32.xlu0 %v829
    %v831 = vpop.xlane.xlu0 %830
    %v832 = vsel %vm297, %v219, 0.0
    %833 = vadd.xlane.f32.xlu0 %v832
    %v834 = vpop.xlane.xlu0 %833
    %v835 = vsel %vm297, %v220, 0.0
    %836 = vadd.xlane.f32.xlu0 %v835
    %v837 = vpop.xlane.xlu0 %836
    %v838 = vsel %vm297, %v221, 0.0
    %839 = vadd.xlane.f32.xlu0 %v838
    %v840 = vpop.xlane.xlu0 %839
    %v841 = vsel %vm297, %v222, 0.0
    %842 = vadd.xlane.f32.xlu0 %v841
    %v843 = vpop.xlane.xlu0 %842
    %v844 = vsel %vm297, %v223, 0.0
    %845 = vadd.xlane.f32.xlu0 %v844
    %v846 = vpop.xlane.xlu0 %845
    %v847 = vsel %vm297, %v224, 0.0
    %848 = vadd.xlane.f32.xlu0 %v847
    %v849 = vpop.xlane.xlu0 %848
    %v850 = vsel %vm297, %v225, 0.0
    %851 = vadd.xlane.f32.xlu0 %v850
    %v852 = vpop.xlane.xlu0 %851
    %v853 = vsel %vm297, %v226, 0.0
    %854 = vadd.xlane.f32.xlu0 %v853
    %v855 = vpop.xlane.xlu0 %854
    %v856 = vsel %vm297, %v227, 0.0
    %857 = vadd.xlane.f32.xlu0 %v856
    %v858 = vpop.xlane.xlu0 %857
    %v859 = vsel %vm297, %v228, 0.0
    %860 = vadd.xlane.f32.xlu0 %v859
    %v861 = vpop.xlane.xlu0 %860
    %v862 = vsel %vm297, %v229, 0.0
    %863 = vadd.xlane.f32.xlu0 %v862
    %v864 = vpop.xlane.xlu0 %863
    %v865 = vsel %vm297, %v230, 0.0
    %866 = vadd.xlane.f32.xlu0 %v865
    %v867 = vpop.xlane.xlu0 %866
    %v868 = vsel %vm297, %v231, 0.0
    %869 = vadd.xlane.f32.xlu0 %v868
    %v870 = vpop.xlane.xlu0 %869
    %v871 = vsel %vm297, %v232, 0.0
    %872 = vadd.xlane.f32.xlu0 %v871
    %v873 = vpop.xlane.xlu0 %872
    %v874 = vsel %vm297, %v233, 0.0
    %875 = vadd.xlane.f32.xlu0 %v874
    %v876 = vpop.xlane.xlu0 %875
    %v877 = vsel %vm297, %v234, 0.0
    %878 = vadd.xlane.f32.xlu0 %v877
    %v879 = vpop.xlane.xlu0 %878
    %v880 = vsel %vm297, %v235, 0.0
    %881 = vadd.xlane.f32.xlu0 %v880
    %v882 = vpop.xlane.xlu0 %881
    %v883 = vsel %vm297, %v236, 0.0
    %884 = vadd.xlane.f32.xlu0 %v883
    %v885 = vpop.xlane.xlu0 %884
    %v886 = vsel %vm297, %v237, 0.0
    %887 = vadd.xlane.f32.xlu0 %v886
    %v888 = vpop.xlane.xlu0 %887
    %v889 = vsel %vm297, %v238, 0.0
    %890 = vadd.xlane.f32.xlu0 %v889
    %v891 = vpop.xlane.xlu0 %890
    %v892 = vsel %vm297, %v239, 0.0
    %893 = vadd.xlane.f32.xlu0 %v892
    %v894 = vpop.xlane.xlu0 %893
    %v895 = vsel %vm297, %v240, 0.0
    %896 = vadd.xlane.f32.xlu0 %v895
    %v897 = vpop.xlane.xlu0 %896
    %v898 = vsel %vm297, %v241, 0.0
    %899 = vadd.xlane.f32.xlu0 %v898
    %v900 = vpop.xlane.xlu0 %899
    %v901 = vsel %vm297, %v242, 0.0
    %902 = vadd.xlane.f32.xlu0 %v901
    %v903 = vpop.xlane.xlu0 %902
    %v904 = vsel %vm297, %v243, 0.0
    %905 = vadd.xlane.f32.xlu0 %v904
    %v906 = vpop.xlane.xlu0 %905
    %v907 = vsel %vm297, %v244, 0.0
    %908 = vadd.xlane.f32.xlu0 %v907
    %v909 = vpop.xlane.xlu0 %908
    %v910 = vsel %vm297, %v245, 0.0
    %911 = vadd.xlane.f32.xlu0 %v910
    %v912 = vpop.xlane.xlu0 %911
    %v913 = vsel %vm297, %v246, 0.0
    %914 = vadd.xlane.f32.xlu0 %v913
    %v915 = vpop.xlane.xlu0 %914
    %v916 = vsel %vm297, %v247, 0.0
    %917 = vadd.xlane.f32.xlu0 %v916
    %v918 = vpop.xlane.xlu0 %917
    %v919 = vsel %vm297, %v248, 0.0
    %920 = vadd.xlane.f32.xlu0 %v919
    %v921 = vpop.xlane.xlu0 %920
    %v922 = vsel %vm297, %v249, 0.0
    %923 = vadd.xlane.f32.xlu0 %v922
    %v924 = vpop.xlane.xlu0 %923
    %v925 = vsel %vm297, %v250, 0.0
    %926 = vadd.xlane.f32.xlu0 %v925
    %v927 = vpop.xlane.xlu0 %926
    %v928 = vsel %vm297, %v251, 0.0
    %929 = vadd.xlane.f32.xlu0 %v928
    %v930 = vpop.xlane.xlu0 %929
    %v931 = vsel %vm297, %v252, 0.0
    %932 = vadd.xlane.f32.xlu0 %v931
    %v933 = vpop.xlane.xlu0 %932
    %v934 = vsel %vm297, %v253, 0.0
    %935 = vadd.xlane.f32.xlu0 %v934
    %v936 = vpop.xlane.xlu0 %935
    %v937 = vsel %vm297, %v254, 0.0
    %938 = vadd.xlane.f32.xlu0 %v937
    %v939 = vpop.xlane.xlu0 %938
    %v940 = vsel %vm297, %v255, 0.0
    %941 = vadd.xlane.f32.xlu0 %v940
    %v942 = vpop.xlane.xlu0 %941
    %v943 = vsel %vm297, %v256, 0.0
    %944 = vadd.xlane.f32.xlu0 %v943
    %v945 = vpop.xlane.xlu0 %944
    %v946 = vsel %vm297, %v257, 0.0
    %947 = vadd.xlane.f32.xlu0 %v946
    %v948 = vpop.xlane.xlu0 %947
    %v949 = vsel %vm297, %v258, 0.0
    %950 = vadd.xlane.f32.xlu0 %v949
    %v951 = vpop.xlane.xlu0 %950
    %v952 = vsel %vm297, %v259, 0.0
    %953 = vadd.xlane.f32.xlu0 %v952
    %v954 = vpop.xlane.xlu0 %953
    %v955 = vsel %vm297, %v260, 0.0
    %956 = vadd.xlane.f32.xlu0 %v955
    %v957 = vpop.xlane.xlu0 %956
    %v958 = vsel %vm297, %v261, 0.0
    %959 = vadd.xlane.f32.xlu0 %v958
    %v960 = vpop.xlane.xlu0 %959
    %v961 = vsel %vm297, %v262, 0.0
    %962 = vadd.xlane.f32.xlu0 %v961
    %v963 = vpop.xlane.xlu0 %962
    %v964 = vsel %vm297, %v263, 0.0
    %965 = vadd.xlane.f32.xlu0 %v964
    %v966 = vpop.xlane.xlu0 %965
    %v967 = vsel %vm297, %v264, 0.0
    %968 = vadd.xlane.f32.xlu0 %v967
    %v969 = vpop.xlane.xlu0 %968
    %v970 = vsel %vm297, %v265, 0.0
    %971 = vadd.xlane.f32.xlu0 %v970
    %v972 = vpop.xlane.xlu0 %971
    %v973 = vsel %vm297, %v266, 0.0
    %974 = vadd.xlane.f32.xlu0 %v973
    %v975 = vpop.xlane.xlu0 %974
    %v976 = vsel %vm297, %v267, 0.0
    %977 = vadd.xlane.f32.xlu0 %v976
    %v978 = vpop.xlane.xlu0 %977
    %v979 = vsel %vm297, %v268, 0.0
    %980 = vadd.xlane.f32.xlu0 %v979
    %v981 = vpop.xlane.xlu0 %980
    %v982 = vsel %vm297, %v269, 0.0
    %983 = vadd.xlane.f32.xlu0 %v982
    %v984 = vpop.xlane.xlu0 %983
    %v985 = vsel %vm297, %v270, 0.0
    %986 = vadd.xlane.f32.xlu0 %v985
    %v987 = vpop.xlane.xlu0 %986
    %v988 = vsel %vm297, %v271, 0.0
    %989 = vadd.xlane.f32.xlu0 %v988
    %v990 = vpop.xlane.xlu0 %989
    %v991 = vsel %vm297, %v272, 0.0
    %992 = vadd.xlane.f32.xlu0 %v991
    %v993 = vpop.xlane.xlu0 %992
    %v994 = vsel %vm297, %v273, 0.0
    %995 = vadd.xlane.f32.xlu0 %v994
    %v996 = vpop.xlane.xlu0 %995
    %v997 = vsel %vm297, %v274, 0.0
    %998 = vadd.xlane.f32.xlu0 %v997
    %v999 = vpop.xlane.xlu0 %998
    %v1000 = vsel %vm297, %v275, 0.0
    %1001 = vadd.xlane.f32.xlu0 %v1000
    %v1002 = vpop.xlane.xlu0 %1001
    %v1003 = vsel %vm297, %v276, 0.0
    %1004 = vadd.xlane.f32.xlu0 %v1003
    %v1005 = vpop.xlane.xlu0 %1004
    %v1006 = vsel %vm297, %v277, 0.0
    %1007 = vadd.xlane.f32.xlu0 %v1006
    %v1008 = vpop.xlane.xlu0 %1007
    %v1009 = vsel %vm297, %v278, 0.0
    %1010 = vadd.xlane.f32.xlu0 %v1009
    %v1011 = vpop.xlane.xlu0 %1010
    %v1012 = vsel %vm297, %v279, 0.0
    %1013 = vadd.xlane.f32.xlu0 %v1012
    %v1014 = vpop.xlane.xlu0 %1013
    %v1015 = vsel %vm297, %v280, 0.0
    %1016 = vadd.xlane.f32.xlu0 %v1015
    %v1017 = vpop.xlane.xlu0 %1016
    %v1018 = vsel %vm297, %v281, 0.0
    %1019 = vadd.xlane.f32.xlu0 %v1018
    %v1020 = vpop.xlane.xlu0 %1019
    %v1021 = vsel %vm297, %v282, 0.0
    %1022 = vadd.xlane.f32.xlu0 %v1021
    %v1023 = vpop.xlane.xlu0 %1022
    %v1024 = vsel %vm297, %v283, 0.0
    %1025 = vadd.xlane.f32.xlu0 %v1024
    %v1026 = vpop.xlane.xlu0 %1025
    %v1027 = vsel %vm297, %v284, 0.0
    %1028 = vadd.xlane.f32.xlu0 %v1027
    %v1029 = vpop.xlane.xlu0 %1028
    %v1030 = vsel %vm297, %v285, 0.0
    %1031 = vadd.xlane.f32.xlu0 %v1030
    %v1032 = vpop.xlane.xlu0 %1031
    %v1033 = vsel %vm297, %v286, 0.0
    %1034 = vadd.xlane.f32.xlu0 %v1033
    %v1035 = vpop.xlane.xlu0 %1034
    %v1036 = vsel %vm297, %v287, 0.0
    %1037 = vadd.xlane.f32.xlu0 %v1036
    %v1038 = vpop.xlane.xlu0 %1037
    %v1039 = vsel %vm297, %v288, 0.0
    %1040 = vadd.xlane.f32.xlu0 %v1039
    %v1041 = vpop.xlane.xlu0 %1040
    %v1042 = vsel %vm297, %v289, 0.0
    %1043 = vadd.xlane.f32.xlu0 %v1042
    %v1044 = vpop.xlane.xlu0 %1043
    %v1045 = vsel %vm297, %v290, 0.0
    %1046 = vadd.xlane.f32.xlu0 %v1045
    %v1047 = vpop.xlane.xlu0 %1046
    %v1048 = vsel %vm297, %v291, 0.0
    %1049 = vadd.xlane.f32.xlu0 %v1048
    %v1050 = vpop.xlane.xlu0 %1049
    %v1051 = vsel %vm297, %v292, 0.0
    %1052 = vadd.xlane.f32.xlu0 %v1051
    %v1053 = vpop.xlane.xlu0 %1052
    %v1054 = vsel %vm297, %v293, 0.0
    %1055 = vadd.xlane.f32.xlu0 %v1054
    %v1056 = vpop.xlane.xlu0 %1055
    %v1057 = vsel %vm297, %v294, 0.0
    %1058 = vadd.xlane.f32.xlu0 %v1057
    %v1059 = vpop.xlane.xlu0 %1058
    %v1060 = vsel %vm297, %v295, 0.0
    %1061 = vadd.xlane.f32.xlu0 %v1060
    %v1062 = vpop.xlane.xlu0 %1061
    %v1063 = vsel %vm297, %v296, 0.0
    %1064 = vadd.xlane.f32.xlu0 %v1063
    %v1065 = vpop.xlane.xlu0 %1064
    %v1066 = vpack.c.bf16 %v303, %v300
    %v1067 = vpack.c.bf16 %v309, %v306
    %v1068 = vpack.c.bf16 %v315, %v312
    %v1069 = vpack.c.bf16 %v321, %v318
    %v1070 = vpack.c.bf16 %v327, %v324
    %v1071 = vpack.c.bf16 %v333, %v330
    %v1072 = vpack.c.bf16 %v339, %v336
    %v1073 = vpack.c.bf16 %v345, %v342
    %v1074 = vpack.c.bf16 %v351, %v348
    %v1075 = vpack.c.bf16 %v357, %v354
    %v1076 = vpack.c.bf16 %v363, %v360
    %v1077 = vpack.c.bf16 %v369, %v366
    %v1078 = vpack.c.bf16 %v375, %v372
    %v1079 = vpack.c.bf16 %v381, %v378
    %v1080 = vpack.c.bf16 %v387, %v384
    %v1081 = vpack.c.bf16 %v393, %v390
    %v1082 = vpack.c.bf16 %v399, %v396
    %v1083 = vpack.c.bf16 %v405, %v402
    %v1084 = vpack.c.bf16 %v411, %v408
    %v1085 = vpack.c.bf16 %v417, %v414
    %v1086 = vpack.c.bf16 %v423, %v420
    %v1087 = vpack.c.bf16 %v429, %v426
    %v1088 = vpack.c.bf16 %v435, %v432
    %v1089 = vpack.c.bf16 %v441, %v438
    %v1090 = vpack.c.bf16 %v447, %v444
    %v1091 = vpack.c.bf16 %v453, %v450
    %v1092 = vpack.c.bf16 %v459, %v456
    %v1093 = vpack.c.bf16 %v465, %v462
    %v1094 = vpack.c.bf16 %v471, %v468
    %v1095 = vpack.c.bf16 %v477, %v474
    %v1096 = vpack.c.bf16 %v483, %v480
    %v1097 = vpack.c.bf16 %v489, %v486
    %v1098 = vpack.c.bf16 %v495, %v492
    %v1099 = vpack.c.bf16 %v501, %v498
    %v1100 = vpack.c.bf16 %v507, %v504
    %v1101 = vpack.c.bf16 %v513, %v510
    %v1102 = vpack.c.bf16 %v519, %v516
    %v1103 = vpack.c.bf16 %v525, %v522
    %v1104 = vpack.c.bf16 %v531, %v528
    %v1105 = vpack.c.bf16 %v537, %v534
    %v1106 = vpack.c.bf16 %v543, %v540
    %v1107 = vpack.c.bf16 %v549, %v546
    %v1108 = vpack.c.bf16 %v555, %v552
    %v1109 = vpack.c.bf16 %v561, %v558
    %v1110 = vpack.c.bf16 %v567, %v564
    %v1111 = vpack.c.bf16 %v573, %v570
    %v1112 = vpack.c.bf16 %v579, %v576
    %v1113 = vpack.c.bf16 %v585, %v582
    %v1114 = vpack.c.bf16 %v591, %v588
    %v1115 = vpack.c.bf16 %v597, %v594
    %v1116 = vpack.c.bf16 %v603, %v600
    %v1117 = vpack.c.bf16 %v609, %v606
    %v1118 = vpack.c.bf16 %v615, %v612
    %v1119 = vpack.c.bf16 %v621, %v618
    %v1120 = vpack.c.bf16 %v627, %v624
    %v1121 = vpack.c.bf16 %v633, %v630
    %v1122 = vpack.c.bf16 %v639, %v636
    %v1123 = vpack.c.bf16 %v645, %v642
    %v1124 = vpack.c.bf16 %v651, %v648
    %v1125 = vpack.c.bf16 %v657, %v654
    %v1126 = vpack.c.bf16 %v663, %v660
    %v1127 = vpack.c.bf16 %v669, %v666
    %v1128 = vpack.c.bf16 %v675, %v672
    %v1129 = vpack.c.bf16 %v681, %v678
    %v1130 = vpack.c.bf16 %v687, %v684
    %v1131 = vpack.c.bf16 %v693, %v690
    %v1132 = vpack.c.bf16 %v699, %v696
    %v1133 = vpack.c.bf16 %v705, %v702
    %v1134 = vpack.c.bf16 %v711, %v708
    %v1135 = vpack.c.bf16 %v717, %v714
    %v1136 = vpack.c.bf16 %v723, %v720
    %v1137 = vpack.c.bf16 %v729, %v726
    %v1138 = vpack.c.bf16 %v735, %v732
    %v1139 = vpack.c.bf16 %v741, %v738
    %v1140 = vpack.c.bf16 %v747, %v744
    %v1141 = vpack.c.bf16 %v753, %v750
    %v1142 = vpack.c.bf16 %v759, %v756
    %v1143 = vpack.c.bf16 %v765, %v762
    %v1144 = vpack.c.bf16 %v771, %v768
    %v1145 = vpack.c.bf16 %v777, %v774
    %v1146 = vpack.c.bf16 %v783, %v780
    %v1147 = vpack.c.bf16 %v789, %v786
    %v1148 = vpack.c.bf16 %v795, %v792
    %v1149 = vpack.c.bf16 %v801, %v798
    %v1150 = vpack.c.bf16 %v807, %v804
    %v1151 = vpack.c.bf16 %v813, %v810
    %v1152 = vpack.c.bf16 %v819, %v816
    %v1153 = vpack.c.bf16 %v825, %v822
    %v1154 = vpack.c.bf16 %v831, %v828
    %v1155 = vpack.c.bf16 %v837, %v834
    %v1156 = vpack.c.bf16 %v843, %v840
    %v1157 = vpack.c.bf16 %v849, %v846
    %v1158 = vpack.c.bf16 %v855, %v852
    %v1159 = vpack.c.bf16 %v861, %v858
    %v1160 = vpack.c.bf16 %v867, %v864
    %v1161 = vpack.c.bf16 %v873, %v870
    %v1162 = vpack.c.bf16 %v879, %v876
    %v1163 = vpack.c.bf16 %v885, %v882
    %v1164 = vpack.c.bf16 %v891, %v888
    %v1165 = vpack.c.bf16 %v897, %v894
    %v1166 = vpack.c.bf16 %v903, %v900
    %v1167 = vpack.c.bf16 %v909, %v906
    %v1168 = vpack.c.bf16 %v915, %v912
    %v1169 = vpack.c.bf16 %v921, %v918
    %v1170 = vpack.c.bf16 %v927, %v924
    %v1171 = vpack.c.bf16 %v933, %v930
    %v1172 = vpack.c.bf16 %v939, %v936
    %v1173 = vpack.c.bf16 %v945, %v942
    %v1174 = vpack.c.bf16 %v951, %v948
    %v1175 = vpack.c.bf16 %v957, %v954
    %v1176 = vpack.c.bf16 %v963, %v960
    %v1177 = vpack.c.bf16 %v969, %v966
    %v1178 = vpack.c.bf16 %v975, %v972
    %v1179 = vpack.c.bf16 %v981, %v978
    %v1180 = vpack.c.bf16 %v987, %v984
    %v1181 = vpack.c.bf16 %v993, %v990
    %v1182 = vpack.c.bf16 %v999, %v996
    %v1183 = vpack.c.bf16 %v1005, %v1002
    %v1184 = vpack.c.bf16 %v1011, %v1008
    %v1185 = vpack.c.bf16 %v1017, %v1014
    %v1186 = vpack.c.bf16 %v1023, %v1020
    %v1187 = vpack.c.bf16 %v1029, %v1026
    %v1188 = vpack.c.bf16 %v1035, %v1032
    %v1189 = vpack.c.bf16 %v1041, %v1038
    %v1190 = vpack.c.bf16 %v1047, %v1044
    %v1191 = vpack.c.bf16 %v1053, %v1050
    %v1192 = vpack.c.bf16 %v1059, %v1056
    %v1193 = vpack.c.bf16 %v1065, %v1062
    %v1194 = vld [vmem:[#allocation2] sm:$0xff]
    %v1195 = vld [vmem:[#allocation2 + $0x8] sm:$0xff]
    %v1196 = vld [vmem:[#allocation2 + $0x10] sm:$0xff]
    %v1197 = vld [vmem:[#allocation2 + $0x18] sm:$0xff]
    %v1198 = vld [vmem:[#allocation2 + $0x20] sm:$0xff]
    %v1199 = vld [vmem:[#allocation2 + $0x28] sm:$0xff]
    %v1200 = vld [vmem:[#allocation2 + $0x30] sm:$0xff]
    %v1201 = vld [vmem:[#allocation2 + $0x38] sm:$0xff]
    %v1202 = vld [vmem:[#allocation2 + $0x40] sm:$0xff]
    %v1203 = vld [vmem:[#allocation2 + $0x48] sm:$0xff]
    %v1204 = vld [vmem:[#allocation2 + $0x50] sm:$0xff]
    %v1205 = vld [vmem:[#allocation2 + $0x58] sm:$0xff]
    %v1206 = vld [vmem:[#allocation2 + $0x60] sm:$0xff]
    %v1207 = vld [vmem:[#allocation2 + $0x68] sm:$0xff]
    %v1208 = vld [vmem:[#allocation2 + $0x70] sm:$0xff]
    %v1209 = vld [vmem:[#allocation2 + $0x78] sm:$0xff]
    %v1210 = vld [vmem:[#allocation2 + $0x80] sm:$0xff]
    %v1211 = vld [vmem:[#allocation2 + $0x88] sm:$0xff]
    %v1212 = vld [vmem:[#allocation2 + $0x90] sm:$0xff]
    %v1213 = vld [vmem:[#allocation2 + $0x98] sm:$0xff]
    %v1214 = vld [vmem:[#allocation2 + $0xa0] sm:$0xff]
    %v1215 = vld [vmem:[#allocation2 + $0xa8] sm:$0xff]
    %v1216 = vld [vmem:[#allocation2 + $0xb0] sm:$0xff]
    %v1217 = vld [vmem:[#allocation2 + $0xb8] sm:$0xff]
    %v1218 = vld [vmem:[#allocation2 + $0xc0] sm:$0xff]
    %v1219 = vld [vmem:[#allocation2 + $0xc8] sm:$0xff]
    %v1220 = vld [vmem:[#allocation2 + $0xd0] sm:$0xff]
    %v1221 = vld [vmem:[#allocation2 + $0xd8] sm:$0xff]
    %v1222 = vld [vmem:[#allocation2 + $0xe0] sm:$0xff]
    %v1223 = vld [vmem:[#allocation2 + $0xe8] sm:$0xff]
    %v1224 = vld [vmem:[#allocation2 + $0xf0] sm:$0xff]
    %v1225 = vld [vmem:[#allocation2 + $0xf8] sm:$0xff]
    %v1226 = vld [vmem:[#allocation2 + $0x100] sm:$0xff]
    %v1227 = vld [vmem:[#allocation2 + $0x108] sm:$0xff]
    %v1228 = vld [vmem:[#allocation2 + $0x110] sm:$0xff]
    %v1229 = vld [vmem:[#allocation2 + $0x118] sm:$0xff]
    %v1230 = vld [vmem:[#allocation2 + $0x120] sm:$0xff]
    %v1231 = vld [vmem:[#allocation2 + $0x128] sm:$0xff]
    %v1232 = vld [vmem:[#allocation2 + $0x130] sm:$0xff]
    %v1233 = vld [vmem:[#allocation2 + $0x138] sm:$0xff]
    %v1234 = vld [vmem:[#allocation2 + $0x140] sm:$0xff]
    %v1235 = vld [vmem:[#allocation2 + $0x148] sm:$0xff]
    %v1236 = vld [vmem:[#allocation2 + $0x150] sm:$0xff]
    %v1237 = vld [vmem:[#allocation2 + $0x158] sm:$0xff]
    %v1238 = vld [vmem:[#allocation2 + $0x160] sm:$0xff]
    %v1239 = vld [vmem:[#allocation2 + $0x168] sm:$0xff]
    %v1240 = vld [vmem:[#allocation2 + $0x170] sm:$0xff]
    %v1241 = vld [vmem:[#allocation2 + $0x178] sm:$0xff]
    %v1242 = vld [vmem:[#allocation2 + $0x180] sm:$0xff]
    %v1243 = vld [vmem:[#allocation2 + $0x188] sm:$0xff]
    %v1244 = vld [vmem:[#allocation2 + $0x190] sm:$0xff]
    %v1245 = vld [vmem:[#allocation2 + $0x198] sm:$0xff]
    %v1246 = vld [vmem:[#allocation2 + $0x1a0] sm:$0xff]
    %v1247 = vld [vmem:[#allocation2 + $0x1a8] sm:$0xff]
    %v1248 = vld [vmem:[#allocation2 + $0x1b0] sm:$0xff]
    %v1249 = vld [vmem:[#allocation2 + $0x1b8] sm:$0xff]
    %v1250 = vld [vmem:[#allocation2 + $0x1c0] sm:$0xff]
    %v1251 = vld [vmem:[#allocation2 + $0x1c8] sm:$0xff]
    %v1252 = vld [vmem:[#allocation2 + $0x1d0] sm:$0xff]
    %v1253 = vld [vmem:[#allocation2 + $0x1d8] sm:$0xff]
    %v1254 = vld [vmem:[#allocation2 + $0x1e0] sm:$0xff]
    %v1255 = vld [vmem:[#allocation2 + $0x1e8] sm:$0xff]
    %v1256 = vld [vmem:[#allocation2 + $0x1f0] sm:$0xff]
    %v1257 = vld [vmem:[#allocation2 + $0x1f8] sm:$0xff]
    %v1258 = vld [vmem:[#allocation2 + $0x200] sm:$0xff]
    %v1259 = vld [vmem:[#allocation2 + $0x208] sm:$0xff]
    %v1260 = vld [vmem:[#allocation2 + $0x210] sm:$0xff]
    %v1261 = vld [vmem:[#allocation2 + $0x218] sm:$0xff]
    %v1262 = vld [vmem:[#allocation2 + $0x220] sm:$0xff]
    %v1263 = vld [vmem:[#allocation2 + $0x228] sm:$0xff]
    %v1264 = vld [vmem:[#allocation2 + $0x230] sm:$0xff]
    %v1265 = vld [vmem:[#allocation2 + $0x238] sm:$0xff]
    %v1266 = vld [vmem:[#allocation2 + $0x240] sm:$0xff]
    %v1267 = vld [vmem:[#allocation2 + $0x248] sm:$0xff]
    %v1268 = vld [vmem:[#allocation2 + $0x250] sm:$0xff]
    %v1269 = vld [vmem:[#allocation2 + $0x258] sm:$0xff]
    %v1270 = vld [vmem:[#allocation2 + $0x260] sm:$0xff]
    %v1271 = vld [vmem:[#allocation2 + $0x268] sm:$0xff]
    %v1272 = vld [vmem:[#allocation2 + $0x270] sm:$0xff]
    %v1273 = vld [vmem:[#allocation2 + $0x278] sm:$0xff]
    %v1274 = vld [vmem:[#allocation2 + $0x280] sm:$0xff]
    %v1275 = vld [vmem:[#allocation2 + $0x288] sm:$0xff]
    %v1276 = vld [vmem:[#allocation2 + $0x290] sm:$0xff]
    %v1277 = vld [vmem:[#allocation2 + $0x298] sm:$0xff]
    %v1278 = vld [vmem:[#allocation2 + $0x2a0] sm:$0xff]
    %v1279 = vld [vmem:[#allocation2 + $0x2a8] sm:$0xff]
    %v1280 = vld [vmem:[#allocation2 + $0x2b0] sm:$0xff]
    %v1281 = vld [vmem:[#allocation2 + $0x2b8] sm:$0xff]
    %v1282 = vld [vmem:[#allocation2 + $0x2c0] sm:$0xff]
    %v1283 = vld [vmem:[#allocation2 + $0x2c8] sm:$0xff]
    %v1284 = vld [vmem:[#allocation2 + $0x2d0] sm:$0xff]
    %v1285 = vld [vmem:[#allocation2 + $0x2d8] sm:$0xff]
    %v1286 = vld [vmem:[#allocation2 + $0x2e0] sm:$0xff]
    %v1287 = vld [vmem:[#allocation2 + $0x2e8] sm:$0xff]
    %v1288 = vld [vmem:[#allocation2 + $0x2f0] sm:$0xff]
    %v1289 = vld [vmem:[#allocation2 + $0x2f8] sm:$0xff]
    %v1290 = vld [vmem:[#allocation2 + $0x300] sm:$0xff]
    %v1291 = vld [vmem:[#allocation2 + $0x308] sm:$0xff]
    %v1292 = vld [vmem:[#allocation2 + $0x310] sm:$0xff]
    %v1293 = vld [vmem:[#allocation2 + $0x318] sm:$0xff]
    %v1294 = vld [vmem:[#allocation2 + $0x320] sm:$0xff]
    %v1295 = vld [vmem:[#allocation2 + $0x328] sm:$0xff]
    %v1296 = vld [vmem:[#allocation2 + $0x330] sm:$0xff]
    %v1297 = vld [vmem:[#allocation2 + $0x338] sm:$0xff]
    %v1298 = vld [vmem:[#allocation2 + $0x340] sm:$0xff]
    %v1299 = vld [vmem:[#allocation2 + $0x348] sm:$0xff]
    %v1300 = vld [vmem:[#allocation2 + $0x350] sm:$0xff]
    %v1301 = vld [vmem:[#allocation2 + $0x358] sm:$0xff]
    %v1302 = vld [vmem:[#allocation2 + $0x360] sm:$0xff]
    %v1303 = vld [vmem:[#allocation2 + $0x368] sm:$0xff]
    %v1304 = vld [vmem:[#allocation2 + $0x370] sm:$0xff]
    %v1305 = vld [vmem:[#allocation2 + $0x378] sm:$0xff]
    %v1306 = vld [vmem:[#allocation2 + $0x380] sm:$0xff]
    %v1307 = vld [vmem:[#allocation2 + $0x388] sm:$0xff]
    %v1308 = vld [vmem:[#allocation2 + $0x390] sm:$0xff]
    %v1309 = vld [vmem:[#allocation2 + $0x398] sm:$0xff]
    %v1310 = vld [vmem:[#allocation2 + $0x3a0] sm:$0xff]
    %v1311 = vld [vmem:[#allocation2 + $0x3a8] sm:$0xff]
    %v1312 = vld [vmem:[#allocation2 + $0x3b0] sm:$0xff]
    %v1313 = vld [vmem:[#allocation2 + $0x3b8] sm:$0xff]
    %v1314 = vld [vmem:[#allocation2 + $0x3c0] sm:$0xff]
    %v1315 = vld [vmem:[#allocation2 + $0x3c8] sm:$0xff]
    %v1316 = vld [vmem:[#allocation2 + $0x3d0] sm:$0xff]
    %v1317 = vld [vmem:[#allocation2 + $0x3d8] sm:$0xff]
    %v1318 = vld [vmem:[#allocation2 + $0x3e0] sm:$0xff]
    %v1319 = vld [vmem:[#allocation2 + $0x3e8] sm:$0xff]
    %v1320 = vld [vmem:[#allocation2 + $0x3f0] sm:$0xff]
    %v1321 = vld [vmem:[#allocation2 + $0x3f8] sm:$0xff]
    %v1322 = vld [vmem:[#allocation2 + $0x400] sm:$0xff]
    %v1323 = vld [vmem:[#allocation2 + $0x408] sm:$0xff]
    %v1324 = vld [vmem:[#allocation2 + $0x410] sm:$0xff]
    %v1325 = vld [vmem:[#allocation2 + $0x418] sm:$0xff]
    %v1326 = vld [vmem:[#allocation2 + $0x420] sm:$0xff]
    %v1327 = vld [vmem:[#allocation2 + $0x428] sm:$0xff]
    %v1328 = vld [vmem:[#allocation2 + $0x430] sm:$0xff]
    %v1329 = vld [vmem:[#allocation2 + $0x438] sm:$0xff]
    %v1330 = vld [vmem:[#allocation2 + $0x440] sm:$0xff]
    %v1331 = vld [vmem:[#allocation2 + $0x448] sm:$0xff]
    %v1332 = vld [vmem:[#allocation2 + $0x450] sm:$0xff]
    %v1333 = vld [vmem:[#allocation2 + $0x458] sm:$0xff]
    %v1334 = vld [vmem:[#allocation2 + $0x460] sm:$0xff]
    %v1335 = vld [vmem:[#allocation2 + $0x468] sm:$0xff]
    %v1336 = vld [vmem:[#allocation2 + $0x470] sm:$0xff]
    %v1337 = vld [vmem:[#allocation2 + $0x478] sm:$0xff]
    %v1338 = vld [vmem:[#allocation2 + $0x480] sm:$0xff]
    %v1339 = vld [vmem:[#allocation2 + $0x488] sm:$0xff]
    %v1340 = vld [vmem:[#allocation2 + $0x490] sm:$0xff]
    %v1341 = vld [vmem:[#allocation2 + $0x498] sm:$0xff]
    %v1342 = vld [vmem:[#allocation2 + $0x4a0] sm:$0xff]
    %v1343 = vld [vmem:[#allocation2 + $0x4a8] sm:$0xff]
    %v1344 = vld [vmem:[#allocation2 + $0x4b0] sm:$0xff]
    %v1345 = vld [vmem:[#allocation2 + $0x4b8] sm:$0xff]
    %v1346 = vld [vmem:[#allocation2 + $0x4c0] sm:$0xff]
    %v1347 = vld [vmem:[#allocation2 + $0x4c8] sm:$0xff]
    %v1348 = vld [vmem:[#allocation2 + $0x4d0] sm:$0xff]
    %v1349 = vld [vmem:[#allocation2 + $0x4d8] sm:$0xff]
    %v1350 = vld [vmem:[#allocation2 + $0x4e0] sm:$0xff]
    %v1351 = vld [vmem:[#allocation2 + $0x4e8] sm:$0xff]
    %v1352 = vld [vmem:[#allocation2 + $0x4f0] sm:$0xff]
    %v1353 = vld [vmem:[#allocation2 + $0x4f8] sm:$0xff]
    %v1354 = vld [vmem:[#allocation2 + $0x500] sm:$0xff]
    %v1355 = vld [vmem:[#allocation2 + $0x508] sm:$0xff]
    %v1356 = vld [vmem:[#allocation2 + $0x510] sm:$0xff]
    %v1357 = vld [vmem:[#allocation2 + $0x518] sm:$0xff]
    %v1358 = vld [vmem:[#allocation2 + $0x520] sm:$0xff]
    %v1359 = vld [vmem:[#allocation2 + $0x528] sm:$0xff]
    %v1360 = vld [vmem:[#allocation2 + $0x530] sm:$0xff]
    %v1361 = vld [vmem:[#allocation2 + $0x538] sm:$0xff]
    %v1362 = vld [vmem:[#allocation2 + $0x540] sm:$0xff]
    %v1363 = vld [vmem:[#allocation2 + $0x548] sm:$0xff]
    %v1364 = vld [vmem:[#allocation2 + $0x550] sm:$0xff]
    %v1365 = vld [vmem:[#allocation2 + $0x558] sm:$0xff]
    %v1366 = vld [vmem:[#allocation2 + $0x560] sm:$0xff]
    %v1367 = vld [vmem:[#allocation2 + $0x568] sm:$0xff]
    %v1368 = vld [vmem:[#allocation2 + $0x570] sm:$0xff]
    %v1369 = vld [vmem:[#allocation2 + $0x578] sm:$0xff]
    %v1370 = vld [vmem:[#allocation2 + $0x580] sm:$0xff]
    %v1371 = vld [vmem:[#allocation2 + $0x588] sm:$0xff]
    %v1372 = vld [vmem:[#allocation2 + $0x590] sm:$0xff]
    %v1373 = vld [vmem:[#allocation2 + $0x598] sm:$0xff]
    %v1374 = vld [vmem:[#allocation2 + $0x5a0] sm:$0xff]
    %v1375 = vld [vmem:[#allocation2 + $0x5a8] sm:$0xff]
    %v1376 = vld [vmem:[#allocation2 + $0x5b0] sm:$0xff]
    %v1377 = vld [vmem:[#allocation2 + $0x5b8] sm:$0xff]
    %v1378 = vld [vmem:[#allocation2 + $0x5c0] sm:$0xff]
    %v1379 = vld [vmem:[#allocation2 + $0x5c8] sm:$0xff]
    %v1380 = vld [vmem:[#allocation2 + $0x5d0] sm:$0xff]
    %v1381 = vld [vmem:[#allocation2 + $0x5d8] sm:$0xff]
    %v1382 = vld [vmem:[#allocation2 + $0x5e0] sm:$0xff]
    %v1383 = vld [vmem:[#allocation2 + $0x5e8] sm:$0xff]
    %v1384 = vld [vmem:[#allocation2 + $0x5f0] sm:$0xff]
    %v1385 = vld [vmem:[#allocation2 + $0x5f8] sm:$0xff]
    %v1386 = vld [vmem:[#allocation2 + $0x600] sm:$0xff]
    %v1387 = vld [vmem:[#allocation2 + $0x608] sm:$0xff]
    %v1388 = vld [vmem:[#allocation2 + $0x610] sm:$0xff]
    %v1389 = vld [vmem:[#allocation2 + $0x618] sm:$0xff]
    %v1390 = vld [vmem:[#allocation2 + $0x620] sm:$0xff]
    %v1391 = vld [vmem:[#allocation2 + $0x628] sm:$0xff]
    %v1392 = vld [vmem:[#allocation2 + $0x630] sm:$0xff]
    %v1393 = vld [vmem:[#allocation2 + $0x638] sm:$0xff]
    %v1394 = vld [vmem:[#allocation2 + $0x640] sm:$0xff]
    %v1395 = vld [vmem:[#allocation2 + $0x648] sm:$0xff]
    %v1396 = vld [vmem:[#allocation2 + $0x650] sm:$0xff]
    %v1397 = vld [vmem:[#allocation2 + $0x658] sm:$0xff]
    %v1398 = vld [vmem:[#allocation2 + $0x660] sm:$0xff]
    %v1399 = vld [vmem:[#allocation2 + $0x668] sm:$0xff]
    %v1400 = vld [vmem:[#allocation2 + $0x670] sm:$0xff]
    %v1401 = vld [vmem:[#allocation2 + $0x678] sm:$0xff]
    %v1402 = vld [vmem:[#allocation2 + $0x680] sm:$0xff]
    %v1403 = vld [vmem:[#allocation2 + $0x688] sm:$0xff]
    %v1404 = vld [vmem:[#allocation2 + $0x690] sm:$0xff]
    %v1405 = vld [vmem:[#allocation2 + $0x698] sm:$0xff]
    %v1406 = vld [vmem:[#allocation2 + $0x6a0] sm:$0xff]
    %v1407 = vld [vmem:[#allocation2 + $0x6a8] sm:$0xff]
    %v1408 = vld [vmem:[#allocation2 + $0x6b0] sm:$0xff]
    %v1409 = vld [vmem:[#allocation2 + $0x6b8] sm:$0xff]
    %v1410 = vld [vmem:[#allocation2 + $0x6c0] sm:$0xff]
    %v1411 = vld [vmem:[#allocation2 + $0x6c8] sm:$0xff]
    %v1412 = vld [vmem:[#allocation2 + $0x6d0] sm:$0xff]
    %v1413 = vld [vmem:[#allocation2 + $0x6d8] sm:$0xff]
    %v1414 = vld [vmem:[#allocation2 + $0x6e0] sm:$0xff]
    %v1415 = vld [vmem:[#allocation2 + $0x6e8] sm:$0xff]
    %v1416 = vld [vmem:[#allocation2 + $0x6f0] sm:$0xff]
    %v1417 = vld [vmem:[#allocation2 + $0x6f8] sm:$0xff]
    %v1418 = vld [vmem:[#allocation2 + $0x700] sm:$0xff]
    %v1419 = vld [vmem:[#allocation2 + $0x708] sm:$0xff]
    %v1420 = vld [vmem:[#allocation2 + $0x710] sm:$0xff]
    %v1421 = vld [vmem:[#allocation2 + $0x718] sm:$0xff]
    %v1422 = vld [vmem:[#allocation2 + $0x720] sm:$0xff]
    %v1423 = vld [vmem:[#allocation2 + $0x728] sm:$0xff]
    %v1424 = vld [vmem:[#allocation2 + $0x730] sm:$0xff]
    %v1425 = vld [vmem:[#allocation2 + $0x738] sm:$0xff]
    %v1426 = vld [vmem:[#allocation2 + $0x740] sm:$0xff]
    %v1427 = vld [vmem:[#allocation2 + $0x748] sm:$0xff]
    %v1428 = vld [vmem:[#allocation2 + $0x750] sm:$0xff]
    %v1429 = vld [vmem:[#allocation2 + $0x758] sm:$0xff]
    %v1430 = vld [vmem:[#allocation2 + $0x760] sm:$0xff]
    %v1431 = vld [vmem:[#allocation2 + $0x768] sm:$0xff]
    %v1432 = vld [vmem:[#allocation2 + $0x770] sm:$0xff]
    %v1433 = vld [vmem:[#allocation2 + $0x778] sm:$0xff]
    %v1434 = vld [vmem:[#allocation2 + $0x780] sm:$0xff]
    %v1435 = vld [vmem:[#allocation2 + $0x788] sm:$0xff]
    %v1436 = vld [vmem:[#allocation2 + $0x790] sm:$0xff]
    %v1437 = vld [vmem:[#allocation2 + $0x798] sm:$0xff]
    %v1438 = vld [vmem:[#allocation2 + $0x7a0] sm:$0xff]
    %v1439 = vld [vmem:[#allocation2 + $0x7a8] sm:$0xff]
    %v1440 = vld [vmem:[#allocation2 + $0x7b0] sm:$0xff]
    %v1441 = vld [vmem:[#allocation2 + $0x7b8] sm:$0xff]
    %v1442 = vld [vmem:[#allocation2 + $0x7c0] sm:$0xff]
    %v1443 = vld [vmem:[#allocation2 + $0x7c8] sm:$0xff]
    %v1444 = vld [vmem:[#allocation2 + $0x7d0] sm:$0xff]
    %v1445 = vld [vmem:[#allocation2 + $0x7d8] sm:$0xff]
    %v1446 = vld [vmem:[#allocation2 + $0x7e0] sm:$0xff]
    %v1447 = vld [vmem:[#allocation2 + $0x7e8] sm:$0xff]
    %v1448 = vld [vmem:[#allocation2 + $0x7f0] sm:$0xff]
    %v1449 = vld [vmem:[#allocation2 + $0x7f8] sm:$0xff]
    %v1450 = vld [vmem:[#allocation2 + $0x800] sm:$0xff]
    %v1451 = vld [vmem:[#allocation2 + $0x808] sm:$0xff]
    %v1452 = vld [vmem:[#allocation2 + $0x810] sm:$0xff]
    %v1453 = vld [vmem:[#allocation2 + $0x818] sm:$0xff]
    %v1454 = vld [vmem:[#allocation2 + $0x820] sm:$0xff]
    %v1455 = vld [vmem:[#allocation2 + $0x828] sm:$0xff]
    %v1456 = vld [vmem:[#allocation2 + $0x830] sm:$0xff]
    %v1457 = vld [vmem:[#allocation2 + $0x838] sm:$0xff]
    %v1458 = vld [vmem:[#allocation2 + $0x840] sm:$0xff]
    %v1459 = vld [vmem:[#allocation2 + $0x848] sm:$0xff]
    %v1460 = vld [vmem:[#allocation2 + $0x850] sm:$0xff]
    %v1461 = vld [vmem:[#allocation2 + $0x858] sm:$0xff]
    %v1462 = vld [vmem:[#allocation2 + $0x860] sm:$0xff]
    %v1463 = vld [vmem:[#allocation2 + $0x868] sm:$0xff]
    %v1464 = vld [vmem:[#allocation2 + $0x870] sm:$0xff]
    %v1465 = vld [vmem:[#allocation2 + $0x878] sm:$0xff]
    %v1466 = vld [vmem:[#allocation2 + $0x880] sm:$0xff]
    %v1467 = vld [vmem:[#allocation2 + $0x888] sm:$0xff]
    %v1468 = vld [vmem:[#allocation2 + $0x890] sm:$0xff]
    %v1469 = vld [vmem:[#allocation2 + $0x898] sm:$0xff]
    %v1470 = vld [vmem:[#allocation2 + $0x8a0] sm:$0xff]
    %v1471 = vld [vmem:[#allocation2 + $0x8a8] sm:$0xff]
    %v1472 = vld [vmem:[#allocation2 + $0x8b0] sm:$0xff]
    %v1473 = vld [vmem:[#allocation2 + $0x8b8] sm:$0xff]
    %v1474 = vld [vmem:[#allocation2 + $0x8c0] sm:$0xff]
    %v1475 = vld [vmem:[#allocation2 + $0x8c8] sm:$0xff]
    %v1476 = vld [vmem:[#allocation2 + $0x8d0] sm:$0xff]
    %v1477 = vld [vmem:[#allocation2 + $0x8d8] sm:$0xff]
    %v1478 = vld [vmem:[#allocation2 + $0x8e0] sm:$0xff]
    %v1479 = vld [vmem:[#allocation2 + $0x8e8] sm:$0xff]
    %v1480 = vld [vmem:[#allocation2 + $0x8f0] sm:$0xff]
    %v1481 = vld [vmem:[#allocation2 + $0x8f8] sm:$0xff]
    %v1482 = vld [vmem:[#allocation2 + $0x900] sm:$0xff]
    %v1483 = vld [vmem:[#allocation2 + $0x908] sm:$0xff]
    %v1484 = vld [vmem:[#allocation2 + $0x910] sm:$0xff]
    %v1485 = vld [vmem:[#allocation2 + $0x918] sm:$0xff]
    %v1486 = vld [vmem:[#allocation2 + $0x920] sm:$0xff]
    %v1487 = vld [vmem:[#allocation2 + $0x928] sm:$0xff]
    %v1488 = vld [vmem:[#allocation2 + $0x930] sm:$0xff]
    %v1489 = vld [vmem:[#allocation2 + $0x938] sm:$0xff]
    %v1490 = vld [vmem:[#allocation2 + $0x940] sm:$0xff]
    %v1491 = vld [vmem:[#allocation2 + $0x948] sm:$0xff]
    %v1492 = vld [vmem:[#allocation2 + $0x950] sm:$0xff]
    %v1493 = vld [vmem:[#allocation2 + $0x958] sm:$0xff]
    %v1494 = vld [vmem:[#allocation2 + $0x960] sm:$0xff]
    %v1495 = vld [vmem:[#allocation2 + $0x968] sm:$0xff]
    %v1496 = vld [vmem:[#allocation2 + $0x970] sm:$0xff]
    %v1497 = vld [vmem:[#allocation2 + $0x978] sm:$0xff]
    %v1498 = vld [vmem:[#allocation2 + $0x980] sm:$0xff]
    %v1499 = vld [vmem:[#allocation2 + $0x988] sm:$0xff]
    %v1500 = vld [vmem:[#allocation2 + $0x990] sm:$0xff]
    %v1501 = vld [vmem:[#allocation2 + $0x998] sm:$0xff]
    %v1502 = vld [vmem:[#allocation2 + $0x9a0] sm:$0xff]
    %v1503 = vld [vmem:[#allocation2 + $0x9a8] sm:$0xff]
    %v1504 = vld [vmem:[#allocation2 + $0x9b0] sm:$0xff]
    %v1505 = vld [vmem:[#allocation2 + $0x9b8] sm:$0xff]
    %v1506 = vld [vmem:[#allocation2 + $0x9c0] sm:$0xff]
    %v1507 = vld [vmem:[#allocation2 + $0x9c8] sm:$0xff]
    %v1508 = vld [vmem:[#allocation2 + $0x9d0] sm:$0xff]
    %v1509 = vld [vmem:[#allocation2 + $0x9d8] sm:$0xff]
    %v1510 = vld [vmem:[#allocation2 + $0x9e0] sm:$0xff]
    %v1511 = vld [vmem:[#allocation2 + $0x9e8] sm:$0xff]
    %v1512 = vld [vmem:[#allocation2 + $0x9f0] sm:$0xff]
    %v1513 = vld [vmem:[#allocation2 + $0x9f8] sm:$0xff]
    %v1514 = vld [vmem:[#allocation2 + $0xa00] sm:$0xff]
    %v1515 = vld [vmem:[#allocation2 + $0xa08] sm:$0xff]
    %v1516 = vld [vmem:[#allocation2 + $0xa10] sm:$0xff]
    %v1517 = vld [vmem:[#allocation2 + $0xa18] sm:$0xff]
    %v1518 = vld [vmem:[#allocation2 + $0xa20] sm:$0xff]
    %v1519 = vld [vmem:[#allocation2 + $0xa28] sm:$0xff]
    %v1520 = vld [vmem:[#allocation2 + $0xa30] sm:$0xff]
    %v1521 = vld [vmem:[#allocation2 + $0xa38] sm:$0xff]
    %v1522 = vld [vmem:[#allocation2 + $0xa40] sm:$0xff]
    %v1523 = vld [vmem:[#allocation2 + $0xa48] sm:$0xff]
    %v1524 = vld [vmem:[#allocation2 + $0xa50] sm:$0xff]
    %v1525 = vld [vmem:[#allocation2 + $0xa58] sm:$0xff]
    %v1526 = vld [vmem:[#allocation2 + $0xa60] sm:$0xff]
    %v1527 = vld [vmem:[#allocation2 + $0xa68] sm:$0xff]
    %v1528 = vld [vmem:[#allocation2 + $0xa70] sm:$0xff]
    %v1529 = vld [vmem:[#allocation2 + $0xa78] sm:$0xff]
    %v1530 = vld [vmem:[#allocation2 + $0xa80] sm:$0xff]
    %v1531 = vld [vmem:[#allocation2 + $0xa88] sm:$0xff]
    %v1532 = vld [vmem:[#allocation2 + $0xa90] sm:$0xff]
    %v1533 = vld [vmem:[#allocation2 + $0xa98] sm:$0xff]
    %v1534 = vld [vmem:[#allocation2 + $0xaa0] sm:$0xff]
    %v1535 = vld [vmem:[#allocation2 + $0xaa8] sm:$0xff]
    %v1536 = vld [vmem:[#allocation2 + $0xab0] sm:$0xff]
    %v1537 = vld [vmem:[#allocation2 + $0xab8] sm:$0xff]
    %v1538 = vld [vmem:[#allocation2 + $0xac0] sm:$0xff]
    %v1539 = vld [vmem:[#allocation2 + $0xac8] sm:$0xff]
    %v1540 = vld [vmem:[#allocation2 + $0xad0] sm:$0xff]
    %v1541 = vld [vmem:[#allocation2 + $0xad8] sm:$0xff]
    %v1542 = vld [vmem:[#allocation2 + $0xae0] sm:$0xff]
    %v1543 = vld [vmem:[#allocation2 + $0xae8] sm:$0xff]
    %v1544 = vld [vmem:[#allocation2 + $0xaf0] sm:$0xff]
    %v1545 = vld [vmem:[#allocation2 + $0xaf8] sm:$0xff]
    %v1546 = vld [vmem:[#allocation2 + $0xb00] sm:$0xff]
    %v1547 = vld [vmem:[#allocation2 + $0xb08] sm:$0xff]
    %v1548 = vld [vmem:[#allocation2 + $0xb10] sm:$0xff]
    %v1549 = vld [vmem:[#allocation2 + $0xb18] sm:$0xff]
    %v1550 = vld [vmem:[#allocation2 + $0xb20] sm:$0xff]
    %v1551 = vld [vmem:[#allocation2 + $0xb28] sm:$0xff]
    %v1552 = vld [vmem:[#allocation2 + $0xb30] sm:$0xff]
    %v1553 = vld [vmem:[#allocation2 + $0xb38] sm:$0xff]
    %v1554 = vld [vmem:[#allocation2 + $0xb40] sm:$0xff]
    %v1555 = vld [vmem:[#allocation2 + $0xb48] sm:$0xff]
    %v1556 = vld [vmem:[#allocation2 + $0xb50] sm:$0xff]
    %v1557 = vld [vmem:[#allocation2 + $0xb58] sm:$0xff]
    %v1558 = vld [vmem:[#allocation2 + $0xb60] sm:$0xff]
    %v1559 = vld [vmem:[#allocation2 + $0xb68] sm:$0xff]
    %v1560 = vld [vmem:[#allocation2 + $0xb70] sm:$0xff]
    %v1561 = vld [vmem:[#allocation2 + $0xb78] sm:$0xff]
    %v1562 = vld [vmem:[#allocation2 + $0xb80] sm:$0xff]
    %v1563 = vld [vmem:[#allocation2 + $0xb88] sm:$0xff]
    %v1564 = vld [vmem:[#allocation2 + $0xb90] sm:$0xff]
    %v1565 = vld [vmem:[#allocation2 + $0xb98] sm:$0xff]
    %v1566 = vld [vmem:[#allocation2 + $0xba0] sm:$0xff]
    %v1567 = vld [vmem:[#allocation2 + $0xba8] sm:$0xff]
    %v1568 = vld [vmem:[#allocation2 + $0xbb0] sm:$0xff]
    %v1569 = vld [vmem:[#allocation2 + $0xbb8] sm:$0xff]
    %v1570 = vld [vmem:[#allocation2 + $0xbc0] sm:$0xff]
    %v1571 = vld [vmem:[#allocation2 + $0xbc8] sm:$0xff]
    %v1572 = vld [vmem:[#allocation2 + $0xbd0] sm:$0xff]
    %v1573 = vld [vmem:[#allocation2 + $0xbd8] sm:$0xff]
    %v1574 = vld [vmem:[#allocation2 + $0xbe0] sm:$0xff]
    %v1575 = vld [vmem:[#allocation2 + $0xbe8] sm:$0xff]
    %v1576 = vld [vmem:[#allocation2 + $0xbf0] sm:$0xff]
    %v1577 = vld [vmem:[#allocation2 + $0xbf8] sm:$0xff]
    %v1578 = vld [vmem:[#allocation2 + $0xc00] sm:$0xff]
    %v1579 = vld [vmem:[#allocation2 + $0xc08] sm:$0xff]
    %v1580 = vld [vmem:[#allocation2 + $0xc10] sm:$0xff]
    %v1581 = vld [vmem:[#allocation2 + $0xc18] sm:$0xff]
    %v1582 = vld [vmem:[#allocation2 + $0xc20] sm:$0xff]
    %v1583 = vld [vmem:[#allocation2 + $0xc28] sm:$0xff]
    %v1584 = vld [vmem:[#allocation2 + $0xc30] sm:$0xff]
    %v1585 = vld [vmem:[#allocation2 + $0xc38] sm:$0xff]
    %v1586 = vld [vmem:[#allocation2 + $0xc40] sm:$0xff]
    %v1587 = vld [vmem:[#allocation2 + $0xc48] sm:$0xff]
    %v1588 = vld [vmem:[#allocation2 + $0xc50] sm:$0xff]
    %v1589 = vld [vmem:[#allocation2 + $0xc58] sm:$0xff]
    %v1590 = vld [vmem:[#allocation2 + $0xc60] sm:$0xff]
    %v1591 = vld [vmem:[#allocation2 + $0xc68] sm:$0xff]
    %v1592 = vld [vmem:[#allocation2 + $0xc70] sm:$0xff]
    %v1593 = vld [vmem:[#allocation2 + $0xc78] sm:$0xff]
    %v1594 = vld [vmem:[#allocation2 + $0xc80] sm:$0xff]
    %v1595 = vld [vmem:[#allocation2 + $0xc88] sm:$0xff]
    %v1596 = vld [vmem:[#allocation2 + $0xc90] sm:$0xff]
    %v1597 = vld [vmem:[#allocation2 + $0xc98] sm:$0xff]
    %v1598 = vld [vmem:[#allocation2 + $0xca0] sm:$0xff]
    %v1599 = vld [vmem:[#allocation2 + $0xca8] sm:$0xff]
    %v1600 = vld [vmem:[#allocation2 + $0xcb0] sm:$0xff]
    %v1601 = vld [vmem:[#allocation2 + $0xcb8] sm:$0xff]
    %v1602 = vld [vmem:[#allocation2 + $0xcc0] sm:$0xff]
    %v1603 = vld [vmem:[#allocation2 + $0xcc8] sm:$0xff]
    %v1604 = vld [vmem:[#allocation2 + $0xcd0] sm:$0xff]
    %v1605 = vld [vmem:[#allocation2 + $0xcd8] sm:$0xff]
    %v1606 = vld [vmem:[#allocation2 + $0xce0] sm:$0xff]
    %v1607 = vld [vmem:[#allocation2 + $0xce8] sm:$0xff]
    %v1608 = vld [vmem:[#allocation2 + $0xcf0] sm:$0xff]
    %v1609 = vld [vmem:[#allocation2 + $0xcf8] sm:$0xff]
    %v1610 = vld [vmem:[#allocation2 + $0xd00] sm:$0xff]
    %v1611 = vld [vmem:[#allocation2 + $0xd08] sm:$0xff]
    %v1612 = vld [vmem:[#allocation2 + $0xd10] sm:$0xff]
    %v1613 = vld [vmem:[#allocation2 + $0xd18] sm:$0xff]
    %v1614 = vld [vmem:[#allocation2 + $0xd20] sm:$0xff]
    %v1615 = vld [vmem:[#allocation2 + $0xd28] sm:$0xff]
    %v1616 = vld [vmem:[#allocation2 + $0xd30] sm:$0xff]
    %v1617 = vld [vmem:[#allocation2 + $0xd38] sm:$0xff]
    %v1618 = vld [vmem:[#allocation2 + $0xd40] sm:$0xff]
    %v1619 = vld [vmem:[#allocation2 + $0xd48] sm:$0xff]
    %v1620 = vld [vmem:[#allocation2 + $0xd50] sm:$0xff]
    %v1621 = vld [vmem:[#allocation2 + $0xd58] sm:$0xff]
    %v1622 = vld [vmem:[#allocation2 + $0xd60] sm:$0xff]
    %v1623 = vld [vmem:[#allocation2 + $0xd68] sm:$0xff]
    %v1624 = vld [vmem:[#allocation2 + $0xd70] sm:$0xff]
    %v1625 = vld [vmem:[#allocation2 + $0xd78] sm:$0xff]
    %v1626 = vld [vmem:[#allocation2 + $0xd80] sm:$0xff]
    %v1627 = vld [vmem:[#allocation2 + $0xd88] sm:$0xff]
    %v1628 = vld [vmem:[#allocation2 + $0xd90] sm:$0xff]
    %v1629 = vld [vmem:[#allocation2 + $0xd98] sm:$0xff]
    %v1630 = vld [vmem:[#allocation2 + $0xda0] sm:$0xff]
    %v1631 = vld [vmem:[#allocation2 + $0xda8] sm:$0xff]
    %v1632 = vld [vmem:[#allocation2 + $0xdb0] sm:$0xff]
    %v1633 = vld [vmem:[#allocation2 + $0xdb8] sm:$0xff]
    %v1634 = vld [vmem:[#allocation2 + $0xdc0] sm:$0xff]
    %v1635 = vld [vmem:[#allocation2 + $0xdc8] sm:$0xff]
    %v1636 = vld [vmem:[#allocation2 + $0xdd0] sm:$0xff]
    %v1637 = vld [vmem:[#allocation2 + $0xdd8] sm:$0xff]
    %v1638 = vld [vmem:[#allocation2 + $0xde0] sm:$0xff]
    %v1639 = vld [vmem:[#allocation2 + $0xde8] sm:$0xff]
    %v1640 = vld [vmem:[#allocation2 + $0xdf0] sm:$0xff]
    %v1641 = vld [vmem:[#allocation2 + $0xdf8] sm:$0xff]
    %v1642 = vld [vmem:[#allocation2 + $0xe00] sm:$0xff]
    %v1643 = vld [vmem:[#allocation2 + $0xe08] sm:$0xff]
    %v1644 = vld [vmem:[#allocation2 + $0xe10] sm:$0xff]
    %v1645 = vld [vmem:[#allocation2 + $0xe18] sm:$0xff]
    %v1646 = vld [vmem:[#allocation2 + $0xe20] sm:$0xff]
    %v1647 = vld [vmem:[#allocation2 + $0xe28] sm:$0xff]
    %v1648 = vld [vmem:[#allocation2 + $0xe30] sm:$0xff]
    %v1649 = vld [vmem:[#allocation2 + $0xe38] sm:$0xff]
    %v1650 = vld [vmem:[#allocation2 + $0xe40] sm:$0xff]
    %v1651 = vld [vmem:[#allocation2 + $0xe48] sm:$0xff]
    %v1652 = vld [vmem:[#allocation2 + $0xe50] sm:$0xff]
    %v1653 = vld [vmem:[#allocation2 + $0xe58] sm:$0xff]
    %v1654 = vld [vmem:[#allocation2 + $0xe60] sm:$0xff]
    %v1655 = vld [vmem:[#allocation2 + $0xe68] sm:$0xff]
    %v1656 = vld [vmem:[#allocation2 + $0xe70] sm:$0xff]
    %v1657 = vld [vmem:[#allocation2 + $0xe78] sm:$0xff]
    %v1658 = vld [vmem:[#allocation2 + $0xe80] sm:$0xff]
    %v1659 = vld [vmem:[#allocation2 + $0xe88] sm:$0xff]
    %v1660 = vld [vmem:[#allocation2 + $0xe90] sm:$0xff]
    %v1661 = vld [vmem:[#allocation2 + $0xe98] sm:$0xff]
    %v1662 = vld [vmem:[#allocation2 + $0xea0] sm:$0xff]
    %v1663 = vld [vmem:[#allocation2 + $0xea8] sm:$0xff]
    %v1664 = vld [vmem:[#allocation2 + $0xeb0] sm:$0xff]
    %v1665 = vld [vmem:[#allocation2 + $0xeb8] sm:$0xff]
    %v1666 = vld [vmem:[#allocation2 + $0xec0] sm:$0xff]
    %v1667 = vld [vmem:[#allocation2 + $0xec8] sm:$0xff]
    %v1668 = vld [vmem:[#allocation2 + $0xed0] sm:$0xff]
    %v1669 = vld [vmem:[#allocation2 + $0xed8] sm:$0xff]
    %v1670 = vld [vmem:[#allocation2 + $0xee0] sm:$0xff]
    %v1671 = vld [vmem:[#allocation2 + $0xee8] sm:$0xff]
    %v1672 = vld [vmem:[#allocation2 + $0xef0] sm:$0xff]
    %v1673 = vld [vmem:[#allocation2 + $0xef8] sm:$0xff]
    %v1674 = vld [vmem:[#allocation2 + $0xf00] sm:$0xff]
    %v1675 = vld [vmem:[#allocation2 + $0xf08] sm:$0xff]
    %v1676 = vld [vmem:[#allocation2 + $0xf10] sm:$0xff]
    %v1677 = vld [vmem:[#allocation2 + $0xf18] sm:$0xff]
    %v1678 = vld [vmem:[#allocation2 + $0xf20] sm:$0xff]
    %v1679 = vld [vmem:[#allocation2 + $0xf28] sm:$0xff]
    %v1680 = vld [vmem:[#allocation2 + $0xf30] sm:$0xff]
    %v1681 = vld [vmem:[#allocation2 + $0xf38] sm:$0xff]
    %v1682 = vld [vmem:[#allocation2 + $0xf40] sm:$0xff]
    %v1683 = vld [vmem:[#allocation2 + $0xf48] sm:$0xff]
    %v1684 = vld [vmem:[#allocation2 + $0xf50] sm:$0xff]
    %v1685 = vld [vmem:[#allocation2 + $0xf58] sm:$0xff]
    %v1686 = vld [vmem:[#allocation2 + $0xf60] sm:$0xff]
    %v1687 = vld [vmem:[#allocation2 + $0xf68] sm:$0xff]
    %v1688 = vld [vmem:[#allocation2 + $0xf70] sm:$0xff]
    %v1689 = vld [vmem:[#allocation2 + $0xf78] sm:$0xff]
    %v1690 = vld [vmem:[#allocation2 + $0xf80] sm:$0xff]
    %v1691 = vld [vmem:[#allocation2 + $0xf88] sm:$0xff]
    %v1692 = vld [vmem:[#allocation2 + $0xf90] sm:$0xff]
    %v1693 = vld [vmem:[#allocation2 + $0xf98] sm:$0xff]
    %v1694 = vld [vmem:[#allocation2 + $0xfa0] sm:$0xff]
    %v1695 = vld [vmem:[#allocation2 + $0xfa8] sm:$0xff]
    %v1696 = vld [vmem:[#allocation2 + $0xfb0] sm:$0xff]
    %v1697 = vld [vmem:[#allocation2 + $0xfb8] sm:$0xff]
    %v1698 = vld [vmem:[#allocation2 + $0xfc0] sm:$0xff]
    %v1699 = vld [vmem:[#allocation2 + $0xfc8] sm:$0xff]
    %v1700 = vld [vmem:[#allocation2 + $0xfd0] sm:$0xff]
    %v1701 = vld [vmem:[#allocation2 + $0xfd8] sm:$0xff]
    %v1702 = vld [vmem:[#allocation2 + $0xfe0] sm:$0xff]
    %v1703 = vld [vmem:[#allocation2 + $0xfe8] sm:$0xff]
    %v1704 = vld [vmem:[#allocation2 + $0xff0] sm:$0xff]
    %v1705 = vld [vmem:[#allocation2 + $0xff8] sm:$0xff]
    %v1706 = vld [vmem:[#allocation5] sm:$0xff]
    %v1708 = vlaneseq
    %v1709 = vshrl.u32 %v1708, 7
    %v1710 = vsub.s32 0, %v1709
    %v1711 = vrot.slane %v1706, %v1710
    %v1712 = vlaneseq
    %v1713 = vshrl.u32 %v1712, 7
    %v1714 = vsub.s32 1, %v1713
    %v1715 = vrot.slane %v1706, %v1714
    %v1716 = vlaneseq
    %v1717 = vshrl.u32 %v1716, 7
    %v1718 = vsub.s32 2, %v1717
    %v1719 = vrot.slane %v1706, %v1718
    %v1720 = vlaneseq
    %v1721 = vshrl.u32 %v1720, 7
    %v1722 = vsub.s32 3, %v1721
    %v1723 = vrot.slane %v1706, %v1722
    %v1724 = vlaneseq
    %v1725 = vshrl.u32 %v1724, 7
    %v1726 = vsub.s32 4, %v1725
    %v1727 = vrot.slane %v1706, %v1726
    %v1728 = vlaneseq
    %v1729 = vshrl.u32 %v1728, 7
    %v1730 = vsub.s32 5, %v1729
    %v1731 = vrot.slane %v1706, %v1730
    %v1732 = vlaneseq
    %v1733 = vshrl.u32 %v1732, 7
    %v1734 = vsub.s32 6, %v1733
    %v1735 = vrot.slane %v1706, %v1734
    %v1736 = vlaneseq
    %v1737 = vshrl.u32 %v1736, 7
    %v1738 = vsub.s32 7, %v1737
    %v1739 = vrot.slane %v1706, %v1738
    %v1876 = vunpack.c.l.b16 %v1066
    %v1877 = vunpack.c.h.b16 %v1066
    %v1878 = vunpack.c.l.b16 %v1067
    %v1879 = vunpack.c.h.b16 %v1067
    %v1880 = vunpack.c.l.b16 %v1068
    %v1881 = vunpack.c.h.b16 %v1068
    %v1882 = vunpack.c.l.b16 %v1069
    %v1883 = vunpack.c.h.b16 %v1069
    %v1884 = vunpack.c.l.b16 %v1070
    %v1885 = vunpack.c.h.b16 %v1070
    %v1886 = vunpack.c.l.b16 %v1071
    %v1887 = vunpack.c.h.b16 %v1071
    %v1888 = vunpack.c.l.b16 %v1072
    %v1889 = vunpack.c.h.b16 %v1072
    %v1890 = vunpack.c.l.b16 %v1073
    %v1891 = vunpack.c.h.b16 %v1073
    %v1892 = vunpack.c.l.b16 %v1074
    %v1893 = vunpack.c.h.b16 %v1074
    %v1894 = vunpack.c.l.b16 %v1075
    %v1895 = vunpack.c.h.b16 %v1075
    %v1896 = vunpack.c.l.b16 %v1076
    %v1897 = vunpack.c.h.b16 %v1076
    %v1898 = vunpack.c.l.b16 %v1077
    %v1899 = vunpack.c.h.b16 %v1077
    %v1900 = vunpack.c.l.b16 %v1078
    %v1901 = vunpack.c.h.b16 %v1078
    %v1902 = vunpack.c.l.b16 %v1079
    %v1903 = vunpack.c.h.b16 %v1079
    %v1904 = vunpack.c.l.b16 %v1080
    %v1905 = vunpack.c.h.b16 %v1080
    %v1906 = vunpack.c.l.b16 %v1081
    %v1907 = vunpack.c.h.b16 %v1081
    %v1908 = vunpack.c.l.b16 %v1082
    %v1909 = vunpack.c.h.b16 %v1082
    %v1910 = vunpack.c.l.b16 %v1083
    %v1911 = vunpack.c.h.b16 %v1083
    %v1912 = vunpack.c.l.b16 %v1084
    %v1913 = vunpack.c.h.b16 %v1084
    %v1914 = vunpack.c.l.b16 %v1085
    %v1915 = vunpack.c.h.b16 %v1085
    %v1916 = vunpack.c.l.b16 %v1086
    %v1917 = vunpack.c.h.b16 %v1086
    %v1918 = vunpack.c.l.b16 %v1087
    %v1919 = vunpack.c.h.b16 %v1087
    %v1920 = vunpack.c.l.b16 %v1088
    %v1921 = vunpack.c.h.b16 %v1088
    %v1922 = vunpack.c.l.b16 %v1089
    %v1923 = vunpack.c.h.b16 %v1089
    %v1924 = vunpack.c.l.b16 %v1090
    %v1925 = vunpack.c.h.b16 %v1090
    %v1926 = vunpack.c.l.b16 %v1091
    %v1927 = vunpack.c.h.b16 %v1091
    %v1928 = vunpack.c.l.b16 %v1092
    %v1929 = vunpack.c.h.b16 %v1092
    %v1930 = vunpack.c.l.b16 %v1093
    %v1931 = vunpack.c.h.b16 %v1093
    %v1932 = vunpack.c.l.b16 %v1094
    %v1933 = vunpack.c.h.b16 %v1094
    %v1934 = vunpack.c.l.b16 %v1095
    %v1935 = vunpack.c.h.b16 %v1095
    %v1936 = vunpack.c.l.b16 %v1096
    %v1937 = vunpack.c.h.b16 %v1096
    %v1938 = vunpack.c.l.b16 %v1097
    %v1939 = vunpack.c.h.b16 %v1097
    %v1940 = vunpack.c.l.b16 %v1098
    %v1941 = vunpack.c.h.b16 %v1098
    %v1942 = vunpack.c.l.b16 %v1099
    %v1943 = vunpack.c.h.b16 %v1099
    %v1944 = vunpack.c.l.b16 %v1100
    %v1945 = vunpack.c.h.b16 %v1100
    %v1946 = vunpack.c.l.b16 %v1101
    %v1947 = vunpack.c.h.b16 %v1101
    %v1948 = vunpack.c.l.b16 %v1102
    %v1949 = vunpack.c.h.b16 %v1102
    %v1950 = vunpack.c.l.b16 %v1103
    %v1951 = vunpack.c.h.b16 %v1103
    %v1952 = vunpack.c.l.b16 %v1104
    %v1953 = vunpack.c.h.b16 %v1104
    %v1954 = vunpack.c.l.b16 %v1105
    %v1955 = vunpack.c.h.b16 %v1105
    %v1956 = vunpack.c.l.b16 %v1106
    %v1957 = vunpack.c.h.b16 %v1106
    %v1958 = vunpack.c.l.b16 %v1107
    %v1959 = vunpack.c.h.b16 %v1107
    %v1960 = vunpack.c.l.b16 %v1108
    %v1961 = vunpack.c.h.b16 %v1108
    %v1962 = vunpack.c.l.b16 %v1109
    %v1963 = vunpack.c.h.b16 %v1109
    %v1964 = vunpack.c.l.b16 %v1110
    %v1965 = vunpack.c.h.b16 %v1110
    %v1966 = vunpack.c.l.b16 %v1111
    %v1967 = vunpack.c.h.b16 %v1111
    %v1968 = vunpack.c.l.b16 %v1112
    %v1969 = vunpack.c.h.b16 %v1112
    %v1970 = vunpack.c.l.b16 %v1113
    %v1971 = vunpack.c.h.b16 %v1113
    %v1972 = vunpack.c.l.b16 %v1114
    %v1973 = vunpack.c.h.b16 %v1114
    %v1974 = vunpack.c.l.b16 %v1115
    %v1975 = vunpack.c.h.b16 %v1115
    %v1976 = vunpack.c.l.b16 %v1116
    %v1977 = vunpack.c.h.b16 %v1116
    %v1978 = vunpack.c.l.b16 %v1117
    %v1979 = vunpack.c.h.b16 %v1117
    %v1980 = vunpack.c.l.b16 %v1118
    %v1981 = vunpack.c.h.b16 %v1118
    %v1982 = vunpack.c.l.b16 %v1119
    %v1983 = vunpack.c.h.b16 %v1119
    %v1984 = vunpack.c.l.b16 %v1120
    %v1985 = vunpack.c.h.b16 %v1120
    %v1986 = vunpack.c.l.b16 %v1121
    %v1987 = vunpack.c.h.b16 %v1121
    %v1988 = vunpack.c.l.b16 %v1122
    %v1989 = vunpack.c.h.b16 %v1122
    %v1990 = vunpack.c.l.b16 %v1123
    %v1991 = vunpack.c.h.b16 %v1123
    %v1992 = vunpack.c.l.b16 %v1124
    %v1993 = vunpack.c.h.b16 %v1124
    %v1994 = vunpack.c.l.b16 %v1125
    %v1995 = vunpack.c.h.b16 %v1125
    %v1996 = vunpack.c.l.b16 %v1126
    %v1997 = vunpack.c.h.b16 %v1126
    %v1998 = vunpack.c.l.b16 %v1127
    %v1999 = vunpack.c.h.b16 %v1127
    %v2000 = vunpack.c.l.b16 %v1128
    %v2001 = vunpack.c.h.b16 %v1128
    %v2002 = vunpack.c.l.b16 %v1129
    %v2003 = vunpack.c.h.b16 %v1129
    %v2004 = vunpack.c.l.b16 %v1130
    %v2005 = vunpack.c.h.b16 %v1130
    %v2006 = vunpack.c.l.b16 %v1131
    %v2007 = vunpack.c.h.b16 %v1131
    %v2008 = vunpack.c.l.b16 %v1132
    %v2009 = vunpack.c.h.b16 %v1132
    %v2010 = vunpack.c.l.b16 %v1133
    %v2011 = vunpack.c.h.b16 %v1133
    %v2012 = vunpack.c.l.b16 %v1134
    %v2013 = vunpack.c.h.b16 %v1134
    %v2014 = vunpack.c.l.b16 %v1135
    %v2015 = vunpack.c.h.b16 %v1135
    %v2016 = vunpack.c.l.b16 %v1136
    %v2017 = vunpack.c.h.b16 %v1136
    %v2018 = vunpack.c.l.b16 %v1137
    %v2019 = vunpack.c.h.b16 %v1137
    %v2020 = vunpack.c.l.b16 %v1138
    %v2021 = vunpack.c.h.b16 %v1138
    %v2022 = vunpack.c.l.b16 %v1139
    %v2023 = vunpack.c.h.b16 %v1139
    %v2024 = vunpack.c.l.b16 %v1140
    %v2025 = vunpack.c.h.b16 %v1140
    %v2026 = vunpack.c.l.b16 %v1141
    %v2027 = vunpack.c.h.b16 %v1141
    %v2028 = vunpack.c.l.b16 %v1142
    %v2029 = vunpack.c.h.b16 %v1142
    %v2030 = vunpack.c.l.b16 %v1143
    %v2031 = vunpack.c.h.b16 %v1143
    %v2032 = vunpack.c.l.b16 %v1144
    %v2033 = vunpack.c.h.b16 %v1144
    %v2034 = vunpack.c.l.b16 %v1145
    %v2035 = vunpack.c.h.b16 %v1145
    %v2036 = vunpack.c.l.b16 %v1146
    %v2037 = vunpack.c.h.b16 %v1146
    %v2038 = vunpack.c.l.b16 %v1147
    %v2039 = vunpack.c.h.b16 %v1147
    %v2040 = vunpack.c.l.b16 %v1148
    %v2041 = vunpack.c.h.b16 %v1148
    %v2042 = vunpack.c.l.b16 %v1149
    %v2043 = vunpack.c.h.b16 %v1149
    %v2044 = vunpack.c.l.b16 %v1150
    %v2045 = vunpack.c.h.b16 %v1150
    %v2046 = vunpack.c.l.b16 %v1151
    %v2047 = vunpack.c.h.b16 %v1151
    %v2048 = vunpack.c.l.b16 %v1152
    %v2049 = vunpack.c.h.b16 %v1152
    %v2050 = vunpack.c.l.b16 %v1153
    %v2051 = vunpack.c.h.b16 %v1153
    %v2052 = vunpack.c.l.b16 %v1154
    %v2053 = vunpack.c.h.b16 %v1154
    %v2054 = vunpack.c.l.b16 %v1155
    %v2055 = vunpack.c.h.b16 %v1155
    %v2056 = vunpack.c.l.b16 %v1156
    %v2057 = vunpack.c.h.b16 %v1156
    %v2058 = vunpack.c.l.b16 %v1157
    %v2059 = vunpack.c.h.b16 %v1157
    %v2060 = vunpack.c.l.b16 %v1158
    %v2061 = vunpack.c.h.b16 %v1158
    %v2062 = vunpack.c.l.b16 %v1159
    %v2063 = vunpack.c.h.b16 %v1159
    %v2064 = vunpack.c.l.b16 %v1160
    %v2065 = vunpack.c.h.b16 %v1160
    %v2066 = vunpack.c.l.b16 %v1161
    %v2067 = vunpack.c.h.b16 %v1161
    %v2068 = vunpack.c.l.b16 %v1162
    %v2069 = vunpack.c.h.b16 %v1162
    %v2070 = vunpack.c.l.b16 %v1163
    %v2071 = vunpack.c.h.b16 %v1163
    %v2072 = vunpack.c.l.b16 %v1164
    %v2073 = vunpack.c.h.b16 %v1164
    %v2074 = vunpack.c.l.b16 %v1165
    %v2075 = vunpack.c.h.b16 %v1165
    %v2076 = vunpack.c.l.b16 %v1166
    %v2077 = vunpack.c.h.b16 %v1166
    %v2078 = vunpack.c.l.b16 %v1167
    %v2079 = vunpack.c.h.b16 %v1167
    %v2080 = vunpack.c.l.b16 %v1168
    %v2081 = vunpack.c.h.b16 %v1168
    %v2082 = vunpack.c.l.b16 %v1169
    %v2083 = vunpack.c.h.b16 %v1169
    %v2084 = vunpack.c.l.b16 %v1170
    %v2085 = vunpack.c.h.b16 %v1170
    %v2086 = vunpack.c.l.b16 %v1171
    %v2087 = vunpack.c.h.b16 %v1171
    %v2088 = vunpack.c.l.b16 %v1172
    %v2089 = vunpack.c.h.b16 %v1172
    %v2090 = vunpack.c.l.b16 %v1173
    %v2091 = vunpack.c.h.b16 %v1173
    %v2092 = vunpack.c.l.b16 %v1174
    %v2093 = vunpack.c.h.b16 %v1174
    %v2094 = vunpack.c.l.b16 %v1175
    %v2095 = vunpack.c.h.b16 %v1175
    %v2096 = vunpack.c.l.b16 %v1176
    %v2097 = vunpack.c.h.b16 %v1176
    %v2098 = vunpack.c.l.b16 %v1177
    %v2099 = vunpack.c.h.b16 %v1177
    %v2100 = vunpack.c.l.b16 %v1178
    %v2101 = vunpack.c.h.b16 %v1178
    %v2102 = vunpack.c.l.b16 %v1179
    %v2103 = vunpack.c.h.b16 %v1179
    %v2104 = vunpack.c.l.b16 %v1180
    %v2105 = vunpack.c.h.b16 %v1180
    %v2106 = vunpack.c.l.b16 %v1181
    %v2107 = vunpack.c.h.b16 %v1181
    %v2108 = vunpack.c.l.b16 %v1182
    %v2109 = vunpack.c.h.b16 %v1182
    %v2110 = vunpack.c.l.b16 %v1183
    %v2111 = vunpack.c.h.b16 %v1183
    %v2112 = vunpack.c.l.b16 %v1184
    %v2113 = vunpack.c.h.b16 %v1184
    %v2114 = vunpack.c.l.b16 %v1185
    %v2115 = vunpack.c.h.b16 %v1185
    %v2116 = vunpack.c.l.b16 %v1186
    %v2117 = vunpack.c.h.b16 %v1186
    %v2118 = vunpack.c.l.b16 %v1187
    %v2119 = vunpack.c.h.b16 %v1187
    %v2120 = vunpack.c.l.b16 %v1188
    %v2121 = vunpack.c.h.b16 %v1188
    %v2122 = vunpack.c.l.b16 %v1189
    %v2123 = vunpack.c.h.b16 %v1189
    %v2124 = vunpack.c.l.b16 %v1190
    %v2125 = vunpack.c.h.b16 %v1190
    %v2126 = vunpack.c.l.b16 %v1191
    %v2127 = vunpack.c.h.b16 %v1191
    %v2128 = vunpack.c.l.b16 %v1192
    %v2129 = vunpack.c.h.b16 %v1192
    %v2130 = vunpack.c.l.b16 %v1193
    %v2131 = vunpack.c.h.b16 %v1193
    %v2132 = vlaneseq
    %v2133 = vand.u32 %v2132, 127
    %v2134 = vlaneseq
    %v2135 = vshrl.u32 %v2134, 7
    %v2136 = vsub.s32 %v2133, %v2135
    %v2137 = vrot.slane %v1876, %v2136
    %v2138 = vadd.s32 %v2133, 4294967288
    %v2139 = vlaneseq
    %v2140 = vshrl.u32 %v2139, 7
    %v2141 = vsub.s32 %v2138, %v2140
    %v2142 = vrot.slane %v1877, %v2141
    %vm2143 = vcmask 130112
    %v2144 = vsel %vm2143, %v2142, %v2137
    %v2145 = vadd.s32 %v2133, 4294967280
    %v2146 = vlaneseq
    %v2147 = vshrl.u32 %v2146, 7
    %v2148 = vsub.s32 %v2145, %v2147
    %v2149 = vrot.slane %v1878, %v2148
    %vm2150 = vcmask 195712
    %v2151 = vsel %vm2150, %v2149, %v2144
    %v2152 = vadd.s32 %v2133, 4294967272
    %v2153 = vlaneseq
    %v2154 = vshrl.u32 %v2153, 7
    %v2155 = vsub.s32 %v2152, %v2154
    %v2156 = vrot.slane %v1879, %v2155
    %vm2157 = vcmask 261312
    %v2158 = vsel %vm2157, %v2156, %v2151
    %v2159 = vadd.s32 %v2133, 4294967264
    %v2160 = vlaneseq
    %v2161 = vshrl.u32 %v2160, 7
    %v2162 = vsub.s32 %v2159, %v2161
    %v2163 = vrot.slane %v1880, %v2162
    %vm2164 = vcmask 326912
    %v2165 = vsel %vm2164, %v2163, %v2158
    %v2166 = vadd.s32 %v2133, 4294967256
    %v2167 = vlaneseq
    %v2168 = vshrl.u32 %v2167, 7
    %v2169 = vsub.s32 %v2166, %v2168
    %v2170 = vrot.slane %v1881, %v2169
    %vm2171 = vcmask 392512
    %v2172 = vsel %vm2171, %v2170, %v2165
    %v2173 = vadd.s32 %v2133, 4294967248
    %v2174 = vlaneseq
    %v2175 = vshrl.u32 %v2174, 7
    %v2176 = vsub.s32 %v2173, %v2175
    %v2177 = vrot.slane %v1882, %v2176
    %vm2178 = vcmask 458112
    %v2179 = vsel %vm2178, %v2177, %v2172
    %v2180 = vadd.s32 %v2133, 4294967240
    %v2181 = vlaneseq
    %v2182 = vshrl.u32 %v2181, 7
    %v2183 = vsub.s32 %v2180, %v2182
    %v2184 = vrot.slane %v1883, %v2183
    %vm2185 = vcmask 523712
    %v2186 = vsel %vm2185, %v2184, %v2179
    %v2187 = vadd.s32 %v2133, 4294967232
    %v2188 = vlaneseq
    %v2189 = vshrl.u32 %v2188, 7
    %v2190 = vsub.s32 %v2187, %v2189
    %v2191 = vrot.slane %v1884, %v2190
    %vm2192 = vcmask 589312
    %v2193 = vsel %vm2192, %v2191, %v2186
    %v2194 = vadd.s32 %v2133, 4294967224
    %v2195 = vlaneseq
    %v2196 = vshrl.u32 %v2195, 7
    %v2197 = vsub.s32 %v2194, %v2196
    %v2198 = vrot.slane %v1885, %v2197
    %vm2199 = vcmask 654912
    %v2200 = vsel %vm2199, %v2198, %v2193
    %v2201 = vadd.s32 %v2133, 4294967216
    %v2202 = vlaneseq
    %v2203 = vshrl.u32 %v2202, 7
    %v2204 = vsub.s32 %v2201, %v2203
    %v2205 = vrot.slane %v1886, %v2204
    %vm2206 = vcmask 720512
    %v2207 = vsel %vm2206, %v2205, %v2200
    %v2208 = vadd.s32 %v2133, 4294967208
    %v2209 = vlaneseq
    %v2210 = vshrl.u32 %v2209, 7
    %v2211 = vsub.s32 %v2208, %v2210
    %v2212 = vrot.slane %v1887, %v2211
    %vm2213 = vcmask 786112
    %v2214 = vsel %vm2213, %v2212, %v2207
    %v2215 = vadd.s32 %v2133, 4294967200
    %v2216 = vlaneseq
    %v2217 = vshrl.u32 %v2216, 7
    %v2218 = vsub.s32 %v2215, %v2217
    %v2219 = vrot.slane %v1888, %v2218
    %vm2220 = vcmask 851712
    %v2221 = vsel %vm2220, %v2219, %v2214
    %v2222 = vadd.s32 %v2133, 4294967192
    %v2223 = vlaneseq
    %v2224 = vshrl.u32 %v2223, 7
    %v2225 = vsub.s32 %v2222, %v2224
    %v2226 = vrot.slane %v1889, %v2225
    %vm2227 = vcmask 917312
    %v2228 = vsel %vm2227, %v2226, %v2221
    %v2229 = vadd.s32 %v2133, 4294967184
    %v2230 = vlaneseq
    %v2231 = vshrl.u32 %v2230, 7
    %v2232 = vsub.s32 %v2229, %v2231
    %v2233 = vrot.slane %v1890, %v2232
    %vm2234 = vcmask 982912
    %v2235 = vsel %vm2234, %v2233, %v2228
    %v2236 = vadd.s32 %v2133, 4294967176
    %v2237 = vlaneseq
    %v2238 = vshrl.u32 %v2237, 7
    %v2239 = vsub.s32 %v2236, %v2238
    %v2240 = vrot.slane %v1891, %v2239
    %vm2241 = vcmask 1048512
    %v2242 = vsel %vm2241, %v2240, %v2235
    %v2243 = vlaneseq
    %v2244 = vshrl.u32 %v2243, 7
    %v2245 = vsub.s32 %v2133, %v2244
    %v2246 = vrot.slane %v1892, %v2245
    %v2247 = vlaneseq
    %v2248 = vshrl.u32 %v2247, 7
    %v2249 = vsub.s32 %v2138, %v2248
    %v2250 = vrot.slane %v1893, %v2249
    %v2251 = vsel %vm2143, %v2250, %v2246
    %v2252 = vlaneseq
    %v2253 = vshrl.u32 %v2252, 7
    %v2254 = vsub.s32 %v2145, %v2253
    %v2255 = vrot.slane %v1894, %v2254
    %v2256 = vsel %vm2150, %v2255, %v2251
    %v2257 = vlaneseq
    %v2258 = vshrl.u32 %v2257, 7
    %v2259 = vsub.s32 %v2152, %v2258
    %v2260 = vrot.slane %v1895, %v2259
    %v2261 = vsel %vm2157, %v2260, %v2256
    %v2262 = vlaneseq
    %v2263 = vshrl.u32 %v2262, 7
    %v2264 = vsub.s32 %v2159, %v2263
    %v2265 = vrot.slane %v1896, %v2264
    %v2266 = vsel %vm2164, %v2265, %v2261
    %v2267 = vlaneseq
    %v2268 = vshrl.u32 %v2267, 7
    %v2269 = vsub.s32 %v2166, %v2268
    %v2270 = vrot.slane %v1897, %v2269
    %v2271 = vsel %vm2171, %v2270, %v2266
    %v2272 = vlaneseq
    %v2273 = vshrl.u32 %v2272, 7
    %v2274 = vsub.s32 %v2173, %v2273
    %v2275 = vrot.slane %v1898, %v2274
    %v2276 = vsel %vm2178, %v2275, %v2271
    %v2277 = vlaneseq
    %v2278 = vshrl.u32 %v2277, 7
    %v2279 = vsub.s32 %v2180, %v2278
    %v2280 = vrot.slane %v1899, %v2279
    %v2281 = vsel %vm2185, %v2280, %v2276
    %v2282 = vlaneseq
    %v2283 = vshrl.u32 %v2282, 7
    %v2284 = vsub.s32 %v2187, %v2283
    %v2285 = vrot.slane %v1900, %v2284
    %v2286 = vsel %vm2192, %v2285, %v2281
    %v2287 = vlaneseq
    %v2288 = vshrl.u32 %v2287, 7
    %v2289 = vsub.s32 %v2194, %v2288
    %v2290 = vrot.slane %v1901, %v2289
    %v2291 = vsel %vm2199, %v2290, %v2286
    %v2292 = vlaneseq
    %v2293 = vshrl.u32 %v2292, 7
    %v2294 = vsub.s32 %v2201, %v2293
    %v2295 = vrot.slane %v1902, %v2294
    %v2296 = vsel %vm2206, %v2295, %v2291
    %v2297 = vlaneseq
    %v2298 = vshrl.u32 %v2297, 7
    %v2299 = vsub.s32 %v2208, %v2298
    %v2300 = vrot.slane %v1903, %v2299
    %v2301 = vsel %vm2213, %v2300, %v2296
    %v2302 = vlaneseq
    %v2303 = vshrl.u32 %v2302, 7
    %v2304 = vsub.s32 %v2215, %v2303
    %v2305 = vrot.slane %v1904, %v2304
    %v2306 = vsel %vm2220, %v2305, %v2301
    %v2307 = vlaneseq
    %v2308 = vshrl.u32 %v2307, 7
    %v2309 = vsub.s32 %v2222, %v2308
    %v2310 = vrot.slane %v1905, %v2309
    %v2311 = vsel %vm2227, %v2310, %v2306
    %v2312 = vlaneseq
    %v2313 = vshrl.u32 %v2312, 7
    %v2314 = vsub.s32 %v2229, %v2313
    %v2315 = vrot.slane %v1906, %v2314
    %v2316 = vsel %vm2234, %v2315, %v2311
    %v2317 = vlaneseq
    %v2318 = vshrl.u32 %v2317, 7
    %v2319 = vsub.s32 %v2236, %v2318
    %v2320 = vrot.slane %v1907, %v2319
    %v2321 = vsel %vm2241, %v2320, %v2316
    %v2322 = vlaneseq
    %v2323 = vshrl.u32 %v2322, 7
    %v2324 = vsub.s32 %v2133, %v2323
    %v2325 = vrot.slane %v1908, %v2324
    %v2326 = vlaneseq
    %v2327 = vshrl.u32 %v2326, 7
    %v2328 = vsub.s32 %v2138, %v2327
    %v2329 = vrot.slane %v1909, %v2328
    %v2330 = vsel %vm2143, %v2329, %v2325
    %v2331 = vlaneseq
    %v2332 = vshrl.u32 %v2331, 7
    %v2333 = vsub.s32 %v2145, %v2332
    %v2334 = vrot.slane %v1910, %v2333
    %v2335 = vsel %vm2150, %v2334, %v2330
    %v2336 = vlaneseq
    %v2337 = vshrl.u32 %v2336, 7
    %v2338 = vsub.s32 %v2152, %v2337
    %v2339 = vrot.slane %v1911, %v2338
    %v2340 = vsel %vm2157, %v2339, %v2335
    %v2341 = vlaneseq
    %v2342 = vshrl.u32 %v2341, 7
    %v2343 = vsub.s32 %v2159, %v2342
    %v2344 = vrot.slane %v1912, %v2343
    %v2345 = vsel %vm2164, %v2344, %v2340
    %v2346 = vlaneseq
    %v2347 = vshrl.u32 %v2346, 7
    %v2348 = vsub.s32 %v2166, %v2347
    %v2349 = vrot.slane %v1913, %v2348
    %v2350 = vsel %vm2171, %v2349, %v2345
    %v2351 = vlaneseq
    %v2352 = vshrl.u32 %v2351, 7
    %v2353 = vsub.s32 %v2173, %v2352
    %v2354 = vrot.slane %v1914, %v2353
    %v2355 = vsel %vm2178, %v2354, %v2350
    %v2356 = vlaneseq
    %v2357 = vshrl.u32 %v2356, 7
    %v2358 = vsub.s32 %v2180, %v2357
    %v2359 = vrot.slane %v1915, %v2358
    %v2360 = vsel %vm2185, %v2359, %v2355
    %v2361 = vlaneseq
    %v2362 = vshrl.u32 %v2361, 7
    %v2363 = vsub.s32 %v2187, %v2362
    %v2364 = vrot.slane %v1916, %v2363
    %v2365 = vsel %vm2192, %v2364, %v2360
    %v2366 = vlaneseq
    %v2367 = vshrl.u32 %v2366, 7
    %v2368 = vsub.s32 %v2194, %v2367
    %v2369 = vrot.slane %v1917, %v2368
    %v2370 = vsel %vm2199, %v2369, %v2365
    %v2371 = vlaneseq
    %v2372 = vshrl.u32 %v2371, 7
    %v2373 = vsub.s32 %v2201, %v2372
    %v2374 = vrot.slane %v1918, %v2373
    %v2375 = vsel %vm2206, %v2374, %v2370
    %v2376 = vlaneseq
    %v2377 = vshrl.u32 %v2376, 7
    %v2378 = vsub.s32 %v2208, %v2377
    %v2379 = vrot.slane %v1919, %v2378
    %v2380 = vsel %vm2213, %v2379, %v2375
    %v2381 = vlaneseq
    %v2382 = vshrl.u32 %v2381, 7
    %v2383 = vsub.s32 %v2215, %v2382
    %v2384 = vrot.slane %v1920, %v2383
    %v2385 = vsel %vm2220, %v2384, %v2380
    %v2386 = vlaneseq
    %v2387 = vshrl.u32 %v2386, 7
    %v2388 = vsub.s32 %v2222, %v2387
    %v2389 = vrot.slane %v1921, %v2388
    %v2390 = vsel %vm2227, %v2389, %v2385
    %v2391 = vlaneseq
    %v2392 = vshrl.u32 %v2391, 7
    %v2393 = vsub.s32 %v2229, %v2392
    %v2394 = vrot.slane %v1922, %v2393
    %v2395 = vsel %vm2234, %v2394, %v2390
    %v2396 = vlaneseq
    %v2397 = vshrl.u32 %v2396, 7
    %v2398 = vsub.s32 %v2236, %v2397
    %v2399 = vrot.slane %v1923, %v2398
    %v2400 = vsel %vm2241, %v2399, %v2395
    %v2401 = vlaneseq
    %v2402 = vshrl.u32 %v2401, 7
    %v2403 = vsub.s32 %v2133, %v2402
    %v2404 = vrot.slane %v1924, %v2403
    %v2405 = vlaneseq
    %v2406 = vshrl.u32 %v2405, 7
    %v2407 = vsub.s32 %v2138, %v2406
    %v2408 = vrot.slane %v1925, %v2407
    %v2409 = vsel %vm2143, %v2408, %v2404
    %v2410 = vlaneseq
    %v2411 = vshrl.u32 %v2410, 7
    %v2412 = vsub.s32 %v2145, %v2411
    %v2413 = vrot.slane %v1926, %v2412
    %v2414 = vsel %vm2150, %v2413, %v2409
    %v2415 = vlaneseq
    %v2416 = vshrl.u32 %v2415, 7
    %v2417 = vsub.s32 %v2152, %v2416
    %v2418 = vrot.slane %v1927, %v2417
    %v2419 = vsel %vm2157, %v2418, %v2414
    %v2420 = vlaneseq
    %v2421 = vshrl.u32 %v2420, 7
    %v2422 = vsub.s32 %v2159, %v2421
    %v2423 = vrot.slane %v1928, %v2422
    %v2424 = vsel %vm2164, %v2423, %v2419
    %v2425 = vlaneseq
    %v2426 = vshrl.u32 %v2425, 7
    %v2427 = vsub.s32 %v2166, %v2426
    %v2428 = vrot.slane %v1929, %v2427
    %v2429 = vsel %vm2171, %v2428, %v2424
    %v2430 = vlaneseq
    %v2431 = vshrl.u32 %v2430, 7
    %v2432 = vsub.s32 %v2173, %v2431
    %v2433 = vrot.slane %v1930, %v2432
    %v2434 = vsel %vm2178, %v2433, %v2429
    %v2435 = vlaneseq
    %v2436 = vshrl.u32 %v2435, 7
    %v2437 = vsub.s32 %v2180, %v2436
    %v2438 = vrot.slane %v1931, %v2437
    %v2439 = vsel %vm2185, %v2438, %v2434
    %v2440 = vlaneseq
    %v2441 = vshrl.u32 %v2440, 7
    %v2442 = vsub.s32 %v2187, %v2441
    %v2443 = vrot.slane %v1932, %v2442
    %v2444 = vsel %vm2192, %v2443, %v2439
    %v2445 = vlaneseq
    %v2446 = vshrl.u32 %v2445, 7
    %v2447 = vsub.s32 %v2194, %v2446
    %v2448 = vrot.slane %v1933, %v2447
    %v2449 = vsel %vm2199, %v2448, %v2444
    %v2450 = vlaneseq
    %v2451 = vshrl.u32 %v2450, 7
    %v2452 = vsub.s32 %v2201, %v2451
    %v2453 = vrot.slane %v1934, %v2452
    %v2454 = vsel %vm2206, %v2453, %v2449
    %v2455 = vlaneseq
    %v2456 = vshrl.u32 %v2455, 7
    %v2457 = vsub.s32 %v2208, %v2456
    %v2458 = vrot.slane %v1935, %v2457
    %v2459 = vsel %vm2213, %v2458, %v2454
    %v2460 = vlaneseq
    %v2461 = vshrl.u32 %v2460, 7
    %v2462 = vsub.s32 %v2215, %v2461
    %v2463 = vrot.slane %v1936, %v2462
    %v2464 = vsel %vm2220, %v2463, %v2459
    %v2465 = vlaneseq
    %v2466 = vshrl.u32 %v2465, 7
    %v2467 = vsub.s32 %v2222, %v2466
    %v2468 = vrot.slane %v1937, %v2467
    %v2469 = vsel %vm2227, %v2468, %v2464
    %v2470 = vlaneseq
    %v2471 = vshrl.u32 %v2470, 7
    %v2472 = vsub.s32 %v2229, %v2471
    %v2473 = vrot.slane %v1938, %v2472
    %v2474 = vsel %vm2234, %v2473, %v2469
    %v2475 = vlaneseq
    %v2476 = vshrl.u32 %v2475, 7
    %v2477 = vsub.s32 %v2236, %v2476
    %v2478 = vrot.slane %v1939, %v2477
    %v2479 = vsel %vm2241, %v2478, %v2474
    %v2480 = vlaneseq
    %v2481 = vshrl.u32 %v2480, 7
    %v2482 = vsub.s32 %v2133, %v2481
    %v2483 = vrot.slane %v1940, %v2482
    %v2484 = vlaneseq
    %v2485 = vshrl.u32 %v2484, 7
    %v2486 = vsub.s32 %v2138, %v2485
    %v2487 = vrot.slane %v1941, %v2486
    %v2488 = vsel %vm2143, %v2487, %v2483
    %v2489 = vlaneseq
    %v2490 = vshrl.u32 %v2489, 7
    %v2491 = vsub.s32 %v2145, %v2490
    %v2492 = vrot.slane %v1942, %v2491
    %v2493 = vsel %vm2150, %v2492, %v2488
    %v2494 = vlaneseq
    %v2495 = vshrl.u32 %v2494, 7
    %v2496 = vsub.s32 %v2152, %v2495
    %v2497 = vrot.slane %v1943, %v2496
    %v2498 = vsel %vm2157, %v2497, %v2493
    %v2499 = vlaneseq
    %v2500 = vshrl.u32 %v2499, 7
    %v2501 = vsub.s32 %v2159, %v2500
    %v2502 = vrot.slane %v1944, %v2501
    %v2503 = vsel %vm2164, %v2502, %v2498
    %v2504 = vlaneseq
    %v2505 = vshrl.u32 %v2504, 7
    %v2506 = vsub.s32 %v2166, %v2505
    %v2507 = vrot.slane %v1945, %v2506
    %v2508 = vsel %vm2171, %v2507, %v2503
    %v2509 = vlaneseq
    %v2510 = vshrl.u32 %v2509, 7
    %v2511 = vsub.s32 %v2173, %v2510
    %v2512 = vrot.slane %v1946, %v2511
    %v2513 = vsel %vm2178, %v2512, %v2508
    %v2514 = vlaneseq
    %v2515 = vshrl.u32 %v2514, 7
    %v2516 = vsub.s32 %v2180, %v2515
    %v2517 = vrot.slane %v1947, %v2516
    %v2518 = vsel %vm2185, %v2517, %v2513
    %v2519 = vlaneseq
    %v2520 = vshrl.u32 %v2519, 7
    %v2521 = vsub.s32 %v2187, %v2520
    %v2522 = vrot.slane %v1948, %v2521
    %v2523 = vsel %vm2192, %v2522, %v2518
    %v2524 = vlaneseq
    %v2525 = vshrl.u32 %v2524, 7
    %v2526 = vsub.s32 %v2194, %v2525
    %v2527 = vrot.slane %v1949, %v2526
    %v2528 = vsel %vm2199, %v2527, %v2523
    %v2529 = vlaneseq
    %v2530 = vshrl.u32 %v2529, 7
    %v2531 = vsub.s32 %v2201, %v2530
    %v2532 = vrot.slane %v1950, %v2531
    %v2533 = vsel %vm2206, %v2532, %v2528
    %v2534 = vlaneseq
    %v2535 = vshrl.u32 %v2534, 7
    %v2536 = vsub.s32 %v2208, %v2535
    %v2537 = vrot.slane %v1951, %v2536
    %v2538 = vsel %vm2213, %v2537, %v2533
    %v2539 = vlaneseq
    %v2540 = vshrl.u32 %v2539, 7
    %v2541 = vsub.s32 %v2215, %v2540
    %v2542 = vrot.slane %v1952, %v2541
    %v2543 = vsel %vm2220, %v2542, %v2538
    %v2544 = vlaneseq
    %v2545 = vshrl.u32 %v2544, 7
    %v2546 = vsub.s32 %v2222, %v2545
    %v2547 = vrot.slane %v1953, %v2546
    %v2548 = vsel %vm2227, %v2547, %v2543
    %v2549 = vlaneseq
    %v2550 = vshrl.u32 %v2549, 7
    %v2551 = vsub.s32 %v2229, %v2550
    %v2552 = vrot.slane %v1954, %v2551
    %v2553 = vsel %vm2234, %v2552, %v2548
    %v2554 = vlaneseq
    %v2555 = vshrl.u32 %v2554, 7
    %v2556 = vsub.s32 %v2236, %v2555
    %v2557 = vrot.slane %v1955, %v2556
    %v2558 = vsel %vm2241, %v2557, %v2553
    %v2559 = vlaneseq
    %v2560 = vshrl.u32 %v2559, 7
    %v2561 = vsub.s32 %v2133, %v2560
    %v2562 = vrot.slane %v1956, %v2561
    %v2563 = vlaneseq
    %v2564 = vshrl.u32 %v2563, 7
    %v2565 = vsub.s32 %v2138, %v2564
    %v2566 = vrot.slane %v1957, %v2565
    %v2567 = vsel %vm2143, %v2566, %v2562
    %v2568 = vlaneseq
    %v2569 = vshrl.u32 %v2568, 7
    %v2570 = vsub.s32 %v2145, %v2569
    %v2571 = vrot.slane %v1958, %v2570
    %v2572 = vsel %vm2150, %v2571, %v2567
    %v2573 = vlaneseq
    %v2574 = vshrl.u32 %v2573, 7
    %v2575 = vsub.s32 %v2152, %v2574
    %v2576 = vrot.slane %v1959, %v2575
    %v2577 = vsel %vm2157, %v2576, %v2572
    %v2578 = vlaneseq
    %v2579 = vshrl.u32 %v2578, 7
    %v2580 = vsub.s32 %v2159, %v2579
    %v2581 = vrot.slane %v1960, %v2580
    %v2582 = vsel %vm2164, %v2581, %v2577
    %v2583 = vlaneseq
    %v2584 = vshrl.u32 %v2583, 7
    %v2585 = vsub.s32 %v2166, %v2584
    %v2586 = vrot.slane %v1961, %v2585
    %v2587 = vsel %vm2171, %v2586, %v2582
    %v2588 = vlaneseq
    %v2589 = vshrl.u32 %v2588, 7
    %v2590 = vsub.s32 %v2173, %v2589
    %v2591 = vrot.slane %v1962, %v2590
    %v2592 = vsel %vm2178, %v2591, %v2587
    %v2593 = vlaneseq
    %v2594 = vshrl.u32 %v2593, 7
    %v2595 = vsub.s32 %v2180, %v2594
    %v2596 = vrot.slane %v1963, %v2595
    %v2597 = vsel %vm2185, %v2596, %v2592
    %v2598 = vlaneseq
    %v2599 = vshrl.u32 %v2598, 7
    %v2600 = vsub.s32 %v2187, %v2599
    %v2601 = vrot.slane %v1964, %v2600
    %v2602 = vsel %vm2192, %v2601, %v2597
    %v2603 = vlaneseq
    %v2604 = vshrl.u32 %v2603, 7
    %v2605 = vsub.s32 %v2194, %v2604
    %v2606 = vrot.slane %v1965, %v2605
    %v2607 = vsel %vm2199, %v2606, %v2602
    %v2608 = vlaneseq
    %v2609 = vshrl.u32 %v2608, 7
    %v2610 = vsub.s32 %v2201, %v2609
    %v2611 = vrot.slane %v1966, %v2610
    %v2612 = vsel %vm2206, %v2611, %v2607
    %v2613 = vlaneseq
    %v2614 = vshrl.u32 %v2613, 7
    %v2615 = vsub.s32 %v2208, %v2614
    %v2616 = vrot.slane %v1967, %v2615
    %v2617 = vsel %vm2213, %v2616, %v2612
    %v2618 = vlaneseq
    %v2619 = vshrl.u32 %v2618, 7
    %v2620 = vsub.s32 %v2215, %v2619
    %v2621 = vrot.slane %v1968, %v2620
    %v2622 = vsel %vm2220, %v2621, %v2617
    %v2623 = vlaneseq
    %v2624 = vshrl.u32 %v2623, 7
    %v2625 = vsub.s32 %v2222, %v2624
    %v2626 = vrot.slane %v1969, %v2625
    %v2627 = vsel %vm2227, %v2626, %v2622
    %v2628 = vlaneseq
    %v2629 = vshrl.u32 %v2628, 7
    %v2630 = vsub.s32 %v2229, %v2629
    %v2631 = vrot.slane %v1970, %v2630
    %v2632 = vsel %vm2234, %v2631, %v2627
    %v2633 = vlaneseq
    %v2634 = vshrl.u32 %v2633, 7
    %v2635 = vsub.s32 %v2236, %v2634
    %v2636 = vrot.slane %v1971, %v2635
    %v2637 = vsel %vm2241, %v2636, %v2632
    %v2638 = vlaneseq
    %v2639 = vshrl.u32 %v2638, 7
    %v2640 = vsub.s32 %v2133, %v2639
    %v2641 = vrot.slane %v1972, %v2640
    %v2642 = vlaneseq
    %v2643 = vshrl.u32 %v2642, 7
    %v2644 = vsub.s32 %v2138, %v2643
    %v2645 = vrot.slane %v1973, %v2644
    %v2646 = vsel %vm2143, %v2645, %v2641
    %v2647 = vlaneseq
    %v2648 = vshrl.u32 %v2647, 7
    %v2649 = vsub.s32 %v2145, %v2648
    %v2650 = vrot.slane %v1974, %v2649
    %v2651 = vsel %vm2150, %v2650, %v2646
    %v2652 = vlaneseq
    %v2653 = vshrl.u32 %v2652, 7
    %v2654 = vsub.s32 %v2152, %v2653
    %v2655 = vrot.slane %v1975, %v2654
    %v2656 = vsel %vm2157, %v2655, %v2651
    %v2657 = vlaneseq
    %v2658 = vshrl.u32 %v2657, 7
    %v2659 = vsub.s32 %v2159, %v2658
    %v2660 = vrot.slane %v1976, %v2659
    %v2661 = vsel %vm2164, %v2660, %v2656
    %v2662 = vlaneseq
    %v2663 = vshrl.u32 %v2662, 7
    %v2664 = vsub.s32 %v2166, %v2663
    %v2665 = vrot.slane %v1977, %v2664
    %v2666 = vsel %vm2171, %v2665, %v2661
    %v2667 = vlaneseq
    %v2668 = vshrl.u32 %v2667, 7
    %v2669 = vsub.s32 %v2173, %v2668
    %v2670 = vrot.slane %v1978, %v2669
    %v2671 = vsel %vm2178, %v2670, %v2666
    %v2672 = vlaneseq
    %v2673 = vshrl.u32 %v2672, 7
    %v2674 = vsub.s32 %v2180, %v2673
    %v2675 = vrot.slane %v1979, %v2674
    %v2676 = vsel %vm2185, %v2675, %v2671
    %v2677 = vlaneseq
    %v2678 = vshrl.u32 %v2677, 7
    %v2679 = vsub.s32 %v2187, %v2678
    %v2680 = vrot.slane %v1980, %v2679
    %v2681 = vsel %vm2192, %v2680, %v2676
    %v2682 = vlaneseq
    %v2683 = vshrl.u32 %v2682, 7
    %v2684 = vsub.s32 %v2194, %v2683
    %v2685 = vrot.slane %v1981, %v2684
    %v2686 = vsel %vm2199, %v2685, %v2681
    %v2687 = vlaneseq
    %v2688 = vshrl.u32 %v2687, 7
    %v2689 = vsub.s32 %v2201, %v2688
    %v2690 = vrot.slane %v1982, %v2689
    %v2691 = vsel %vm2206, %v2690, %v2686
    %v2692 = vlaneseq
    %v2693 = vshrl.u32 %v2692, 7
    %v2694 = vsub.s32 %v2208, %v2693
    %v2695 = vrot.slane %v1983, %v2694
    %v2696 = vsel %vm2213, %v2695, %v2691
    %v2697 = vlaneseq
    %v2698 = vshrl.u32 %v2697, 7
    %v2699 = vsub.s32 %v2215, %v2698
    %v2700 = vrot.slane %v1984, %v2699
    %v2701 = vsel %vm2220, %v2700, %v2696
    %v2702 = vlaneseq
    %v2703 = vshrl.u32 %v2702, 7
    %v2704 = vsub.s32 %v2222, %v2703
    %v2705 = vrot.slane %v1985, %v2704
    %v2706 = vsel %vm2227, %v2705, %v2701
    %v2707 = vlaneseq
    %v2708 = vshrl.u32 %v2707, 7
    %v2709 = vsub.s32 %v2229, %v2708
    %v2710 = vrot.slane %v1986, %v2709
    %v2711 = vsel %vm2234, %v2710, %v2706
    %v2712 = vlaneseq
    %v2713 = vshrl.u32 %v2712, 7
    %v2714 = vsub.s32 %v2236, %v2713
    %v2715 = vrot.slane %v1987, %v2714
    %v2716 = vsel %vm2241, %v2715, %v2711
    %v2717 = vlaneseq
    %v2718 = vshrl.u32 %v2717, 7
    %v2719 = vsub.s32 %v2133, %v2718
    %v2720 = vrot.slane %v1988, %v2719
    %v2721 = vlaneseq
    %v2722 = vshrl.u32 %v2721, 7
    %v2723 = vsub.s32 %v2138, %v2722
    %v2724 = vrot.slane %v1989, %v2723
    %v2725 = vsel %vm2143, %v2724, %v2720
    %v2726 = vlaneseq
    %v2727 = vshrl.u32 %v2726, 7
    %v2728 = vsub.s32 %v2145, %v2727
    %v2729 = vrot.slane %v1990, %v2728
    %v2730 = vsel %vm2150, %v2729, %v2725
    %v2731 = vlaneseq
    %v2732 = vshrl.u32 %v2731, 7
    %v2733 = vsub.s32 %v2152, %v2732
    %v2734 = vrot.slane %v1991, %v2733
    %v2735 = vsel %vm2157, %v2734, %v2730
    %v2736 = vlaneseq
    %v2737 = vshrl.u32 %v2736, 7
    %v2738 = vsub.s32 %v2159, %v2737
    %v2739 = vrot.slane %v1992, %v2738
    %v2740 = vsel %vm2164, %v2739, %v2735
    %v2741 = vlaneseq
    %v2742 = vshrl.u32 %v2741, 7
    %v2743 = vsub.s32 %v2166, %v2742
    %v2744 = vrot.slane %v1993, %v2743
    %v2745 = vsel %vm2171, %v2744, %v2740
    %v2746 = vlaneseq
    %v2747 = vshrl.u32 %v2746, 7
    %v2748 = vsub.s32 %v2173, %v2747
    %v2749 = vrot.slane %v1994, %v2748
    %v2750 = vsel %vm2178, %v2749, %v2745
    %v2751 = vlaneseq
    %v2752 = vshrl.u32 %v2751, 7
    %v2753 = vsub.s32 %v2180, %v2752
    %v2754 = vrot.slane %v1995, %v2753
    %v2755 = vsel %vm2185, %v2754, %v2750
    %v2756 = vlaneseq
    %v2757 = vshrl.u32 %v2756, 7
    %v2758 = vsub.s32 %v2187, %v2757
    %v2759 = vrot.slane %v1996, %v2758
    %v2760 = vsel %vm2192, %v2759, %v2755
    %v2761 = vlaneseq
    %v2762 = vshrl.u32 %v2761, 7
    %v2763 = vsub.s32 %v2194, %v2762
    %v2764 = vrot.slane %v1997, %v2763
    %v2765 = vsel %vm2199, %v2764, %v2760
    %v2766 = vlaneseq
    %v2767 = vshrl.u32 %v2766, 7
    %v2768 = vsub.s32 %v2201, %v2767
    %v2769 = vrot.slane %v1998, %v2768
    %v2770 = vsel %vm2206, %v2769, %v2765
    %v2771 = vlaneseq
    %v2772 = vshrl.u32 %v2771, 7
    %v2773 = vsub.s32 %v2208, %v2772
    %v2774 = vrot.slane %v1999, %v2773
    %v2775 = vsel %vm2213, %v2774, %v2770
    %v2776 = vlaneseq
    %v2777 = vshrl.u32 %v2776, 7
    %v2778 = vsub.s32 %v2215, %v2777
    %v2779 = vrot.slane %v2000, %v2778
    %v2780 = vsel %vm2220, %v2779, %v2775
    %v2781 = vlaneseq
    %v2782 = vshrl.u32 %v2781, 7
    %v2783 = vsub.s32 %v2222, %v2782
    %v2784 = vrot.slane %v2001, %v2783
    %v2785 = vsel %vm2227, %v2784, %v2780
    %v2786 = vlaneseq
    %v2787 = vshrl.u32 %v2786, 7
    %v2788 = vsub.s32 %v2229, %v2787
    %v2789 = vrot.slane %v2002, %v2788
    %v2790 = vsel %vm2234, %v2789, %v2785
    %v2791 = vlaneseq
    %v2792 = vshrl.u32 %v2791, 7
    %v2793 = vsub.s32 %v2236, %v2792
    %v2794 = vrot.slane %v2003, %v2793
    %v2795 = vsel %vm2241, %v2794, %v2790
    %v2796 = vlaneseq
    %v2797 = vshrl.u32 %v2796, 7
    %v2798 = vsub.s32 %v2133, %v2797
    %v2799 = vrot.slane %v2004, %v2798
    %v2800 = vlaneseq
    %v2801 = vshrl.u32 %v2800, 7
    %v2802 = vsub.s32 %v2138, %v2801
    %v2803 = vrot.slane %v2005, %v2802
    %v2804 = vsel %vm2143, %v2803, %v2799
    %v2805 = vlaneseq
    %v2806 = vshrl.u32 %v2805, 7
    %v2807 = vsub.s32 %v2145, %v2806
    %v2808 = vrot.slane %v2006, %v2807
    %v2809 = vsel %vm2150, %v2808, %v2804
    %v2810 = vlaneseq
    %v2811 = vshrl.u32 %v2810, 7
    %v2812 = vsub.s32 %v2152, %v2811
    %v2813 = vrot.slane %v2007, %v2812
    %v2814 = vsel %vm2157, %v2813, %v2809
    %v2815 = vlaneseq
    %v2816 = vshrl.u32 %v2815, 7
    %v2817 = vsub.s32 %v2159, %v2816
    %v2818 = vrot.slane %v2008, %v2817
    %v2819 = vsel %vm2164, %v2818, %v2814
    %v2820 = vlaneseq
    %v2821 = vshrl.u32 %v2820, 7
    %v2822 = vsub.s32 %v2166, %v2821
    %v2823 = vrot.slane %v2009, %v2822
    %v2824 = vsel %vm2171, %v2823, %v2819
    %v2825 = vlaneseq
    %v2826 = vshrl.u32 %v2825, 7
    %v2827 = vsub.s32 %v2173, %v2826
    %v2828 = vrot.slane %v2010, %v2827
    %v2829 = vsel %vm2178, %v2828, %v2824
    %v2830 = vlaneseq
    %v2831 = vshrl.u32 %v2830, 7
    %v2832 = vsub.s32 %v2180, %v2831
    %v2833 = vrot.slane %v2011, %v2832
    %v2834 = vsel %vm2185, %v2833, %v2829
    %v2835 = vlaneseq
    %v2836 = vshrl.u32 %v2835, 7
    %v2837 = vsub.s32 %v2187, %v2836
    %v2838 = vrot.slane %v2012, %v2837
    %v2839 = vsel %vm2192, %v2838, %v2834
    %v2840 = vlaneseq
    %v2841 = vshrl.u32 %v2840, 7
    %v2842 = vsub.s32 %v2194, %v2841
    %v2843 = vrot.slane %v2013, %v2842
    %v2844 = vsel %vm2199, %v2843, %v2839
    %v2845 = vlaneseq
    %v2846 = vshrl.u32 %v2845, 7
    %v2847 = vsub.s32 %v2201, %v2846
    %v2848 = vrot.slane %v2014, %v2847
    %v2849 = vsel %vm2206, %v2848, %v2844
    %v2850 = vlaneseq
    %v2851 = vshrl.u32 %v2850, 7
    %v2852 = vsub.s32 %v2208, %v2851
    %v2853 = vrot.slane %v2015, %v2852
    %v2854 = vsel %vm2213, %v2853, %v2849
    %v2855 = vlaneseq
    %v2856 = vshrl.u32 %v2855, 7
    %v2857 = vsub.s32 %v2215, %v2856
    %v2858 = vrot.slane %v2016, %v2857
    %v2859 = vsel %vm2220, %v2858, %v2854
    %v2860 = vlaneseq
    %v2861 = vshrl.u32 %v2860, 7
    %v2862 = vsub.s32 %v2222, %v2861
    %v2863 = vrot.slane %v2017, %v2862
    %v2864 = vsel %vm2227, %v2863, %v2859
    %v2865 = vlaneseq
    %v2866 = vshrl.u32 %v2865, 7
    %v2867 = vsub.s32 %v2229, %v2866
    %v2868 = vrot.slane %v2018, %v2867
    %v2869 = vsel %vm2234, %v2868, %v2864
    %v2870 = vlaneseq
    %v2871 = vshrl.u32 %v2870, 7
    %v2872 = vsub.s32 %v2236, %v2871
    %v2873 = vrot.slane %v2019, %v2872
    %v2874 = vsel %vm2241, %v2873, %v2869
    %v2875 = vlaneseq
    %v2876 = vshrl.u32 %v2875, 7
    %v2877 = vsub.s32 %v2133, %v2876
    %v2878 = vrot.slane %v2020, %v2877
    %v2879 = vlaneseq
    %v2880 = vshrl.u32 %v2879, 7
    %v2881 = vsub.s32 %v2138, %v2880
    %v2882 = vrot.slane %v2021, %v2881
    %v2883 = vsel %vm2143, %v2882, %v2878
    %v2884 = vlaneseq
    %v2885 = vshrl.u32 %v2884, 7
    %v2886 = vsub.s32 %v2145, %v2885
    %v2887 = vrot.slane %v2022, %v2886
    %v2888 = vsel %vm2150, %v2887, %v2883
    %v2889 = vlaneseq
    %v2890 = vshrl.u32 %v2889, 7
    %v2891 = vsub.s32 %v2152, %v2890
    %v2892 = vrot.slane %v2023, %v2891
    %v2893 = vsel %vm2157, %v2892, %v2888
    %v2894 = vlaneseq
    %v2895 = vshrl.u32 %v2894, 7
    %v2896 = vsub.s32 %v2159, %v2895
    %v2897 = vrot.slane %v2024, %v2896
    %v2898 = vsel %vm2164, %v2897, %v2893
    %v2899 = vlaneseq
    %v2900 = vshrl.u32 %v2899, 7
    %v2901 = vsub.s32 %v2166, %v2900
    %v2902 = vrot.slane %v2025, %v2901
    %v2903 = vsel %vm2171, %v2902, %v2898
    %v2904 = vlaneseq
    %v2905 = vshrl.u32 %v2904, 7
    %v2906 = vsub.s32 %v2173, %v2905
    %v2907 = vrot.slane %v2026, %v2906
    %v2908 = vsel %vm2178, %v2907, %v2903
    %v2909 = vlaneseq
    %v2910 = vshrl.u32 %v2909, 7
    %v2911 = vsub.s32 %v2180, %v2910
    %v2912 = vrot.slane %v2027, %v2911
    %v2913 = vsel %vm2185, %v2912, %v2908
    %v2914 = vlaneseq
    %v2915 = vshrl.u32 %v2914, 7
    %v2916 = vsub.s32 %v2187, %v2915
    %v2917 = vrot.slane %v2028, %v2916
    %v2918 = vsel %vm2192, %v2917, %v2913
    %v2919 = vlaneseq
    %v2920 = vshrl.u32 %v2919, 7
    %v2921 = vsub.s32 %v2194, %v2920
    %v2922 = vrot.slane %v2029, %v2921
    %v2923 = vsel %vm2199, %v2922, %v2918
    %v2924 = vlaneseq
    %v2925 = vshrl.u32 %v2924, 7
    %v2926 = vsub.s32 %v2201, %v2925
    %v2927 = vrot.slane %v2030, %v2926
    %v2928 = vsel %vm2206, %v2927, %v2923
    %v2929 = vlaneseq
    %v2930 = vshrl.u32 %v2929, 7
    %v2931 = vsub.s32 %v2208, %v2930
    %v2932 = vrot.slane %v2031, %v2931
    %v2933 = vsel %vm2213, %v2932, %v2928
    %v2934 = vlaneseq
    %v2935 = vshrl.u32 %v2934, 7
    %v2936 = vsub.s32 %v2215, %v2935
    %v2937 = vrot.slane %v2032, %v2936
    %v2938 = vsel %vm2220, %v2937, %v2933
    %v2939 = vlaneseq
    %v2940 = vshrl.u32 %v2939, 7
    %v2941 = vsub.s32 %v2222, %v2940
    %v2942 = vrot.slane %v2033, %v2941
    %v2943 = vsel %vm2227, %v2942, %v2938
    %v2944 = vlaneseq
    %v2945 = vshrl.u32 %v2944, 7
    %v2946 = vsub.s32 %v2229, %v2945
    %v2947 = vrot.slane %v2034, %v2946
    %v2948 = vsel %vm2234, %v2947, %v2943
    %v2949 = vlaneseq
    %v2950 = vshrl.u32 %v2949, 7
    %v2951 = vsub.s32 %v2236, %v2950
    %v2952 = vrot.slane %v2035, %v2951
    %v2953 = vsel %vm2241, %v2952, %v2948
    %v2954 = vlaneseq
    %v2955 = vshrl.u32 %v2954, 7
    %v2956 = vsub.s32 %v2133, %v2955
    %v2957 = vrot.slane %v2036, %v2956
    %v2958 = vlaneseq
    %v2959 = vshrl.u32 %v2958, 7
    %v2960 = vsub.s32 %v2138, %v2959
    %v2961 = vrot.slane %v2037, %v2960
    %v2962 = vsel %vm2143, %v2961, %v2957
    %v2963 = vlaneseq
    %v2964 = vshrl.u32 %v2963, 7
    %v2965 = vsub.s32 %v2145, %v2964
    %v2966 = vrot.slane %v2038, %v2965
    %v2967 = vsel %vm2150, %v2966, %v2962
    %v2968 = vlaneseq
    %v2969 = vshrl.u32 %v2968, 7
    %v2970 = vsub.s32 %v2152, %v2969
    %v2971 = vrot.slane %v2039, %v2970
    %v2972 = vsel %vm2157, %v2971, %v2967
    %v2973 = vlaneseq
    %v2974 = vshrl.u32 %v2973, 7
    %v2975 = vsub.s32 %v2159, %v2974
    %v2976 = vrot.slane %v2040, %v2975
    %v2977 = vsel %vm2164, %v2976, %v2972
    %v2978 = vlaneseq
    %v2979 = vshrl.u32 %v2978, 7
    %v2980 = vsub.s32 %v2166, %v2979
    %v2981 = vrot.slane %v2041, %v2980
    %v2982 = vsel %vm2171, %v2981, %v2977
    %v2983 = vlaneseq
    %v2984 = vshrl.u32 %v2983, 7
    %v2985 = vsub.s32 %v2173, %v2984
    %v2986 = vrot.slane %v2042, %v2985
    %v2987 = vsel %vm2178, %v2986, %v2982
    %v2988 = vlaneseq
    %v2989 = vshrl.u32 %v2988, 7
    %v2990 = vsub.s32 %v2180, %v2989
    %v2991 = vrot.slane %v2043, %v2990
    %v2992 = vsel %vm2185, %v2991, %v2987
    %v2993 = vlaneseq
    %v2994 = vshrl.u32 %v2993, 7
    %v2995 = vsub.s32 %v2187, %v2994
    %v2996 = vrot.slane %v2044, %v2995
    %v2997 = vsel %vm2192, %v2996, %v2992
    %v2998 = vlaneseq
    %v2999 = vshrl.u32 %v2998, 7
    %v3000 = vsub.s32 %v2194, %v2999
    %v3001 = vrot.slane %v2045, %v3000
    %v3002 = vsel %vm2199, %v3001, %v2997
    %v3003 = vlaneseq
    %v3004 = vshrl.u32 %v3003, 7
    %v3005 = vsub.s32 %v2201, %v3004
    %v3006 = vrot.slane %v2046, %v3005
    %v3007 = vsel %vm2206, %v3006, %v3002
    %v3008 = vlaneseq
    %v3009 = vshrl.u32 %v3008, 7
    %v3010 = vsub.s32 %v2208, %v3009
    %v3011 = vrot.slane %v2047, %v3010
    %v3012 = vsel %vm2213, %v3011, %v3007
    %v3013 = vlaneseq
    %v3014 = vshrl.u32 %v3013, 7
    %v3015 = vsub.s32 %v2215, %v3014
    %v3016 = vrot.slane %v2048, %v3015
    %v3017 = vsel %vm2220, %v3016, %v3012
    %v3018 = vlaneseq
    %v3019 = vshrl.u32 %v3018, 7
    %v3020 = vsub.s32 %v2222, %v3019
    %v3021 = vrot.slane %v2049, %v3020
    %v3022 = vsel %vm2227, %v3021, %v3017
    %v3023 = vlaneseq
    %v3024 = vshrl.u32 %v3023, 7
    %v3025 = vsub.s32 %v2229, %v3024
    %v3026 = vrot.slane %v2050, %v3025
    %v3027 = vsel %vm2234, %v3026, %v3022
    %v3028 = vlaneseq
    %v3029 = vshrl.u32 %v3028, 7
    %v3030 = vsub.s32 %v2236, %v3029
    %v3031 = vrot.slane %v2051, %v3030
    %v3032 = vsel %vm2241, %v3031, %v3027
    %v3033 = vlaneseq
    %v3034 = vshrl.u32 %v3033, 7
    %v3035 = vsub.s32 %v2133, %v3034
    %v3036 = vrot.slane %v2052, %v3035
    %v3037 = vlaneseq
    %v3038 = vshrl.u32 %v3037, 7
    %v3039 = vsub.s32 %v2138, %v3038
    %v3040 = vrot.slane %v2053, %v3039
    %v3041 = vsel %vm2143, %v3040, %v3036
    %v3042 = vlaneseq
    %v3043 = vshrl.u32 %v3042, 7
    %v3044 = vsub.s32 %v2145, %v3043
    %v3045 = vrot.slane %v2054, %v3044
    %v3046 = vsel %vm2150, %v3045, %v3041
    %v3047 = vlaneseq
    %v3048 = vshrl.u32 %v3047, 7
    %v3049 = vsub.s32 %v2152, %v3048
    %v3050 = vrot.slane %v2055, %v3049
    %v3051 = vsel %vm2157, %v3050, %v3046
    %v3052 = vlaneseq
    %v3053 = vshrl.u32 %v3052, 7
    %v3054 = vsub.s32 %v2159, %v3053
    %v3055 = vrot.slane %v2056, %v3054
    %v3056 = vsel %vm2164, %v3055, %v3051
    %v3057 = vlaneseq
    %v3058 = vshrl.u32 %v3057, 7
    %v3059 = vsub.s32 %v2166, %v3058
    %v3060 = vrot.slane %v2057, %v3059
    %v3061 = vsel %vm2171, %v3060, %v3056
    %v3062 = vlaneseq
    %v3063 = vshrl.u32 %v3062, 7
    %v3064 = vsub.s32 %v2173, %v3063
    %v3065 = vrot.slane %v2058, %v3064
    %v3066 = vsel %vm2178, %v3065, %v3061
    %v3067 = vlaneseq
    %v3068 = vshrl.u32 %v3067, 7
    %v3069 = vsub.s32 %v2180, %v3068
    %v3070 = vrot.slane %v2059, %v3069
    %v3071 = vsel %vm2185, %v3070, %v3066
    %v3072 = vlaneseq
    %v3073 = vshrl.u32 %v3072, 7
    %v3074 = vsub.s32 %v2187, %v3073
    %v3075 = vrot.slane %v2060, %v3074
    %v3076 = vsel %vm2192, %v3075, %v3071
    %v3077 = vlaneseq
    %v3078 = vshrl.u32 %v3077, 7
    %v3079 = vsub.s32 %v2194, %v3078
    %v3080 = vrot.slane %v2061, %v3079
    %v3081 = vsel %vm2199, %v3080, %v3076
    %v3082 = vlaneseq
    %v3083 = vshrl.u32 %v3082, 7
    %v3084 = vsub.s32 %v2201, %v3083
    %v3085 = vrot.slane %v2062, %v3084
    %v3086 = vsel %vm2206, %v3085, %v3081
    %v3087 = vlaneseq
    %v3088 = vshrl.u32 %v3087, 7
    %v3089 = vsub.s32 %v2208, %v3088
    %v3090 = vrot.slane %v2063, %v3089
    %v3091 = vsel %vm2213, %v3090, %v3086
    %v3092 = vlaneseq
    %v3093 = vshrl.u32 %v3092, 7
    %v3094 = vsub.s32 %v2215, %v3093
    %v3095 = vrot.slane %v2064, %v3094
    %v3096 = vsel %vm2220, %v3095, %v3091
    %v3097 = vlaneseq
    %v3098 = vshrl.u32 %v3097, 7
    %v3099 = vsub.s32 %v2222, %v3098
    %v3100 = vrot.slane %v2065, %v3099
    %v3101 = vsel %vm2227, %v3100, %v3096
    %v3102 = vlaneseq
    %v3103 = vshrl.u32 %v3102, 7
    %v3104 = vsub.s32 %v2229, %v3103
    %v3105 = vrot.slane %v2066, %v3104
    %v3106 = vsel %vm2234, %v3105, %v3101
    %v3107 = vlaneseq
    %v3108 = vshrl.u32 %v3107, 7
    %v3109 = vsub.s32 %v2236, %v3108
    %v3110 = vrot.slane %v2067, %v3109
    %v3111 = vsel %vm2241, %v3110, %v3106
    %v3112 = vlaneseq
    %v3113 = vshrl.u32 %v3112, 7
    %v3114 = vsub.s32 %v2133, %v3113
    %v3115 = vrot.slane %v2068, %v3114
    %v3116 = vlaneseq
    %v3117 = vshrl.u32 %v3116, 7
    %v3118 = vsub.s32 %v2138, %v3117
    %v3119 = vrot.slane %v2069, %v3118
    %v3120 = vsel %vm2143, %v3119, %v3115
    %v3121 = vlaneseq
    %v3122 = vshrl.u32 %v3121, 7
    %v3123 = vsub.s32 %v2145, %v3122
    %v3124 = vrot.slane %v2070, %v3123
    %v3125 = vsel %vm2150, %v3124, %v3120
    %v3126 = vlaneseq
    %v3127 = vshrl.u32 %v3126, 7
    %v3128 = vsub.s32 %v2152, %v3127
    %v3129 = vrot.slane %v2071, %v3128
    %v3130 = vsel %vm2157, %v3129, %v3125
    %v3131 = vlaneseq
    %v3132 = vshrl.u32 %v3131, 7
    %v3133 = vsub.s32 %v2159, %v3132
    %v3134 = vrot.slane %v2072, %v3133
    %v3135 = vsel %vm2164, %v3134, %v3130
    %v3136 = vlaneseq
    %v3137 = vshrl.u32 %v3136, 7
    %v3138 = vsub.s32 %v2166, %v3137
    %v3139 = vrot.slane %v2073, %v3138
    %v3140 = vsel %vm2171, %v3139, %v3135
    %v3141 = vlaneseq
    %v3142 = vshrl.u32 %v3141, 7
    %v3143 = vsub.s32 %v2173, %v3142
    %v3144 = vrot.slane %v2074, %v3143
    %v3145 = vsel %vm2178, %v3144, %v3140
    %v3146 = vlaneseq
    %v3147 = vshrl.u32 %v3146, 7
    %v3148 = vsub.s32 %v2180, %v3147
    %v3149 = vrot.slane %v2075, %v3148
    %v3150 = vsel %vm2185, %v3149, %v3145
    %v3151 = vlaneseq
    %v3152 = vshrl.u32 %v3151, 7
    %v3153 = vsub.s32 %v2187, %v3152
    %v3154 = vrot.slane %v2076, %v3153
    %v3155 = vsel %vm2192, %v3154, %v3150
    %v3156 = vlaneseq
    %v3157 = vshrl.u32 %v3156, 7
    %v3158 = vsub.s32 %v2194, %v3157
    %v3159 = vrot.slane %v2077, %v3158
    %v3160 = vsel %vm2199, %v3159, %v3155
    %v3161 = vlaneseq
    %v3162 = vshrl.u32 %v3161, 7
    %v3163 = vsub.s32 %v2201, %v3162
    %v3164 = vrot.slane %v2078, %v3163
    %v3165 = vsel %vm2206, %v3164, %v3160
    %v3166 = vlaneseq
    %v3167 = vshrl.u32 %v3166, 7
    %v3168 = vsub.s32 %v2208, %v3167
    %v3169 = vrot.slane %v2079, %v3168
    %v3170 = vsel %vm2213, %v3169, %v3165
    %v3171 = vlaneseq
    %v3172 = vshrl.u32 %v3171, 7
    %v3173 = vsub.s32 %v2215, %v3172
    %v3174 = vrot.slane %v2080, %v3173
    %v3175 = vsel %vm2220, %v3174, %v3170
    %v3176 = vlaneseq
    %v3177 = vshrl.u32 %v3176, 7
    %v3178 = vsub.s32 %v2222, %v3177
    %v3179 = vrot.slane %v2081, %v3178
    %v3180 = vsel %vm2227, %v3179, %v3175
    %v3181 = vlaneseq
    %v3182 = vshrl.u32 %v3181, 7
    %v3183 = vsub.s32 %v2229, %v3182
    %v3184 = vrot.slane %v2082, %v3183
    %v3185 = vsel %vm2234, %v3184, %v3180
    %v3186 = vlaneseq
    %v3187 = vshrl.u32 %v3186, 7
    %v3188 = vsub.s32 %v2236, %v3187
    %v3189 = vrot.slane %v2083, %v3188
    %v3190 = vsel %vm2241, %v3189, %v3185
    %v3191 = vlaneseq
    %v3192 = vshrl.u32 %v3191, 7
    %v3193 = vsub.s32 %v2133, %v3192
    %v3194 = vrot.slane %v2084, %v3193
    %v3195 = vlaneseq
    %v3196 = vshrl.u32 %v3195, 7
    %v3197 = vsub.s32 %v2138, %v3196
    %v3198 = vrot.slane %v2085, %v3197
    %v3199 = vsel %vm2143, %v3198, %v3194
    %v3200 = vlaneseq
    %v3201 = vshrl.u32 %v3200, 7
    %v3202 = vsub.s32 %v2145, %v3201
    %v3203 = vrot.slane %v2086, %v3202
    %v3204 = vsel %vm2150, %v3203, %v3199
    %v3205 = vlaneseq
    %v3206 = vshrl.u32 %v3205, 7
    %v3207 = vsub.s32 %v2152, %v3206
    %v3208 = vrot.slane %v2087, %v3207
    %v3209 = vsel %vm2157, %v3208, %v3204
    %v3210 = vlaneseq
    %v3211 = vshrl.u32 %v3210, 7
    %v3212 = vsub.s32 %v2159, %v3211
    %v3213 = vrot.slane %v2088, %v3212
    %v3214 = vsel %vm2164, %v3213, %v3209
    %v3215 = vlaneseq
    %v3216 = vshrl.u32 %v3215, 7
    %v3217 = vsub.s32 %v2166, %v3216
    %v3218 = vrot.slane %v2089, %v3217
    %v3219 = vsel %vm2171, %v3218, %v3214
    %v3220 = vlaneseq
    %v3221 = vshrl.u32 %v3220, 7
    %v3222 = vsub.s32 %v2173, %v3221
    %v3223 = vrot.slane %v2090, %v3222
    %v3224 = vsel %vm2178, %v3223, %v3219
    %v3225 = vlaneseq
    %v3226 = vshrl.u32 %v3225, 7
    %v3227 = vsub.s32 %v2180, %v3226
    %v3228 = vrot.slane %v2091, %v3227
    %v3229 = vsel %vm2185, %v3228, %v3224
    %v3230 = vlaneseq
    %v3231 = vshrl.u32 %v3230, 7
    %v3232 = vsub.s32 %v2187, %v3231
    %v3233 = vrot.slane %v2092, %v3232
    %v3234 = vsel %vm2192, %v3233, %v3229
    %v3235 = vlaneseq
    %v3236 = vshrl.u32 %v3235, 7
    %v3237 = vsub.s32 %v2194, %v3236
    %v3238 = vrot.slane %v2093, %v3237
    %v3239 = vsel %vm2199, %v3238, %v3234
    %v3240 = vlaneseq
    %v3241 = vshrl.u32 %v3240, 7
    %v3242 = vsub.s32 %v2201, %v3241
    %v3243 = vrot.slane %v2094, %v3242
    %v3244 = vsel %vm2206, %v3243, %v3239
    %v3245 = vlaneseq
    %v3246 = vshrl.u32 %v3245, 7
    %v3247 = vsub.s32 %v2208, %v3246
    %v3248 = vrot.slane %v2095, %v3247
    %v3249 = vsel %vm2213, %v3248, %v3244
    %v3250 = vlaneseq
    %v3251 = vshrl.u32 %v3250, 7
    %v3252 = vsub.s32 %v2215, %v3251
    %v3253 = vrot.slane %v2096, %v3252
    %v3254 = vsel %vm2220, %v3253, %v3249
    %v3255 = vlaneseq
    %v3256 = vshrl.u32 %v3255, 7
    %v3257 = vsub.s32 %v2222, %v3256
    %v3258 = vrot.slane %v2097, %v3257
    %v3259 = vsel %vm2227, %v3258, %v3254
    %v3260 = vlaneseq
    %v3261 = vshrl.u32 %v3260, 7
    %v3262 = vsub.s32 %v2229, %v3261
    %v3263 = vrot.slane %v2098, %v3262
    %v3264 = vsel %vm2234, %v3263, %v3259
    %v3265 = vlaneseq
    %v3266 = vshrl.u32 %v3265, 7
    %v3267 = vsub.s32 %v2236, %v3266
    %v3268 = vrot.slane %v2099, %v3267
    %v3269 = vsel %vm2241, %v3268, %v3264
    %v3270 = vlaneseq
    %v3271 = vshrl.u32 %v3270, 7
    %v3272 = vsub.s32 %v2133, %v3271
    %v3273 = vrot.slane %v2100, %v3272
    %v3274 = vlaneseq
    %v3275 = vshrl.u32 %v3274, 7
    %v3276 = vsub.s32 %v2138, %v3275
    %v3277 = vrot.slane %v2101, %v3276
    %v3278 = vsel %vm2143, %v3277, %v3273
    %v3279 = vlaneseq
    %v3280 = vshrl.u32 %v3279, 7
    %v3281 = vsub.s32 %v2145, %v3280
    %v3282 = vrot.slane %v2102, %v3281
    %v3283 = vsel %vm2150, %v3282, %v3278
    %v3284 = vlaneseq
    %v3285 = vshrl.u32 %v3284, 7
    %v3286 = vsub.s32 %v2152, %v3285
    %v3287 = vrot.slane %v2103, %v3286
    %v3288 = vsel %vm2157, %v3287, %v3283
    %v3289 = vlaneseq
    %v3290 = vshrl.u32 %v3289, 7
    %v3291 = vsub.s32 %v2159, %v3290
    %v3292 = vrot.slane %v2104, %v3291
    %v3293 = vsel %vm2164, %v3292, %v3288
    %v3294 = vlaneseq
    %v3295 = vshrl.u32 %v3294, 7
    %v3296 = vsub.s32 %v2166, %v3295
    %v3297 = vrot.slane %v2105, %v3296
    %v3298 = vsel %vm2171, %v3297, %v3293
    %v3299 = vlaneseq
    %v3300 = vshrl.u32 %v3299, 7
    %v3301 = vsub.s32 %v2173, %v3300
    %v3302 = vrot.slane %v2106, %v3301
    %v3303 = vsel %vm2178, %v3302, %v3298
    %v3304 = vlaneseq
    %v3305 = vshrl.u32 %v3304, 7
    %v3306 = vsub.s32 %v2180, %v3305
    %v3307 = vrot.slane %v2107, %v3306
    %v3308 = vsel %vm2185, %v3307, %v3303
    %v3309 = vlaneseq
    %v3310 = vshrl.u32 %v3309, 7
    %v3311 = vsub.s32 %v2187, %v3310
    %v3312 = vrot.slane %v2108, %v3311
    %v3313 = vsel %vm2192, %v3312, %v3308
    %v3314 = vlaneseq
    %v3315 = vshrl.u32 %v3314, 7
    %v3316 = vsub.s32 %v2194, %v3315
    %v3317 = vrot.slane %v2109, %v3316
    %v3318 = vsel %vm2199, %v3317, %v3313
    %v3319 = vlaneseq
    %v3320 = vshrl.u32 %v3319, 7
    %v3321 = vsub.s32 %v2201, %v3320
    %v3322 = vrot.slane %v2110, %v3321
    %v3323 = vsel %vm2206, %v3322, %v3318
    %v3324 = vlaneseq
    %v3325 = vshrl.u32 %v3324, 7
    %v3326 = vsub.s32 %v2208, %v3325
    %v3327 = vrot.slane %v2111, %v3326
    %v3328 = vsel %vm2213, %v3327, %v3323
    %v3329 = vlaneseq
    %v3330 = vshrl.u32 %v3329, 7
    %v3331 = vsub.s32 %v2215, %v3330
    %v3332 = vrot.slane %v2112, %v3331
    %v3333 = vsel %vm2220, %v3332, %v3328
    %v3334 = vlaneseq
    %v3335 = vshrl.u32 %v3334, 7
    %v3336 = vsub.s32 %v2222, %v3335
    %v3337 = vrot.slane %v2113, %v3336
    %v3338 = vsel %vm2227, %v3337, %v3333
    %v3339 = vlaneseq
    %v3340 = vshrl.u32 %v3339, 7
    %v3341 = vsub.s32 %v2229, %v3340
    %v3342 = vrot.slane %v2114, %v3341
    %v3343 = vsel %vm2234, %v3342, %v3338
    %v3344 = vlaneseq
    %v3345 = vshrl.u32 %v3344, 7
    %v3346 = vsub.s32 %v2236, %v3345
    %v3347 = vrot.slane %v2115, %v3346
    %v3348 = vsel %vm2241, %v3347, %v3343
    %v3349 = vlaneseq
    %v3350 = vshrl.u32 %v3349, 7
    %v3351 = vsub.s32 %v2133, %v3350
    %v3352 = vrot.slane %v2116, %v3351
    %v3353 = vlaneseq
    %v3354 = vshrl.u32 %v3353, 7
    %v3355 = vsub.s32 %v2138, %v3354
    %v3356 = vrot.slane %v2117, %v3355
    %v3357 = vsel %vm2143, %v3356, %v3352
    %v3358 = vlaneseq
    %v3359 = vshrl.u32 %v3358, 7
    %v3360 = vsub.s32 %v2145, %v3359
    %v3361 = vrot.slane %v2118, %v3360
    %v3362 = vsel %vm2150, %v3361, %v3357
    %v3363 = vlaneseq
    %v3364 = vshrl.u32 %v3363, 7
    %v3365 = vsub.s32 %v2152, %v3364
    %v3366 = vrot.slane %v2119, %v3365
    %v3367 = vsel %vm2157, %v3366, %v3362
    %v3368 = vlaneseq
    %v3369 = vshrl.u32 %v3368, 7
    %v3370 = vsub.s32 %v2159, %v3369
    %v3371 = vrot.slane %v2120, %v3370
    %v3372 = vsel %vm2164, %v3371, %v3367
    %v3373 = vlaneseq
    %v3374 = vshrl.u32 %v3373, 7
    %v3375 = vsub.s32 %v2166, %v3374
    %v3376 = vrot.slane %v2121, %v3375
    %v3377 = vsel %vm2171, %v3376, %v3372
    %v3378 = vlaneseq
    %v3379 = vshrl.u32 %v3378, 7
    %v3380 = vsub.s32 %v2173, %v3379
    %v3381 = vrot.slane %v2122, %v3380
    %v3382 = vsel %vm2178, %v3381, %v3377
    %v3383 = vlaneseq
    %v3384 = vshrl.u32 %v3383, 7
    %v3385 = vsub.s32 %v2180, %v3384
    %v3386 = vrot.slane %v2123, %v3385
    %v3387 = vsel %vm2185, %v3386, %v3382
    %v3388 = vlaneseq
    %v3389 = vshrl.u32 %v3388, 7
    %v3390 = vsub.s32 %v2187, %v3389
    %v3391 = vrot.slane %v2124, %v3390
    %v3392 = vsel %vm2192, %v3391, %v3387
    %v3393 = vlaneseq
    %v3394 = vshrl.u32 %v3393, 7
    %v3395 = vsub.s32 %v2194, %v3394
    %v3396 = vrot.slane %v2125, %v3395
    %v3397 = vsel %vm2199, %v3396, %v3392
    %v3398 = vlaneseq
    %v3399 = vshrl.u32 %v3398, 7
    %v3400 = vsub.s32 %v2201, %v3399
    %v3401 = vrot.slane %v2126, %v3400
    %v3402 = vsel %vm2206, %v3401, %v3397
    %v3403 = vlaneseq
    %v3404 = vshrl.u32 %v3403, 7
    %v3405 = vsub.s32 %v2208, %v3404
    %v3406 = vrot.slane %v2127, %v3405
    %v3407 = vsel %vm2213, %v3406, %v3402
    %v3408 = vlaneseq
    %v3409 = vshrl.u32 %v3408, 7
    %v3410 = vsub.s32 %v2215, %v3409
    %v3411 = vrot.slane %v2128, %v3410
    %v3412 = vsel %vm2220, %v3411, %v3407
    %v3413 = vlaneseq
    %v3414 = vshrl.u32 %v3413, 7
    %v3415 = vsub.s32 %v2222, %v3414
    %v3416 = vrot.slane %v2129, %v3415
    %v3417 = vsel %vm2227, %v3416, %v3412
    %v3418 = vlaneseq
    %v3419 = vshrl.u32 %v3418, 7
    %v3420 = vsub.s32 %v2229, %v3419
    %v3421 = vrot.slane %v2130, %v3420
    %v3422 = vsel %vm2234, %v3421, %v3417
    %v3423 = vlaneseq
    %v3424 = vshrl.u32 %v3423, 7
    %v3425 = vsub.s32 %v2236, %v3424
    %v3426 = vrot.slane %v2131, %v3425
    %v3427 = vsel %vm2241, %v3426, %v3422
    %vm3428 = vcmask 1041409
    %v3429 = vsel %vm3428, %v2874, %v2242
    %v3430 = vsel %vm3428, %v2953, %v2321
    %v3431 = vsel %vm3428, %v3032, %v2400
    %v3432 = vsel %vm3428, %v3111, %v2479
    %v3433 = vsel %vm3428, %v3190, %v2558
    %v3434 = vsel %vm3428, %v3269, %v2637
    %v3435 = vsel %vm3428, %v3348, %v2716
    %v3436 = vsel %vm3428, %v3427, %v2795
    %v3437 = vpack.c.b16 %v3429, %v3429
    %v3438 = vpack.c.b16 %v3430, %v3430
    %v3439 = vpack.c.b16 %v3431, %v3431
    %v3440 = vpack.c.b16 %v3432, %v3432
    %v3441 = vpack.c.b16 %v3433, %v3433
    %v3442 = vpack.c.b16 %v3434, %v3434
    %v3443 = vpack.c.b16 %v3435, %v3435
    %v3444 = vpack.c.b16 %v3436, %v3436
    %v3965 = vunpack.c.l.b16 %v1194
    %v3966 = vunpack.c.h.b16 %v1194
    %v3967 = vunpack.c.l.b16 %v1195
    %v3968 = vunpack.c.h.b16 %v1195
    %v3969 = vunpack.c.l.b16 %v1196
    %v3970 = vunpack.c.h.b16 %v1196
    %v3971 = vunpack.c.l.b16 %v1197
    %v3972 = vunpack.c.h.b16 %v1197
    %v3973 = vunpack.c.l.b16 %v1198
    %v3974 = vunpack.c.h.b16 %v1198
    %v3975 = vunpack.c.l.b16 %v1199
    %v3976 = vunpack.c.h.b16 %v1199
    %v3977 = vunpack.c.l.b16 %v1200
    %v3978 = vunpack.c.h.b16 %v1200
    %v3979 = vunpack.c.l.b16 %v1201
    %v3980 = vunpack.c.h.b16 %v1201
    %v3981 = vunpack.c.l.b16 %v1202
    %v3982 = vunpack.c.h.b16 %v1202
    %v3983 = vunpack.c.l.b16 %v1203
    %v3984 = vunpack.c.h.b16 %v1203
    %v3985 = vunpack.c.l.b16 %v1204
    %v3986 = vunpack.c.h.b16 %v1204
    %v3987 = vunpack.c.l.b16 %v1205
    %v3988 = vunpack.c.h.b16 %v1205
    %v3989 = vunpack.c.l.b16 %v1206
    %v3990 = vunpack.c.h.b16 %v1206
    %v3991 = vunpack.c.l.b16 %v1207
    %v3992 = vunpack.c.h.b16 %v1207
    %v3993 = vunpack.c.l.b16 %v1208
    %v3994 = vunpack.c.h.b16 %v1208
    %v3995 = vunpack.c.l.b16 %v1209
    %v3996 = vunpack.c.h.b16 %v1209
    %v3997 = vunpack.c.l.b16 %v1210
    %v3998 = vunpack.c.h.b16 %v1210
    %v3999 = vunpack.c.l.b16 %v1211
    %v4000 = vunpack.c.h.b16 %v1211
    %v4001 = vunpack.c.l.b16 %v1212
    %v4002 = vunpack.c.h.b16 %v1212
    %v4003 = vunpack.c.l.b16 %v1213
    %v4004 = vunpack.c.h.b16 %v1213
    %v4005 = vunpack.c.l.b16 %v1214
    %v4006 = vunpack.c.h.b16 %v1214
    %v4007 = vunpack.c.l.b16 %v1215
    %v4008 = vunpack.c.h.b16 %v1215
    %v4009 = vunpack.c.l.b16 %v1216
    %v4010 = vunpack.c.h.b16 %v1216
    %v4011 = vunpack.c.l.b16 %v1217
    %v4012 = vunpack.c.h.b16 %v1217
    %v4013 = vunpack.c.l.b16 %v1218
    %v4014 = vunpack.c.h.b16 %v1218
    %v4015 = vunpack.c.l.b16 %v1219
    %v4016 = vunpack.c.h.b16 %v1219
    %v4017 = vunpack.c.l.b16 %v1220
    %v4018 = vunpack.c.h.b16 %v1220
    %v4019 = vunpack.c.l.b16 %v1221
    %v4020 = vunpack.c.h.b16 %v1221
    %v4021 = vunpack.c.l.b16 %v1222
    %v4022 = vunpack.c.h.b16 %v1222
    %v4023 = vunpack.c.l.b16 %v1223
    %v4024 = vunpack.c.h.b16 %v1223
    %v4025 = vunpack.c.l.b16 %v1224
    %v4026 = vunpack.c.h.b16 %v1224
    %v4027 = vunpack.c.l.b16 %v1225
    %v4028 = vunpack.c.h.b16 %v1225
    %v4029 = vunpack.c.l.b16 %v1226
    %v4030 = vunpack.c.h.b16 %v1226
    %v4031 = vunpack.c.l.b16 %v1227
    %v4032 = vunpack.c.h.b16 %v1227
    %v4033 = vunpack.c.l.b16 %v1228
    %v4034 = vunpack.c.h.b16 %v1228
    %v4035 = vunpack.c.l.b16 %v1229
    %v4036 = vunpack.c.h.b16 %v1229
    %v4037 = vunpack.c.l.b16 %v1230
    %v4038 = vunpack.c.h.b16 %v1230
    %v4039 = vunpack.c.l.b16 %v1231
    %v4040 = vunpack.c.h.b16 %v1231
    %v4041 = vunpack.c.l.b16 %v1232
    %v4042 = vunpack.c.h.b16 %v1232
    %v4043 = vunpack.c.l.b16 %v1233
    %v4044 = vunpack.c.h.b16 %v1233
    %v4045 = vunpack.c.l.b16 %v1234
    %v4046 = vunpack.c.h.b16 %v1234
    %v4047 = vunpack.c.l.b16 %v1235
    %v4048 = vunpack.c.h.b16 %v1235
    %v4049 = vunpack.c.l.b16 %v1236
    %v4050 = vunpack.c.h.b16 %v1236
    %v4051 = vunpack.c.l.b16 %v1237
    %v4052 = vunpack.c.h.b16 %v1237
    %v4053 = vunpack.c.l.b16 %v1238
    %v4054 = vunpack.c.h.b16 %v1238
    %v4055 = vunpack.c.l.b16 %v1239
    %v4056 = vunpack.c.h.b16 %v1239
    %v4057 = vunpack.c.l.b16 %v1240
    %v4058 = vunpack.c.h.b16 %v1240
    %v4059 = vunpack.c.l.b16 %v1241
    %v4060 = vunpack.c.h.b16 %v1241
    %v4061 = vunpack.c.l.b16 %v1242
    %v4062 = vunpack.c.h.b16 %v1242
    %v4063 = vunpack.c.l.b16 %v1243
    %v4064 = vunpack.c.h.b16 %v1243
    %v4065 = vunpack.c.l.b16 %v1244
    %v4066 = vunpack.c.h.b16 %v1244
    %v4067 = vunpack.c.l.b16 %v1245
    %v4068 = vunpack.c.h.b16 %v1245
    %v4069 = vunpack.c.l.b16 %v1246
    %v4070 = vunpack.c.h.b16 %v1246
    %v4071 = vunpack.c.l.b16 %v1247
    %v4072 = vunpack.c.h.b16 %v1247
    %v4073 = vunpack.c.l.b16 %v1248
    %v4074 = vunpack.c.h.b16 %v1248
    %v4075 = vunpack.c.l.b16 %v1249
    %v4076 = vunpack.c.h.b16 %v1249
    %v4077 = vunpack.c.l.b16 %v1250
    %v4078 = vunpack.c.h.b16 %v1250
    %v4079 = vunpack.c.l.b16 %v1251
    %v4080 = vunpack.c.h.b16 %v1251
    %v4081 = vunpack.c.l.b16 %v1252
    %v4082 = vunpack.c.h.b16 %v1252
    %v4083 = vunpack.c.l.b16 %v1253
    %v4084 = vunpack.c.h.b16 %v1253
    %v4085 = vunpack.c.l.b16 %v1254
    %v4086 = vunpack.c.h.b16 %v1254
    %v4087 = vunpack.c.l.b16 %v1255
    %v4088 = vunpack.c.h.b16 %v1255
    %v4089 = vunpack.c.l.b16 %v1256
    %v4090 = vunpack.c.h.b16 %v1256
    %v4091 = vunpack.c.l.b16 %v1257
    %v4092 = vunpack.c.h.b16 %v1257
    %v4093 = vunpack.c.l.b16 %v1258
    %v4094 = vunpack.c.h.b16 %v1258
    %v4095 = vunpack.c.l.b16 %v1259
    %v4096 = vunpack.c.h.b16 %v1259
    %v4097 = vunpack.c.l.b16 %v1260
    %v4098 = vunpack.c.h.b16 %v1260
    %v4099 = vunpack.c.l.b16 %v1261
    %v4100 = vunpack.c.h.b16 %v1261
    %v4101 = vunpack.c.l.b16 %v1262
    %v4102 = vunpack.c.h.b16 %v1262
    %v4103 = vunpack.c.l.b16 %v1263
    %v4104 = vunpack.c.h.b16 %v1263
    %v4105 = vunpack.c.l.b16 %v1264
    %v4106 = vunpack.c.h.b16 %v1264
    %v4107 = vunpack.c.l.b16 %v1265
    %v4108 = vunpack.c.h.b16 %v1265
    %v4109 = vunpack.c.l.b16 %v1266
    %v4110 = vunpack.c.h.b16 %v1266
    %v4111 = vunpack.c.l.b16 %v1267
    %v4112 = vunpack.c.h.b16 %v1267
    %v4113 = vunpack.c.l.b16 %v1268
    %v4114 = vunpack.c.h.b16 %v1268
    %v4115 = vunpack.c.l.b16 %v1269
    %v4116 = vunpack.c.h.b16 %v1269
    %v4117 = vunpack.c.l.b16 %v1270
    %v4118 = vunpack.c.h.b16 %v1270
    %v4119 = vunpack.c.l.b16 %v1271
    %v4120 = vunpack.c.h.b16 %v1271
    %v4121 = vunpack.c.l.b16 %v1272
    %v4122 = vunpack.c.h.b16 %v1272
    %v4123 = vunpack.c.l.b16 %v1273
    %v4124 = vunpack.c.h.b16 %v1273
    %v4125 = vunpack.c.l.b16 %v1274
    %v4126 = vunpack.c.h.b16 %v1274
    %v4127 = vunpack.c.l.b16 %v1275
    %v4128 = vunpack.c.h.b16 %v1275
    %v4129 = vunpack.c.l.b16 %v1276
    %v4130 = vunpack.c.h.b16 %v1276
    %v4131 = vunpack.c.l.b16 %v1277
    %v4132 = vunpack.c.h.b16 %v1277
    %v4133 = vunpack.c.l.b16 %v1278
    %v4134 = vunpack.c.h.b16 %v1278
    %v4135 = vunpack.c.l.b16 %v1279
    %v4136 = vunpack.c.h.b16 %v1279
    %v4137 = vunpack.c.l.b16 %v1280
    %v4138 = vunpack.c.h.b16 %v1280
    %v4139 = vunpack.c.l.b16 %v1281
    %v4140 = vunpack.c.h.b16 %v1281
    %v4141 = vunpack.c.l.b16 %v1282
    %v4142 = vunpack.c.h.b16 %v1282
    %v4143 = vunpack.c.l.b16 %v1283
    %v4144 = vunpack.c.h.b16 %v1283
    %v4145 = vunpack.c.l.b16 %v1284
    %v4146 = vunpack.c.h.b16 %v1284
    %v4147 = vunpack.c.l.b16 %v1285
    %v4148 = vunpack.c.h.b16 %v1285
    %v4149 = vunpack.c.l.b16 %v1286
    %v4150 = vunpack.c.h.b16 %v1286
    %v4151 = vunpack.c.l.b16 %v1287
    %v4152 = vunpack.c.h.b16 %v1287
    %v4153 = vunpack.c.l.b16 %v1288
    %v4154 = vunpack.c.h.b16 %v1288
    %v4155 = vunpack.c.l.b16 %v1289
    %v4156 = vunpack.c.h.b16 %v1289
    %v4157 = vunpack.c.l.b16 %v1290
    %v4158 = vunpack.c.h.b16 %v1290
    %v4159 = vunpack.c.l.b16 %v1291
    %v4160 = vunpack.c.h.b16 %v1291
    %v4161 = vunpack.c.l.b16 %v1292
    %v4162 = vunpack.c.h.b16 %v1292
    %v4163 = vunpack.c.l.b16 %v1293
    %v4164 = vunpack.c.h.b16 %v1293
    %v4165 = vunpack.c.l.b16 %v1294
    %v4166 = vunpack.c.h.b16 %v1294
    %v4167 = vunpack.c.l.b16 %v1295
    %v4168 = vunpack.c.h.b16 %v1295
    %v4169 = vunpack.c.l.b16 %v1296
    %v4170 = vunpack.c.h.b16 %v1296
    %v4171 = vunpack.c.l.b16 %v1297
    %v4172 = vunpack.c.h.b16 %v1297
    %v4173 = vunpack.c.l.b16 %v1298
    %v4174 = vunpack.c.h.b16 %v1298
    %v4175 = vunpack.c.l.b16 %v1299
    %v4176 = vunpack.c.h.b16 %v1299
    %v4177 = vunpack.c.l.b16 %v1300
    %v4178 = vunpack.c.h.b16 %v1300
    %v4179 = vunpack.c.l.b16 %v1301
    %v4180 = vunpack.c.h.b16 %v1301
    %v4181 = vunpack.c.l.b16 %v1302
    %v4182 = vunpack.c.h.b16 %v1302
    %v4183 = vunpack.c.l.b16 %v1303
    %v4184 = vunpack.c.h.b16 %v1303
    %v4185 = vunpack.c.l.b16 %v1304
    %v4186 = vunpack.c.h.b16 %v1304
    %v4187 = vunpack.c.l.b16 %v1305
    %v4188 = vunpack.c.h.b16 %v1305
    %v4189 = vunpack.c.l.b16 %v1306
    %v4190 = vunpack.c.h.b16 %v1306
    %v4191 = vunpack.c.l.b16 %v1307
    %v4192 = vunpack.c.h.b16 %v1307
    %v4193 = vunpack.c.l.b16 %v1308
    %v4194 = vunpack.c.h.b16 %v1308
    %v4195 = vunpack.c.l.b16 %v1309
    %v4196 = vunpack.c.h.b16 %v1309
    %v4197 = vunpack.c.l.b16 %v1310
    %v4198 = vunpack.c.h.b16 %v1310
    %v4199 = vunpack.c.l.b16 %v1311
    %v4200 = vunpack.c.h.b16 %v1311
    %v4201 = vunpack.c.l.b16 %v1312
    %v4202 = vunpack.c.h.b16 %v1312
    %v4203 = vunpack.c.l.b16 %v1313
    %v4204 = vunpack.c.h.b16 %v1313
    %v4205 = vunpack.c.l.b16 %v1314
    %v4206 = vunpack.c.h.b16 %v1314
    %v4207 = vunpack.c.l.b16 %v1315
    %v4208 = vunpack.c.h.b16 %v1315
    %v4209 = vunpack.c.l.b16 %v1316
    %v4210 = vunpack.c.h.b16 %v1316
    %v4211 = vunpack.c.l.b16 %v1317
    %v4212 = vunpack.c.h.b16 %v1317
    %v4213 = vunpack.c.l.b16 %v1318
    %v4214 = vunpack.c.h.b16 %v1318
    %v4215 = vunpack.c.l.b16 %v1319
    %v4216 = vunpack.c.h.b16 %v1319
    %v4217 = vunpack.c.l.b16 %v1320
    %v4218 = vunpack.c.h.b16 %v1320
    %v4219 = vunpack.c.l.b16 %v1321
    %v4220 = vunpack.c.h.b16 %v1321
    %v4221 = vunpack.c.l.b16 %v1322
    %v4222 = vunpack.c.h.b16 %v1322
    %v4223 = vunpack.c.l.b16 %v1323
    %v4224 = vunpack.c.h.b16 %v1323
    %v4225 = vunpack.c.l.b16 %v1324
    %v4226 = vunpack.c.h.b16 %v1324
    %v4227 = vunpack.c.l.b16 %v1325
    %v4228 = vunpack.c.h.b16 %v1325
    %v4229 = vunpack.c.l.b16 %v1326
    %v4230 = vunpack.c.h.b16 %v1326
    %v4231 = vunpack.c.l.b16 %v1327
    %v4232 = vunpack.c.h.b16 %v1327
    %v4233 = vunpack.c.l.b16 %v1328
    %v4234 = vunpack.c.h.b16 %v1328
    %v4235 = vunpack.c.l.b16 %v1329
    %v4236 = vunpack.c.h.b16 %v1329
    %v4237 = vunpack.c.l.b16 %v1330
    %v4238 = vunpack.c.h.b16 %v1330
    %v4239 = vunpack.c.l.b16 %v1331
    %v4240 = vunpack.c.h.b16 %v1331
    %v4241 = vunpack.c.l.b16 %v1332
    %v4242 = vunpack.c.h.b16 %v1332
    %v4243 = vunpack.c.l.b16 %v1333
    %v4244 = vunpack.c.h.b16 %v1333
    %v4245 = vunpack.c.l.b16 %v1334
    %v4246 = vunpack.c.h.b16 %v1334
    %v4247 = vunpack.c.l.b16 %v1335
    %v4248 = vunpack.c.h.b16 %v1335
    %v4249 = vunpack.c.l.b16 %v1336
    %v4250 = vunpack.c.h.b16 %v1336
    %v4251 = vunpack.c.l.b16 %v1337
    %v4252 = vunpack.c.h.b16 %v1337
    %v4253 = vunpack.c.l.b16 %v1338
    %v4254 = vunpack.c.h.b16 %v1338
    %v4255 = vunpack.c.l.b16 %v1339
    %v4256 = vunpack.c.h.b16 %v1339
    %v4257 = vunpack.c.l.b16 %v1340
    %v4258 = vunpack.c.h.b16 %v1340
    %v4259 = vunpack.c.l.b16 %v1341
    %v4260 = vunpack.c.h.b16 %v1341
    %v4261 = vunpack.c.l.b16 %v1342
    %v4262 = vunpack.c.h.b16 %v1342
    %v4263 = vunpack.c.l.b16 %v1343
    %v4264 = vunpack.c.h.b16 %v1343
    %v4265 = vunpack.c.l.b16 %v1344
    %v4266 = vunpack.c.h.b16 %v1344
    %v4267 = vunpack.c.l.b16 %v1345
    %v4268 = vunpack.c.h.b16 %v1345
    %v4269 = vunpack.c.l.b16 %v1346
    %v4270 = vunpack.c.h.b16 %v1346
    %v4271 = vunpack.c.l.b16 %v1347
    %v4272 = vunpack.c.h.b16 %v1347
    %v4273 = vunpack.c.l.b16 %v1348
    %v4274 = vunpack.c.h.b16 %v1348
    %v4275 = vunpack.c.l.b16 %v1349
    %v4276 = vunpack.c.h.b16 %v1349
    %v4277 = vunpack.c.l.b16 %v1350
    %v4278 = vunpack.c.h.b16 %v1350
    %v4279 = vunpack.c.l.b16 %v1351
    %v4280 = vunpack.c.h.b16 %v1351
    %v4281 = vunpack.c.l.b16 %v1352
    %v4282 = vunpack.c.h.b16 %v1352
    %v4283 = vunpack.c.l.b16 %v1353
    %v4284 = vunpack.c.h.b16 %v1353
    %v4285 = vunpack.c.l.b16 %v1354
    %v4286 = vunpack.c.h.b16 %v1354
    %v4287 = vunpack.c.l.b16 %v1355
    %v4288 = vunpack.c.h.b16 %v1355
    %v4289 = vunpack.c.l.b16 %v1356
    %v4290 = vunpack.c.h.b16 %v1356
    %v4291 = vunpack.c.l.b16 %v1357
    %v4292 = vunpack.c.h.b16 %v1357
    %v4293 = vunpack.c.l.b16 %v1358
    %v4294 = vunpack.c.h.b16 %v1358
    %v4295 = vunpack.c.l.b16 %v1359
    %v4296 = vunpack.c.h.b16 %v1359
    %v4297 = vunpack.c.l.b16 %v1360
    %v4298 = vunpack.c.h.b16 %v1360
    %v4299 = vunpack.c.l.b16 %v1361
    %v4300 = vunpack.c.h.b16 %v1361
    %v4301 = vunpack.c.l.b16 %v1362
    %v4302 = vunpack.c.h.b16 %v1362
    %v4303 = vunpack.c.l.b16 %v1363
    %v4304 = vunpack.c.h.b16 %v1363
    %v4305 = vunpack.c.l.b16 %v1364
    %v4306 = vunpack.c.h.b16 %v1364
    %v4307 = vunpack.c.l.b16 %v1365
    %v4308 = vunpack.c.h.b16 %v1365
    %v4309 = vunpack.c.l.b16 %v1366
    %v4310 = vunpack.c.h.b16 %v1366
    %v4311 = vunpack.c.l.b16 %v1367
    %v4312 = vunpack.c.h.b16 %v1367
    %v4313 = vunpack.c.l.b16 %v1368
    %v4314 = vunpack.c.h.b16 %v1368
    %v4315 = vunpack.c.l.b16 %v1369
    %v4316 = vunpack.c.h.b16 %v1369
    %v4317 = vunpack.c.l.b16 %v1370
    %v4318 = vunpack.c.h.b16 %v1370
    %v4319 = vunpack.c.l.b16 %v1371
    %v4320 = vunpack.c.h.b16 %v1371
    %v4321 = vunpack.c.l.b16 %v1372
    %v4322 = vunpack.c.h.b16 %v1372
    %v4323 = vunpack.c.l.b16 %v1373
    %v4324 = vunpack.c.h.b16 %v1373
    %v4325 = vunpack.c.l.b16 %v1374
    %v4326 = vunpack.c.h.b16 %v1374
    %v4327 = vunpack.c.l.b16 %v1375
    %v4328 = vunpack.c.h.b16 %v1375
    %v4329 = vunpack.c.l.b16 %v1376
    %v4330 = vunpack.c.h.b16 %v1376
    %v4331 = vunpack.c.l.b16 %v1377
    %v4332 = vunpack.c.h.b16 %v1377
    %v4333 = vunpack.c.l.b16 %v1378
    %v4334 = vunpack.c.h.b16 %v1378
    %v4335 = vunpack.c.l.b16 %v1379
    %v4336 = vunpack.c.h.b16 %v1379
    %v4337 = vunpack.c.l.b16 %v1380
    %v4338 = vunpack.c.h.b16 %v1380
    %v4339 = vunpack.c.l.b16 %v1381
    %v4340 = vunpack.c.h.b16 %v1381
    %v4341 = vunpack.c.l.b16 %v1382
    %v4342 = vunpack.c.h.b16 %v1382
    %v4343 = vunpack.c.l.b16 %v1383
    %v4344 = vunpack.c.h.b16 %v1383
    %v4345 = vunpack.c.l.b16 %v1384
    %v4346 = vunpack.c.h.b16 %v1384
    %v4347 = vunpack.c.l.b16 %v1385
    %v4348 = vunpack.c.h.b16 %v1385
    %v4349 = vunpack.c.l.b16 %v1386
    %v4350 = vunpack.c.h.b16 %v1386
    %v4351 = vunpack.c.l.b16 %v1387
    %v4352 = vunpack.c.h.b16 %v1387
    %v4353 = vunpack.c.l.b16 %v1388
    %v4354 = vunpack.c.h.b16 %v1388
    %v4355 = vunpack.c.l.b16 %v1389
    %v4356 = vunpack.c.h.b16 %v1389
    %v4357 = vunpack.c.l.b16 %v1390
    %v4358 = vunpack.c.h.b16 %v1390
    %v4359 = vunpack.c.l.b16 %v1391
    %v4360 = vunpack.c.h.b16 %v1391
    %v4361 = vunpack.c.l.b16 %v1392
    %v4362 = vunpack.c.h.b16 %v1392
    %v4363 = vunpack.c.l.b16 %v1393
    %v4364 = vunpack.c.h.b16 %v1393
    %v4365 = vunpack.c.l.b16 %v1394
    %v4366 = vunpack.c.h.b16 %v1394
    %v4367 = vunpack.c.l.b16 %v1395
    %v4368 = vunpack.c.h.b16 %v1395
    %v4369 = vunpack.c.l.b16 %v1396
    %v4370 = vunpack.c.h.b16 %v1396
    %v4371 = vunpack.c.l.b16 %v1397
    %v4372 = vunpack.c.h.b16 %v1397
    %v4373 = vunpack.c.l.b16 %v1398
    %v4374 = vunpack.c.h.b16 %v1398
    %v4375 = vunpack.c.l.b16 %v1399
    %v4376 = vunpack.c.h.b16 %v1399
    %v4377 = vunpack.c.l.b16 %v1400
    %v4378 = vunpack.c.h.b16 %v1400
    %v4379 = vunpack.c.l.b16 %v1401
    %v4380 = vunpack.c.h.b16 %v1401
    %v4381 = vunpack.c.l.b16 %v1402
    %v4382 = vunpack.c.h.b16 %v1402
    %v4383 = vunpack.c.l.b16 %v1403
    %v4384 = vunpack.c.h.b16 %v1403
    %v4385 = vunpack.c.l.b16 %v1404
    %v4386 = vunpack.c.h.b16 %v1404
    %v4387 = vunpack.c.l.b16 %v1405
    %v4388 = vunpack.c.h.b16 %v1405
    %v4389 = vunpack.c.l.b16 %v1406
    %v4390 = vunpack.c.h.b16 %v1406
    %v4391 = vunpack.c.l.b16 %v1407
    %v4392 = vunpack.c.h.b16 %v1407
    %v4393 = vunpack.c.l.b16 %v1408
    %v4394 = vunpack.c.h.b16 %v1408
    %v4395 = vunpack.c.l.b16 %v1409
    %v4396 = vunpack.c.h.b16 %v1409
    %v4397 = vunpack.c.l.b16 %v1410
    %v4398 = vunpack.c.h.b16 %v1410
    %v4399 = vunpack.c.l.b16 %v1411
    %v4400 = vunpack.c.h.b16 %v1411
    %v4401 = vunpack.c.l.b16 %v1412
    %v4402 = vunpack.c.h.b16 %v1412
    %v4403 = vunpack.c.l.b16 %v1413
    %v4404 = vunpack.c.h.b16 %v1413
    %v4405 = vunpack.c.l.b16 %v1414
    %v4406 = vunpack.c.h.b16 %v1414
    %v4407 = vunpack.c.l.b16 %v1415
    %v4408 = vunpack.c.h.b16 %v1415
    %v4409 = vunpack.c.l.b16 %v1416
    %v4410 = vunpack.c.h.b16 %v1416
    %v4411 = vunpack.c.l.b16 %v1417
    %v4412 = vunpack.c.h.b16 %v1417
    %v4413 = vunpack.c.l.b16 %v1418
    %v4414 = vunpack.c.h.b16 %v1418
    %v4415 = vunpack.c.l.b16 %v1419
    %v4416 = vunpack.c.h.b16 %v1419
    %v4417 = vunpack.c.l.b16 %v1420
    %v4418 = vunpack.c.h.b16 %v1420
    %v4419 = vunpack.c.l.b16 %v1421
    %v4420 = vunpack.c.h.b16 %v1421
    %v4421 = vunpack.c.l.b16 %v1422
    %v4422 = vunpack.c.h.b16 %v1422
    %v4423 = vunpack.c.l.b16 %v1423
    %v4424 = vunpack.c.h.b16 %v1423
    %v4425 = vunpack.c.l.b16 %v1424
    %v4426 = vunpack.c.h.b16 %v1424
    %v4427 = vunpack.c.l.b16 %v1425
    %v4428 = vunpack.c.h.b16 %v1425
    %v4429 = vunpack.c.l.b16 %v1426
    %v4430 = vunpack.c.h.b16 %v1426
    %v4431 = vunpack.c.l.b16 %v1427
    %v4432 = vunpack.c.h.b16 %v1427
    %v4433 = vunpack.c.l.b16 %v1428
    %v4434 = vunpack.c.h.b16 %v1428
    %v4435 = vunpack.c.l.b16 %v1429
    %v4436 = vunpack.c.h.b16 %v1429
    %v4437 = vunpack.c.l.b16 %v1430
    %v4438 = vunpack.c.h.b16 %v1430
    %v4439 = vunpack.c.l.b16 %v1431
    %v4440 = vunpack.c.h.b16 %v1431
    %v4441 = vunpack.c.l.b16 %v1432
    %v4442 = vunpack.c.h.b16 %v1432
    %v4443 = vunpack.c.l.b16 %v1433
    %v4444 = vunpack.c.h.b16 %v1433
    %v4445 = vunpack.c.l.b16 %v1434
    %v4446 = vunpack.c.h.b16 %v1434
    %v4447 = vunpack.c.l.b16 %v1435
    %v4448 = vunpack.c.h.b16 %v1435
    %v4449 = vunpack.c.l.b16 %v1436
    %v4450 = vunpack.c.h.b16 %v1436
    %v4451 = vunpack.c.l.b16 %v1437
    %v4452 = vunpack.c.h.b16 %v1437
    %v4453 = vunpack.c.l.b16 %v1438
    %v4454 = vunpack.c.h.b16 %v1438
    %v4455 = vunpack.c.l.b16 %v1439
    %v4456 = vunpack.c.h.b16 %v1439
    %v4457 = vunpack.c.l.b16 %v1440
    %v4458 = vunpack.c.h.b16 %v1440
    %v4459 = vunpack.c.l.b16 %v1441
    %v4460 = vunpack.c.h.b16 %v1441
    %v4461 = vunpack.c.l.b16 %v1442
    %v4462 = vunpack.c.h.b16 %v1442
    %v4463 = vunpack.c.l.b16 %v1443
    %v4464 = vunpack.c.h.b16 %v1443
    %v4465 = vunpack.c.l.b16 %v1444
    %v4466 = vunpack.c.h.b16 %v1444
    %v4467 = vunpack.c.l.b16 %v1445
    %v4468 = vunpack.c.h.b16 %v1445
    %v4469 = vunpack.c.l.b16 %v1446
    %v4470 = vunpack.c.h.b16 %v1446
    %v4471 = vunpack.c.l.b16 %v1447
    %v4472 = vunpack.c.h.b16 %v1447
    %v4473 = vunpack.c.l.b16 %v1448
    %v4474 = vunpack.c.h.b16 %v1448
    %v4475 = vunpack.c.l.b16 %v1449
    %v4476 = vunpack.c.h.b16 %v1449
    %v4477 = vunpack.c.l.b16 %v1450
    %v4478 = vunpack.c.h.b16 %v1450
    %v4479 = vunpack.c.l.b16 %v1451
    %v4480 = vunpack.c.h.b16 %v1451
    %v4481 = vunpack.c.l.b16 %v1452
    %v4482 = vunpack.c.h.b16 %v1452
    %v4483 = vunpack.c.l.b16 %v1453
    %v4484 = vunpack.c.h.b16 %v1453
    %v4485 = vunpack.c.l.b16 %v1454
    %v4486 = vunpack.c.h.b16 %v1454
    %v4487 = vunpack.c.l.b16 %v1455
    %v4488 = vunpack.c.h.b16 %v1455
    %v4489 = vunpack.c.l.b16 %v1456
    %v4490 = vunpack.c.h.b16 %v1456
    %v4491 = vunpack.c.l.b16 %v1457
    %v4492 = vunpack.c.h.b16 %v1457
    %v4493 = vunpack.c.l.b16 %v1458
    %v4494 = vunpack.c.h.b16 %v1458
    %v4495 = vunpack.c.l.b16 %v1459
    %v4496 = vunpack.c.h.b16 %v1459
    %v4497 = vunpack.c.l.b16 %v1460
    %v4498 = vunpack.c.h.b16 %v1460
    %v4499 = vunpack.c.l.b16 %v1461
    %v4500 = vunpack.c.h.b16 %v1461
    %v4501 = vunpack.c.l.b16 %v1462
    %v4502 = vunpack.c.h.b16 %v1462
    %v4503 = vunpack.c.l.b16 %v1463
    %v4504 = vunpack.c.h.b16 %v1463
    %v4505 = vunpack.c.l.b16 %v1464
    %v4506 = vunpack.c.h.b16 %v1464
    %v4507 = vunpack.c.l.b16 %v1465
    %v4508 = vunpack.c.h.b16 %v1465
    %v4509 = vunpack.c.l.b16 %v1466
    %v4510 = vunpack.c.h.b16 %v1466
    %v4511 = vunpack.c.l.b16 %v1467
    %v4512 = vunpack.c.h.b16 %v1467
    %v4513 = vunpack.c.l.b16 %v1468
    %v4514 = vunpack.c.h.b16 %v1468
    %v4515 = vunpack.c.l.b16 %v1469
    %v4516 = vunpack.c.h.b16 %v1469
    %v4517 = vunpack.c.l.b16 %v1470
    %v4518 = vunpack.c.h.b16 %v1470
    %v4519 = vunpack.c.l.b16 %v1471
    %v4520 = vunpack.c.h.b16 %v1471
    %v4521 = vunpack.c.l.b16 %v1472
    %v4522 = vunpack.c.h.b16 %v1472
    %v4523 = vunpack.c.l.b16 %v1473
    %v4524 = vunpack.c.h.b16 %v1473
    %v4525 = vunpack.c.l.b16 %v1474
    %v4526 = vunpack.c.h.b16 %v1474
    %v4527 = vunpack.c.l.b16 %v1475
    %v4528 = vunpack.c.h.b16 %v1475
    %v4529 = vunpack.c.l.b16 %v1476
    %v4530 = vunpack.c.h.b16 %v1476
    %v4531 = vunpack.c.l.b16 %v1477
    %v4532 = vunpack.c.h.b16 %v1477
    %v4533 = vunpack.c.l.b16 %v1478
    %v4534 = vunpack.c.h.b16 %v1478
    %v4535 = vunpack.c.l.b16 %v1479
    %v4536 = vunpack.c.h.b16 %v1479
    %v4537 = vunpack.c.l.b16 %v1480
    %v4538 = vunpack.c.h.b16 %v1480
    %v4539 = vunpack.c.l.b16 %v1481
    %v4540 = vunpack.c.h.b16 %v1481
    %v4541 = vunpack.c.l.b16 %v1482
    %v4542 = vunpack.c.h.b16 %v1482
    %v4543 = vunpack.c.l.b16 %v1483
    %v4544 = vunpack.c.h.b16 %v1483
    %v4545 = vunpack.c.l.b16 %v1484
    %v4546 = vunpack.c.h.b16 %v1484
    %v4547 = vunpack.c.l.b16 %v1485
    %v4548 = vunpack.c.h.b16 %v1485
    %v4549 = vunpack.c.l.b16 %v1486
    %v4550 = vunpack.c.h.b16 %v1486
    %v4551 = vunpack.c.l.b16 %v1487
    %v4552 = vunpack.c.h.b16 %v1487
    %v4553 = vunpack.c.l.b16 %v1488
    %v4554 = vunpack.c.h.b16 %v1488
    %v4555 = vunpack.c.l.b16 %v1489
    %v4556 = vunpack.c.h.b16 %v1489
    %v4557 = vunpack.c.l.b16 %v1490
    %v4558 = vunpack.c.h.b16 %v1490
    %v4559 = vunpack.c.l.b16 %v1491
    %v4560 = vunpack.c.h.b16 %v1491
    %v4561 = vunpack.c.l.b16 %v1492
    %v4562 = vunpack.c.h.b16 %v1492
    %v4563 = vunpack.c.l.b16 %v1493
    %v4564 = vunpack.c.h.b16 %v1493
    %v4565 = vunpack.c.l.b16 %v1494
    %v4566 = vunpack.c.h.b16 %v1494
    %v4567 = vunpack.c.l.b16 %v1495
    %v4568 = vunpack.c.h.b16 %v1495
    %v4569 = vunpack.c.l.b16 %v1496
    %v4570 = vunpack.c.h.b16 %v1496
    %v4571 = vunpack.c.l.b16 %v1497
    %v4572 = vunpack.c.h.b16 %v1497
    %v4573 = vunpack.c.l.b16 %v1498
    %v4574 = vunpack.c.h.b16 %v1498
    %v4575 = vunpack.c.l.b16 %v1499
    %v4576 = vunpack.c.h.b16 %v1499
    %v4577 = vunpack.c.l.b16 %v1500
    %v4578 = vunpack.c.h.b16 %v1500
    %v4579 = vunpack.c.l.b16 %v1501
    %v4580 = vunpack.c.h.b16 %v1501
    %v4581 = vunpack.c.l.b16 %v1502
    %v4582 = vunpack.c.h.b16 %v1502
    %v4583 = vunpack.c.l.b16 %v1503
    %v4584 = vunpack.c.h.b16 %v1503
    %v4585 = vunpack.c.l.b16 %v1504
    %v4586 = vunpack.c.h.b16 %v1504
    %v4587 = vunpack.c.l.b16 %v1505
    %v4588 = vunpack.c.h.b16 %v1505
    %v4589 = vunpack.c.l.b16 %v1506
    %v4590 = vunpack.c.h.b16 %v1506
    %v4591 = vunpack.c.l.b16 %v1507
    %v4592 = vunpack.c.h.b16 %v1507
    %v4593 = vunpack.c.l.b16 %v1508
    %v4594 = vunpack.c.h.b16 %v1508
    %v4595 = vunpack.c.l.b16 %v1509
    %v4596 = vunpack.c.h.b16 %v1509
    %v4597 = vunpack.c.l.b16 %v1510
    %v4598 = vunpack.c.h.b16 %v1510
    %v4599 = vunpack.c.l.b16 %v1511
    %v4600 = vunpack.c.h.b16 %v1511
    %v4601 = vunpack.c.l.b16 %v1512
    %v4602 = vunpack.c.h.b16 %v1512
    %v4603 = vunpack.c.l.b16 %v1513
    %v4604 = vunpack.c.h.b16 %v1513
    %v4605 = vunpack.c.l.b16 %v1514
    %v4606 = vunpack.c.h.b16 %v1514
    %v4607 = vunpack.c.l.b16 %v1515
    %v4608 = vunpack.c.h.b16 %v1515
    %v4609 = vunpack.c.l.b16 %v1516
    %v4610 = vunpack.c.h.b16 %v1516
    %v4611 = vunpack.c.l.b16 %v1517
    %v4612 = vunpack.c.h.b16 %v1517
    %v4613 = vunpack.c.l.b16 %v1518
    %v4614 = vunpack.c.h.b16 %v1518
    %v4615 = vunpack.c.l.b16 %v1519
    %v4616 = vunpack.c.h.b16 %v1519
    %v4617 = vunpack.c.l.b16 %v1520
    %v4618 = vunpack.c.h.b16 %v1520
    %v4619 = vunpack.c.l.b16 %v1521
    %v4620 = vunpack.c.h.b16 %v1521
    %v4621 = vunpack.c.l.b16 %v1522
    %v4622 = vunpack.c.h.b16 %v1522
    %v4623 = vunpack.c.l.b16 %v1523
    %v4624 = vunpack.c.h.b16 %v1523
    %v4625 = vunpack.c.l.b16 %v1524
    %v4626 = vunpack.c.h.b16 %v1524
    %v4627 = vunpack.c.l.b16 %v1525
    %v4628 = vunpack.c.h.b16 %v1525
    %v4629 = vunpack.c.l.b16 %v1526
    %v4630 = vunpack.c.h.b16 %v1526
    %v4631 = vunpack.c.l.b16 %v1527
    %v4632 = vunpack.c.h.b16 %v1527
    %v4633 = vunpack.c.l.b16 %v1528
    %v4634 = vunpack.c.h.b16 %v1528
    %v4635 = vunpack.c.l.b16 %v1529
    %v4636 = vunpack.c.h.b16 %v1529
    %v4637 = vunpack.c.l.b16 %v1530
    %v4638 = vunpack.c.h.b16 %v1530
    %v4639 = vunpack.c.l.b16 %v1531
    %v4640 = vunpack.c.h.b16 %v1531
    %v4641 = vunpack.c.l.b16 %v1532
    %v4642 = vunpack.c.h.b16 %v1532
    %v4643 = vunpack.c.l.b16 %v1533
    %v4644 = vunpack.c.h.b16 %v1533
    %v4645 = vunpack.c.l.b16 %v1534
    %v4646 = vunpack.c.h.b16 %v1534
    %v4647 = vunpack.c.l.b16 %v1535
    %v4648 = vunpack.c.h.b16 %v1535
    %v4649 = vunpack.c.l.b16 %v1536
    %v4650 = vunpack.c.h.b16 %v1536
    %v4651 = vunpack.c.l.b16 %v1537
    %v4652 = vunpack.c.h.b16 %v1537
    %v4653 = vunpack.c.l.b16 %v1538
    %v4654 = vunpack.c.h.b16 %v1538
    %v4655 = vunpack.c.l.b16 %v1539
    %v4656 = vunpack.c.h.b16 %v1539
    %v4657 = vunpack.c.l.b16 %v1540
    %v4658 = vunpack.c.h.b16 %v1540
    %v4659 = vunpack.c.l.b16 %v1541
    %v4660 = vunpack.c.h.b16 %v1541
    %v4661 = vunpack.c.l.b16 %v1542
    %v4662 = vunpack.c.h.b16 %v1542
    %v4663 = vunpack.c.l.b16 %v1543
    %v4664 = vunpack.c.h.b16 %v1543
    %v4665 = vunpack.c.l.b16 %v1544
    %v4666 = vunpack.c.h.b16 %v1544
    %v4667 = vunpack.c.l.b16 %v1545
    %v4668 = vunpack.c.h.b16 %v1545
    %v4669 = vunpack.c.l.b16 %v1546
    %v4670 = vunpack.c.h.b16 %v1546
    %v4671 = vunpack.c.l.b16 %v1547
    %v4672 = vunpack.c.h.b16 %v1547
    %v4673 = vunpack.c.l.b16 %v1548
    %v4674 = vunpack.c.h.b16 %v1548
    %v4675 = vunpack.c.l.b16 %v1549
    %v4676 = vunpack.c.h.b16 %v1549
    %v4677 = vunpack.c.l.b16 %v1550
    %v4678 = vunpack.c.h.b16 %v1550
    %v4679 = vunpack.c.l.b16 %v1551
    %v4680 = vunpack.c.h.b16 %v1551
    %v4681 = vunpack.c.l.b16 %v1552
    %v4682 = vunpack.c.h.b16 %v1552
    %v4683 = vunpack.c.l.b16 %v1553
    %v4684 = vunpack.c.h.b16 %v1553
    %v4685 = vunpack.c.l.b16 %v1554
    %v4686 = vunpack.c.h.b16 %v1554
    %v4687 = vunpack.c.l.b16 %v1555
    %v4688 = vunpack.c.h.b16 %v1555
    %v4689 = vunpack.c.l.b16 %v1556
    %v4690 = vunpack.c.h.b16 %v1556
    %v4691 = vunpack.c.l.b16 %v1557
    %v4692 = vunpack.c.h.b16 %v1557
    %v4693 = vunpack.c.l.b16 %v1558
    %v4694 = vunpack.c.h.b16 %v1558
    %v4695 = vunpack.c.l.b16 %v1559
    %v4696 = vunpack.c.h.b16 %v1559
    %v4697 = vunpack.c.l.b16 %v1560
    %v4698 = vunpack.c.h.b16 %v1560
    %v4699 = vunpack.c.l.b16 %v1561
    %v4700 = vunpack.c.h.b16 %v1561
    %v4701 = vunpack.c.l.b16 %v1562
    %v4702 = vunpack.c.h.b16 %v1562
    %v4703 = vunpack.c.l.b16 %v1563
    %v4704 = vunpack.c.h.b16 %v1563
    %v4705 = vunpack.c.l.b16 %v1564
    %v4706 = vunpack.c.h.b16 %v1564
    %v4707 = vunpack.c.l.b16 %v1565
    %v4708 = vunpack.c.h.b16 %v1565
    %v4709 = vunpack.c.l.b16 %v1566
    %v4710 = vunpack.c.h.b16 %v1566
    %v4711 = vunpack.c.l.b16 %v1567
    %v4712 = vunpack.c.h.b16 %v1567
    %v4713 = vunpack.c.l.b16 %v1568
    %v4714 = vunpack.c.h.b16 %v1568
    %v4715 = vunpack.c.l.b16 %v1569
    %v4716 = vunpack.c.h.b16 %v1569
    %v4717 = vunpack.c.l.b16 %v1570
    %v4718 = vunpack.c.h.b16 %v1570
    %v4719 = vunpack.c.l.b16 %v1571
    %v4720 = vunpack.c.h.b16 %v1571
    %v4721 = vunpack.c.l.b16 %v1572
    %v4722 = vunpack.c.h.b16 %v1572
    %v4723 = vunpack.c.l.b16 %v1573
    %v4724 = vunpack.c.h.b16 %v1573
    %v4725 = vunpack.c.l.b16 %v1574
    %v4726 = vunpack.c.h.b16 %v1574
    %v4727 = vunpack.c.l.b16 %v1575
    %v4728 = vunpack.c.h.b16 %v1575
    %v4729 = vunpack.c.l.b16 %v1576
    %v4730 = vunpack.c.h.b16 %v1576
    %v4731 = vunpack.c.l.b16 %v1577
    %v4732 = vunpack.c.h.b16 %v1577
    %v4733 = vunpack.c.l.b16 %v1578
    %v4734 = vunpack.c.h.b16 %v1578
    %v4735 = vunpack.c.l.b16 %v1579
    %v4736 = vunpack.c.h.b16 %v1579
    %v4737 = vunpack.c.l.b16 %v1580
    %v4738 = vunpack.c.h.b16 %v1580
    %v4739 = vunpack.c.l.b16 %v1581
    %v4740 = vunpack.c.h.b16 %v1581
    %v4741 = vunpack.c.l.b16 %v1582
    %v4742 = vunpack.c.h.b16 %v1582
    %v4743 = vunpack.c.l.b16 %v1583
    %v4744 = vunpack.c.h.b16 %v1583
    %v4745 = vunpack.c.l.b16 %v1584
    %v4746 = vunpack.c.h.b16 %v1584
    %v4747 = vunpack.c.l.b16 %v1585
    %v4748 = vunpack.c.h.b16 %v1585
    %v4749 = vunpack.c.l.b16 %v1586
    %v4750 = vunpack.c.h.b16 %v1586
    %v4751 = vunpack.c.l.b16 %v1587
    %v4752 = vunpack.c.h.b16 %v1587
    %v4753 = vunpack.c.l.b16 %v1588
    %v4754 = vunpack.c.h.b16 %v1588
    %v4755 = vunpack.c.l.b16 %v1589
    %v4756 = vunpack.c.h.b16 %v1589
    %v4757 = vunpack.c.l.b16 %v1590
    %v4758 = vunpack.c.h.b16 %v1590
    %v4759 = vunpack.c.l.b16 %v1591
    %v4760 = vunpack.c.h.b16 %v1591
    %v4761 = vunpack.c.l.b16 %v1592
    %v4762 = vunpack.c.h.b16 %v1592
    %v4763 = vunpack.c.l.b16 %v1593
    %v4764 = vunpack.c.h.b16 %v1593
    %v4765 = vunpack.c.l.b16 %v1594
    %v4766 = vunpack.c.h.b16 %v1594
    %v4767 = vunpack.c.l.b16 %v1595
    %v4768 = vunpack.c.h.b16 %v1595
    %v4769 = vunpack.c.l.b16 %v1596
    %v4770 = vunpack.c.h.b16 %v1596
    %v4771 = vunpack.c.l.b16 %v1597
    %v4772 = vunpack.c.h.b16 %v1597
    %v4773 = vunpack.c.l.b16 %v1598
    %v4774 = vunpack.c.h.b16 %v1598
    %v4775 = vunpack.c.l.b16 %v1599
    %v4776 = vunpack.c.h.b16 %v1599
    %v4777 = vunpack.c.l.b16 %v1600
    %v4778 = vunpack.c.h.b16 %v1600
    %v4779 = vunpack.c.l.b16 %v1601
    %v4780 = vunpack.c.h.b16 %v1601
    %v4781 = vunpack.c.l.b16 %v1602
    %v4782 = vunpack.c.h.b16 %v1602
    %v4783 = vunpack.c.l.b16 %v1603
    %v4784 = vunpack.c.h.b16 %v1603
    %v4785 = vunpack.c.l.b16 %v1604
    %v4786 = vunpack.c.h.b16 %v1604
    %v4787 = vunpack.c.l.b16 %v1605
    %v4788 = vunpack.c.h.b16 %v1605
    %v4789 = vunpack.c.l.b16 %v1606
    %v4790 = vunpack.c.h.b16 %v1606
    %v4791 = vunpack.c.l.b16 %v1607
    %v4792 = vunpack.c.h.b16 %v1607
    %v4793 = vunpack.c.l.b16 %v1608
    %v4794 = vunpack.c.h.b16 %v1608
    %v4795 = vunpack.c.l.b16 %v1609
    %v4796 = vunpack.c.h.b16 %v1609
    %v4797 = vunpack.c.l.b16 %v1610
    %v4798 = vunpack.c.h.b16 %v1610
    %v4799 = vunpack.c.l.b16 %v1611
    %v4800 = vunpack.c.h.b16 %v1611
    %v4801 = vunpack.c.l.b16 %v1612
    %v4802 = vunpack.c.h.b16 %v1612
    %v4803 = vunpack.c.l.b16 %v1613
    %v4804 = vunpack.c.h.b16 %v1613
    %v4805 = vunpack.c.l.b16 %v1614
    %v4806 = vunpack.c.h.b16 %v1614
    %v4807 = vunpack.c.l.b16 %v1615
    %v4808 = vunpack.c.h.b16 %v1615
    %v4809 = vunpack.c.l.b16 %v1616
    %v4810 = vunpack.c.h.b16 %v1616
    %v4811 = vunpack.c.l.b16 %v1617
    %v4812 = vunpack.c.h.b16 %v1617
    %v4813 = vunpack.c.l.b16 %v1618
    %v4814 = vunpack.c.h.b16 %v1618
    %v4815 = vunpack.c.l.b16 %v1619
    %v4816 = vunpack.c.h.b16 %v1619
    %v4817 = vunpack.c.l.b16 %v1620
    %v4818 = vunpack.c.h.b16 %v1620
    %v4819 = vunpack.c.l.b16 %v1621
    %v4820 = vunpack.c.h.b16 %v1621
    %v4821 = vunpack.c.l.b16 %v1622
    %v4822 = vunpack.c.h.b16 %v1622
    %v4823 = vunpack.c.l.b16 %v1623
    %v4824 = vunpack.c.h.b16 %v1623
    %v4825 = vunpack.c.l.b16 %v1624
    %v4826 = vunpack.c.h.b16 %v1624
    %v4827 = vunpack.c.l.b16 %v1625
    %v4828 = vunpack.c.h.b16 %v1625
    %v4829 = vunpack.c.l.b16 %v1626
    %v4830 = vunpack.c.h.b16 %v1626
    %v4831 = vunpack.c.l.b16 %v1627
    %v4832 = vunpack.c.h.b16 %v1627
    %v4833 = vunpack.c.l.b16 %v1628
    %v4834 = vunpack.c.h.b16 %v1628
    %v4835 = vunpack.c.l.b16 %v1629
    %v4836 = vunpack.c.h.b16 %v1629
    %v4837 = vunpack.c.l.b16 %v1630
    %v4838 = vunpack.c.h.b16 %v1630
    %v4839 = vunpack.c.l.b16 %v1631
    %v4840 = vunpack.c.h.b16 %v1631
    %v4841 = vunpack.c.l.b16 %v1632
    %v4842 = vunpack.c.h.b16 %v1632
    %v4843 = vunpack.c.l.b16 %v1633
    %v4844 = vunpack.c.h.b16 %v1633
    %v4845 = vunpack.c.l.b16 %v1634
    %v4846 = vunpack.c.h.b16 %v1634
    %v4847 = vunpack.c.l.b16 %v1635
    %v4848 = vunpack.c.h.b16 %v1635
    %v4849 = vunpack.c.l.b16 %v1636
    %v4850 = vunpack.c.h.b16 %v1636
    %v4851 = vunpack.c.l.b16 %v1637
    %v4852 = vunpack.c.h.b16 %v1637
    %v4853 = vunpack.c.l.b16 %v1638
    %v4854 = vunpack.c.h.b16 %v1638
    %v4855 = vunpack.c.l.b16 %v1639
    %v4856 = vunpack.c.h.b16 %v1639
    %v4857 = vunpack.c.l.b16 %v1640
    %v4858 = vunpack.c.h.b16 %v1640
    %v4859 = vunpack.c.l.b16 %v1641
    %v4860 = vunpack.c.h.b16 %v1641
    %v4861 = vunpack.c.l.b16 %v1642
    %v4862 = vunpack.c.h.b16 %v1642
    %v4863 = vunpack.c.l.b16 %v1643
    %v4864 = vunpack.c.h.b16 %v1643
    %v4865 = vunpack.c.l.b16 %v1644
    %v4866 = vunpack.c.h.b16 %v1644
    %v4867 = vunpack.c.l.b16 %v1645
    %v4868 = vunpack.c.h.b16 %v1645
    %v4869 = vunpack.c.l.b16 %v1646
    %v4870 = vunpack.c.h.b16 %v1646
    %v4871 = vunpack.c.l.b16 %v1647
    %v4872 = vunpack.c.h.b16 %v1647
    %v4873 = vunpack.c.l.b16 %v1648
    %v4874 = vunpack.c.h.b16 %v1648
    %v4875 = vunpack.c.l.b16 %v1649
    %v4876 = vunpack.c.h.b16 %v1649
    %v4877 = vunpack.c.l.b16 %v1650
    %v4878 = vunpack.c.h.b16 %v1650
    %v4879 = vunpack.c.l.b16 %v1651
    %v4880 = vunpack.c.h.b16 %v1651
    %v4881 = vunpack.c.l.b16 %v1652
    %v4882 = vunpack.c.h.b16 %v1652
    %v4883 = vunpack.c.l.b16 %v1653
    %v4884 = vunpack.c.h.b16 %v1653
    %v4885 = vunpack.c.l.b16 %v1654
    %v4886 = vunpack.c.h.b16 %v1654
    %v4887 = vunpack.c.l.b16 %v1655
    %v4888 = vunpack.c.h.b16 %v1655
    %v4889 = vunpack.c.l.b16 %v1656
    %v4890 = vunpack.c.h.b16 %v1656
    %v4891 = vunpack.c.l.b16 %v1657
    %v4892 = vunpack.c.h.b16 %v1657
    %v4893 = vunpack.c.l.b16 %v1658
    %v4894 = vunpack.c.h.b16 %v1658
    %v4895 = vunpack.c.l.b16 %v1659
    %v4896 = vunpack.c.h.b16 %v1659
    %v4897 = vunpack.c.l.b16 %v1660
    %v4898 = vunpack.c.h.b16 %v1660
    %v4899 = vunpack.c.l.b16 %v1661
    %v4900 = vunpack.c.h.b16 %v1661
    %v4901 = vunpack.c.l.b16 %v1662
    %v4902 = vunpack.c.h.b16 %v1662
    %v4903 = vunpack.c.l.b16 %v1663
    %v4904 = vunpack.c.h.b16 %v1663
    %v4905 = vunpack.c.l.b16 %v1664
    %v4906 = vunpack.c.h.b16 %v1664
    %v4907 = vunpack.c.l.b16 %v1665
    %v4908 = vunpack.c.h.b16 %v1665
    %v4909 = vunpack.c.l.b16 %v1666
    %v4910 = vunpack.c.h.b16 %v1666
    %v4911 = vunpack.c.l.b16 %v1667
    %v4912 = vunpack.c.h.b16 %v1667
    %v4913 = vunpack.c.l.b16 %v1668
    %v4914 = vunpack.c.h.b16 %v1668
    %v4915 = vunpack.c.l.b16 %v1669
    %v4916 = vunpack.c.h.b16 %v1669
    %v4917 = vunpack.c.l.b16 %v1670
    %v4918 = vunpack.c.h.b16 %v1670
    %v4919 = vunpack.c.l.b16 %v1671
    %v4920 = vunpack.c.h.b16 %v1671
    %v4921 = vunpack.c.l.b16 %v1672
    %v4922 = vunpack.c.h.b16 %v1672
    %v4923 = vunpack.c.l.b16 %v1673
    %v4924 = vunpack.c.h.b16 %v1673
    %v4925 = vunpack.c.l.b16 %v1674
    %v4926 = vunpack.c.h.b16 %v1674
    %v4927 = vunpack.c.l.b16 %v1675
    %v4928 = vunpack.c.h.b16 %v1675
    %v4929 = vunpack.c.l.b16 %v1676
    %v4930 = vunpack.c.h.b16 %v1676
    %v4931 = vunpack.c.l.b16 %v1677
    %v4932 = vunpack.c.h.b16 %v1677
    %v4933 = vunpack.c.l.b16 %v1678
    %v4934 = vunpack.c.h.b16 %v1678
    %v4935 = vunpack.c.l.b16 %v1679
    %v4936 = vunpack.c.h.b16 %v1679
    %v4937 = vunpack.c.l.b16 %v1680
    %v4938 = vunpack.c.h.b16 %v1680
    %v4939 = vunpack.c.l.b16 %v1681
    %v4940 = vunpack.c.h.b16 %v1681
    %v4941 = vunpack.c.l.b16 %v1682
    %v4942 = vunpack.c.h.b16 %v1682
    %v4943 = vunpack.c.l.b16 %v1683
    %v4944 = vunpack.c.h.b16 %v1683
    %v4945 = vunpack.c.l.b16 %v1684
    %v4946 = vunpack.c.h.b16 %v1684
    %v4947 = vunpack.c.l.b16 %v1685
    %v4948 = vunpack.c.h.b16 %v1685
    %v4949 = vunpack.c.l.b16 %v1686
    %v4950 = vunpack.c.h.b16 %v1686
    %v4951 = vunpack.c.l.b16 %v1687
    %v4952 = vunpack.c.h.b16 %v1687
    %v4953 = vunpack.c.l.b16 %v1688
    %v4954 = vunpack.c.h.b16 %v1688
    %v4955 = vunpack.c.l.b16 %v1689
    %v4956 = vunpack.c.h.b16 %v1689
    %v4957 = vunpack.c.l.b16 %v1690
    %v4958 = vunpack.c.h.b16 %v1690
    %v4959 = vunpack.c.l.b16 %v1691
    %v4960 = vunpack.c.h.b16 %v1691
    %v4961 = vunpack.c.l.b16 %v1692
    %v4962 = vunpack.c.h.b16 %v1692
    %v4963 = vunpack.c.l.b16 %v1693
    %v4964 = vunpack.c.h.b16 %v1693
    %v4965 = vunpack.c.l.b16 %v1694
    %v4966 = vunpack.c.h.b16 %v1694
    %v4967 = vunpack.c.l.b16 %v1695
    %v4968 = vunpack.c.h.b16 %v1695
    %v4969 = vunpack.c.l.b16 %v1696
    %v4970 = vunpack.c.h.b16 %v1696
    %v4971 = vunpack.c.l.b16 %v1697
    %v4972 = vunpack.c.h.b16 %v1697
    %v4973 = vunpack.c.l.b16 %v1698
    %v4974 = vunpack.c.h.b16 %v1698
    %v4975 = vunpack.c.l.b16 %v1699
    %v4976 = vunpack.c.h.b16 %v1699
    %v4977 = vunpack.c.l.b16 %v1700
    %v4978 = vunpack.c.h.b16 %v1700
    %v4979 = vunpack.c.l.b16 %v1701
    %v4980 = vunpack.c.h.b16 %v1701
    %v4981 = vunpack.c.l.b16 %v1702
    %v4982 = vunpack.c.h.b16 %v1702
    %v4983 = vunpack.c.l.b16 %v1703
    %v4984 = vunpack.c.h.b16 %v1703
    %v4985 = vunpack.c.l.b16 %v1704
    %v4986 = vunpack.c.h.b16 %v1704
    %v4987 = vunpack.c.l.b16 %v1705
    %v4988 = vunpack.c.h.b16 %v1705
    %v4989 = vpack.c.b16 %v3973, %v3965
    %v4990 = vpack.c.b16 %v3974, %v3966
    %v4991 = vpack.c.b16 %v3975, %v3967
    %v4992 = vpack.c.b16 %v3976, %v3968
    %v4993 = vpack.c.b16 %v3977, %v3969
    %v4994 = vpack.c.b16 %v3978, %v3970
    %v4995 = vpack.c.b16 %v3979, %v3971
    %v4996 = vpack.c.b16 %v3980, %v3972
    %v4997 = vpack.c.b16 %v3989, %v3981
    %v4998 = vpack.c.b16 %v3990, %v3982
    %v4999 = vpack.c.b16 %v3991, %v3983
    %v5000 = vpack.c.b16 %v3992, %v3984
    %v5001 = vpack.c.b16 %v3993, %v3985
    %v5002 = vpack.c.b16 %v3994, %v3986
    %v5003 = vpack.c.b16 %v3995, %v3987
    %v5004 = vpack.c.b16 %v3996, %v3988
    %v5005 = vpack.c.b16 %v4005, %v3997
    %v5006 = vpack.c.b16 %v4006, %v3998
    %v5007 = vpack.c.b16 %v4007, %v3999
    %v5008 = vpack.c.b16 %v4008, %v4000
    %v5009 = vpack.c.b16 %v4009, %v4001
    %v5010 = vpack.c.b16 %v4010, %v4002
    %v5011 = vpack.c.b16 %v4011, %v4003
    %v5012 = vpack.c.b16 %v4012, %v4004
    %v5013 = vpack.c.b16 %v4021, %v4013
    %v5014 = vpack.c.b16 %v4022, %v4014
    %v5015 = vpack.c.b16 %v4023, %v4015
    %v5016 = vpack.c.b16 %v4024, %v4016
    %v5017 = vpack.c.b16 %v4025, %v4017
    %v5018 = vpack.c.b16 %v4026, %v4018
    %v5019 = vpack.c.b16 %v4027, %v4019
    %v5020 = vpack.c.b16 %v4028, %v4020
    %v5021 = vpack.c.b16 %v4037, %v4029
    %v5022 = vpack.c.b16 %v4038, %v4030
    %v5023 = vpack.c.b16 %v4039, %v4031
    %v5024 = vpack.c.b16 %v4040, %v4032
    %v5025 = vpack.c.b16 %v4041, %v4033
    %v5026 = vpack.c.b16 %v4042, %v4034
    %v5027 = vpack.c.b16 %v4043, %v4035
    %v5028 = vpack.c.b16 %v4044, %v4036
    %v5029 = vpack.c.b16 %v4053, %v4045
    %v5030 = vpack.c.b16 %v4054, %v4046
    %v5031 = vpack.c.b16 %v4055, %v4047
    %v5032 = vpack.c.b16 %v4056, %v4048
    %v5033 = vpack.c.b16 %v4057, %v4049
    %v5034 = vpack.c.b16 %v4058, %v4050
    %v5035 = vpack.c.b16 %v4059, %v4051
    %v5036 = vpack.c.b16 %v4060, %v4052
    %v5037 = vpack.c.b16 %v4069, %v4061
    %v5038 = vpack.c.b16 %v4070, %v4062
    %v5039 = vpack.c.b16 %v4071, %v4063
    %v5040 = vpack.c.b16 %v4072, %v4064
    %v5041 = vpack.c.b16 %v4073, %v4065
    %v5042 = vpack.c.b16 %v4074, %v4066
    %v5043 = vpack.c.b16 %v4075, %v4067
    %v5044 = vpack.c.b16 %v4076, %v4068
    %v5045 = vpack.c.b16 %v4085, %v4077
    %v5046 = vpack.c.b16 %v4086, %v4078
    %v5047 = vpack.c.b16 %v4087, %v4079
    %v5048 = vpack.c.b16 %v4088, %v4080
    %v5049 = vpack.c.b16 %v4089, %v4081
    %v5050 = vpack.c.b16 %v4090, %v4082
    %v5051 = vpack.c.b16 %v4091, %v4083
    %v5052 = vpack.c.b16 %v4092, %v4084
    %v5053 = vpack.c.b16 %v4101, %v4093
    %v5054 = vpack.c.b16 %v4102, %v4094
    %v5055 = vpack.c.b16 %v4103, %v4095
    %v5056 = vpack.c.b16 %v4104, %v4096
    %v5057 = vpack.c.b16 %v4105, %v4097
    %v5058 = vpack.c.b16 %v4106, %v4098
    %v5059 = vpack.c.b16 %v4107, %v4099
    %v5060 = vpack.c.b16 %v4108, %v4100
    %v5061 = vpack.c.b16 %v4117, %v4109
    %v5062 = vpack.c.b16 %v4118, %v4110
    %v5063 = vpack.c.b16 %v4119, %v4111
    %v5064 = vpack.c.b16 %v4120, %v4112
    %v5065 = vpack.c.b16 %v4121, %v4113
    %v5066 = vpack.c.b16 %v4122, %v4114
    %v5067 = vpack.c.b16 %v4123, %v4115
    %v5068 = vpack.c.b16 %v4124, %v4116
    %v5069 = vpack.c.b16 %v4133, %v4125
    %v5070 = vpack.c.b16 %v4134, %v4126
    %v5071 = vpack.c.b16 %v4135, %v4127
    %v5072 = vpack.c.b16 %v4136, %v4128
    %v5073 = vpack.c.b16 %v4137, %v4129
    %v5074 = vpack.c.b16 %v4138, %v4130
    %v5075 = vpack.c.b16 %v4139, %v4131
    %v5076 = vpack.c.b16 %v4140, %v4132
    %v5077 = vpack.c.b16 %v4149, %v4141
    %v5078 = vpack.c.b16 %v4150, %v4142
    %v5079 = vpack.c.b16 %v4151, %v4143
    %v5080 = vpack.c.b16 %v4152, %v4144
    %v5081 = vpack.c.b16 %v4153, %v4145
    %v5082 = vpack.c.b16 %v4154, %v4146
    %v5083 = vpack.c.b16 %v4155, %v4147
    %v5084 = vpack.c.b16 %v4156, %v4148
    %v5085 = vpack.c.b16 %v4165, %v4157
    %v5086 = vpack.c.b16 %v4166, %v4158
    %v5087 = vpack.c.b16 %v4167, %v4159
    %v5088 = vpack.c.b16 %v4168, %v4160
    %v5089 = vpack.c.b16 %v4169, %v4161
    %v5090 = vpack.c.b16 %v4170, %v4162
    %v5091 = vpack.c.b16 %v4171, %v4163
    %v5092 = vpack.c.b16 %v4172, %v4164
    %v5093 = vpack.c.b16 %v4181, %v4173
    %v5094 = vpack.c.b16 %v4182, %v4174
    %v5095 = vpack.c.b16 %v4183, %v4175
    %v5096 = vpack.c.b16 %v4184, %v4176
    %v5097 = vpack.c.b16 %v4185, %v4177
    %v5098 = vpack.c.b16 %v4186, %v4178
    %v5099 = vpack.c.b16 %v4187, %v4179
    %v5100 = vpack.c.b16 %v4188, %v4180
    %v5101 = vpack.c.b16 %v4197, %v4189
    %v5102 = vpack.c.b16 %v4198, %v4190
    %v5103 = vpack.c.b16 %v4199, %v4191
    %v5104 = vpack.c.b16 %v4200, %v4192
    %v5105 = vpack.c.b16 %v4201, %v4193
    %v5106 = vpack.c.b16 %v4202, %v4194
    %v5107 = vpack.c.b16 %v4203, %v4195
    %v5108 = vpack.c.b16 %v4204, %v4196
    %v5109 = vpack.c.b16 %v4213, %v4205
    %v5110 = vpack.c.b16 %v4214, %v4206
    %v5111 = vpack.c.b16 %v4215, %v4207
    %v5112 = vpack.c.b16 %v4216, %v4208
    %v5113 = vpack.c.b16 %v4217, %v4209
    %v5114 = vpack.c.b16 %v4218, %v4210
    %v5115 = vpack.c.b16 %v4219, %v4211
    %v5116 = vpack.c.b16 %v4220, %v4212
    %v5117 = vpack.c.b16 %v4229, %v4221
    %v5118 = vpack.c.b16 %v4230, %v4222
    %v5119 = vpack.c.b16 %v4231, %v4223
    %v5120 = vpack.c.b16 %v4232, %v4224
    %v5121 = vpack.c.b16 %v4233, %v4225
    %v5122 = vpack.c.b16 %v4234, %v4226
    %v5123 = vpack.c.b16 %v4235, %v4227
    %v5124 = vpack.c.b16 %v4236, %v4228
    %v5125 = vpack.c.b16 %v4245, %v4237
    %v5126 = vpack.c.b16 %v4246, %v4238
    %v5127 = vpack.c.b16 %v4247, %v4239
    %v5128 = vpack.c.b16 %v4248, %v4240
    %v5129 = vpack.c.b16 %v4249, %v4241
    %v5130 = vpack.c.b16 %v4250, %v4242
    %v5131 = vpack.c.b16 %v4251, %v4243
    %v5132 = vpack.c.b16 %v4252, %v4244
    %v5133 = vpack.c.b16 %v4261, %v4253
    %v5134 = vpack.c.b16 %v4262, %v4254
    %v5135 = vpack.c.b16 %v4263, %v4255
    %v5136 = vpack.c.b16 %v4264, %v4256
    %v5137 = vpack.c.b16 %v4265, %v4257
    %v5138 = vpack.c.b16 %v4266, %v4258
    %v5139 = vpack.c.b16 %v4267, %v4259
    %v5140 = vpack.c.b16 %v4268, %v4260
    %v5141 = vpack.c.b16 %v4277, %v4269
    %v5142 = vpack.c.b16 %v4278, %v4270
    %v5143 = vpack.c.b16 %v4279, %v4271
    %v5144 = vpack.c.b16 %v4280, %v4272
    %v5145 = vpack.c.b16 %v4281, %v4273
    %v5146 = vpack.c.b16 %v4282, %v4274
    %v5147 = vpack.c.b16 %v4283, %v4275
    %v5148 = vpack.c.b16 %v4284, %v4276
    %v5149 = vpack.c.b16 %v4293, %v4285
    %v5150 = vpack.c.b16 %v4294, %v4286
    %v5151 = vpack.c.b16 %v4295, %v4287
    %v5152 = vpack.c.b16 %v4296, %v4288
    %v5153 = vpack.c.b16 %v4297, %v4289
    %v5154 = vpack.c.b16 %v4298, %v4290
    %v5155 = vpack.c.b16 %v4299, %v4291
    %v5156 = vpack.c.b16 %v4300, %v4292
    %v5157 = vpack.c.b16 %v4309, %v4301
    %v5158 = vpack.c.b16 %v4310, %v4302
    %v5159 = vpack.c.b16 %v4311, %v4303
    %v5160 = vpack.c.b16 %v4312, %v4304
    %v5161 = vpack.c.b16 %v4313, %v4305
    %v5162 = vpack.c.b16 %v4314, %v4306
    %v5163 = vpack.c.b16 %v4315, %v4307
    %v5164 = vpack.c.b16 %v4316, %v4308
    %v5165 = vpack.c.b16 %v4325, %v4317
    %v5166 = vpack.c.b16 %v4326, %v4318
    %v5167 = vpack.c.b16 %v4327, %v4319
    %v5168 = vpack.c.b16 %v4328, %v4320
    %v5169 = vpack.c.b16 %v4329, %v4321
    %v5170 = vpack.c.b16 %v4330, %v4322
    %v5171 = vpack.c.b16 %v4331, %v4323
    %v5172 = vpack.c.b16 %v4332, %v4324
    %v5173 = vpack.c.b16 %v4341, %v4333
    %v5174 = vpack.c.b16 %v4342, %v4334
    %v5175 = vpack.c.b16 %v4343, %v4335
    %v5176 = vpack.c.b16 %v4344, %v4336
    %v5177 = vpack.c.b16 %v4345, %v4337
    %v5178 = vpack.c.b16 %v4346, %v4338
    %v5179 = vpack.c.b16 %v4347, %v4339
    %v5180 = vpack.c.b16 %v4348, %v4340
    %v5181 = vpack.c.b16 %v4357, %v4349
    %v5182 = vpack.c.b16 %v4358, %v4350
    %v5183 = vpack.c.b16 %v4359, %v4351
    %v5184 = vpack.c.b16 %v4360, %v4352
    %v5185 = vpack.c.b16 %v4361, %v4353
    %v5186 = vpack.c.b16 %v4362, %v4354
    %v5187 = vpack.c.b16 %v4363, %v4355
    %v5188 = vpack.c.b16 %v4364, %v4356
    %v5189 = vpack.c.b16 %v4373, %v4365
    %v5190 = vpack.c.b16 %v4374, %v4366
    %v5191 = vpack.c.b16 %v4375, %v4367
    %v5192 = vpack.c.b16 %v4376, %v4368
    %v5193 = vpack.c.b16 %v4377, %v4369
    %v5194 = vpack.c.b16 %v4378, %v4370
    %v5195 = vpack.c.b16 %v4379, %v4371
    %v5196 = vpack.c.b16 %v4380, %v4372
    %v5197 = vpack.c.b16 %v4389, %v4381
    %v5198 = vpack.c.b16 %v4390, %v4382
    %v5199 = vpack.c.b16 %v4391, %v4383
    %v5200 = vpack.c.b16 %v4392, %v4384
    %v5201 = vpack.c.b16 %v4393, %v4385
    %v5202 = vpack.c.b16 %v4394, %v4386
    %v5203 = vpack.c.b16 %v4395, %v4387
    %v5204 = vpack.c.b16 %v4396, %v4388
    %v5205 = vpack.c.b16 %v4405, %v4397
    %v5206 = vpack.c.b16 %v4406, %v4398
    %v5207 = vpack.c.b16 %v4407, %v4399
    %v5208 = vpack.c.b16 %v4408, %v4400
    %v5209 = vpack.c.b16 %v4409, %v4401
    %v5210 = vpack.c.b16 %v4410, %v4402
    %v5211 = vpack.c.b16 %v4411, %v4403
    %v5212 = vpack.c.b16 %v4412, %v4404
    %v5213 = vpack.c.b16 %v4421, %v4413
    %v5214 = vpack.c.b16 %v4422, %v4414
    %v5215 = vpack.c.b16 %v4423, %v4415
    %v5216 = vpack.c.b16 %v4424, %v4416
    %v5217 = vpack.c.b16 %v4425, %v4417
    %v5218 = vpack.c.b16 %v4426, %v4418
    %v5219 = vpack.c.b16 %v4427, %v4419
    %v5220 = vpack.c.b16 %v4428, %v4420
    %v5221 = vpack.c.b16 %v4437, %v4429
    %v5222 = vpack.c.b16 %v4438, %v4430
    %v5223 = vpack.c.b16 %v4439, %v4431
    %v5224 = vpack.c.b16 %v4440, %v4432
    %v5225 = vpack.c.b16 %v4441, %v4433
    %v5226 = vpack.c.b16 %v4442, %v4434
    %v5227 = vpack.c.b16 %v4443, %v4435
    %v5228 = vpack.c.b16 %v4444, %v4436
    %v5229 = vpack.c.b16 %v4453, %v4445
    %v5230 = vpack.c.b16 %v4454, %v4446
    %v5231 = vpack.c.b16 %v4455, %v4447
    %v5232 = vpack.c.b16 %v4456, %v4448
    %v5233 = vpack.c.b16 %v4457, %v4449
    %v5234 = vpack.c.b16 %v4458, %v4450
    %v5235 = vpack.c.b16 %v4459, %v4451
    %v5236 = vpack.c.b16 %v4460, %v4452
    %v5237 = vpack.c.b16 %v4469, %v4461
    %v5238 = vpack.c.b16 %v4470, %v4462
    %v5239 = vpack.c.b16 %v4471, %v4463
    %v5240 = vpack.c.b16 %v4472, %v4464
    %v5241 = vpack.c.b16 %v4473, %v4465
    %v5242 = vpack.c.b16 %v4474, %v4466
    %v5243 = vpack.c.b16 %v4475, %v4467
    %v5244 = vpack.c.b16 %v4476, %v4468
    %v5245 = vpack.c.b16 %v4485, %v4477
    %v5246 = vpack.c.b16 %v4486, %v4478
    %v5247 = vpack.c.b16 %v4487, %v4479
    %v5248 = vpack.c.b16 %v4488, %v4480
    %v5249 = vpack.c.b16 %v4489, %v4481
    %v5250 = vpack.c.b16 %v4490, %v4482
    %v5251 = vpack.c.b16 %v4491, %v4483
    %v5252 = vpack.c.b16 %v4492, %v4484
    %v5253 = vpack.c.b16 %v4501, %v4493
    %v5254 = vpack.c.b16 %v4502, %v4494
    %v5255 = vpack.c.b16 %v4503, %v4495
    %v5256 = vpack.c.b16 %v4504, %v4496
    %v5257 = vpack.c.b16 %v4505, %v4497
    %v5258 = vpack.c.b16 %v4506, %v4498
    %v5259 = vpack.c.b16 %v4507, %v4499
    %v5260 = vpack.c.b16 %v4508, %v4500
    %v5261 = vpack.c.b16 %v4517, %v4509
    %v5262 = vpack.c.b16 %v4518, %v4510
    %v5263 = vpack.c.b16 %v4519, %v4511
    %v5264 = vpack.c.b16 %v4520, %v4512
    %v5265 = vpack.c.b16 %v4521, %v4513
    %v5266 = vpack.c.b16 %v4522, %v4514
    %v5267 = vpack.c.b16 %v4523, %v4515
    %v5268 = vpack.c.b16 %v4524, %v4516
    %v5269 = vpack.c.b16 %v4533, %v4525
    %v5270 = vpack.c.b16 %v4534, %v4526
    %v5271 = vpack.c.b16 %v4535, %v4527
    %v5272 = vpack.c.b16 %v4536, %v4528
    %v5273 = vpack.c.b16 %v4537, %v4529
    %v5274 = vpack.c.b16 %v4538, %v4530
    %v5275 = vpack.c.b16 %v4539, %v4531
    %v5276 = vpack.c.b16 %v4540, %v4532
    %v5277 = vpack.c.b16 %v4549, %v4541
    %v5278 = vpack.c.b16 %v4550, %v4542
    %v5279 = vpack.c.b16 %v4551, %v4543
    %v5280 = vpack.c.b16 %v4552, %v4544
    %v5281 = vpack.c.b16 %v4553, %v4545
    %v5282 = vpack.c.b16 %v4554, %v4546
    %v5283 = vpack.c.b16 %v4555, %v4547
    %v5284 = vpack.c.b16 %v4556, %v4548
    %v5285 = vpack.c.b16 %v4565, %v4557
    %v5286 = vpack.c.b16 %v4566, %v4558
    %v5287 = vpack.c.b16 %v4567, %v4559
    %v5288 = vpack.c.b16 %v4568, %v4560
    %v5289 = vpack.c.b16 %v4569, %v4561
    %v5290 = vpack.c.b16 %v4570, %v4562
    %v5291 = vpack.c.b16 %v4571, %v4563
    %v5292 = vpack.c.b16 %v4572, %v4564
    %v5293 = vpack.c.b16 %v4581, %v4573
    %v5294 = vpack.c.b16 %v4582, %v4574
    %v5295 = vpack.c.b16 %v4583, %v4575
    %v5296 = vpack.c.b16 %v4584, %v4576
    %v5297 = vpack.c.b16 %v4585, %v4577
    %v5298 = vpack.c.b16 %v4586, %v4578
    %v5299 = vpack.c.b16 %v4587, %v4579
    %v5300 = vpack.c.b16 %v4588, %v4580
    %v5301 = vpack.c.b16 %v4597, %v4589
    %v5302 = vpack.c.b16 %v4598, %v4590
    %v5303 = vpack.c.b16 %v4599, %v4591
    %v5304 = vpack.c.b16 %v4600, %v4592
    %v5305 = vpack.c.b16 %v4601, %v4593
    %v5306 = vpack.c.b16 %v4602, %v4594
    %v5307 = vpack.c.b16 %v4603, %v4595
    %v5308 = vpack.c.b16 %v4604, %v4596
    %v5309 = vpack.c.b16 %v4613, %v4605
    %v5310 = vpack.c.b16 %v4614, %v4606
    %v5311 = vpack.c.b16 %v4615, %v4607
    %v5312 = vpack.c.b16 %v4616, %v4608
    %v5313 = vpack.c.b16 %v4617, %v4609
    %v5314 = vpack.c.b16 %v4618, %v4610
    %v5315 = vpack.c.b16 %v4619, %v4611
    %v5316 = vpack.c.b16 %v4620, %v4612
    %v5317 = vpack.c.b16 %v4629, %v4621
    %v5318 = vpack.c.b16 %v4630, %v4622
    %v5319 = vpack.c.b16 %v4631, %v4623
    %v5320 = vpack.c.b16 %v4632, %v4624
    %v5321 = vpack.c.b16 %v4633, %v4625
    %v5322 = vpack.c.b16 %v4634, %v4626
    %v5323 = vpack.c.b16 %v4635, %v4627
    %v5324 = vpack.c.b16 %v4636, %v4628
    %v5325 = vpack.c.b16 %v4645, %v4637
    %v5326 = vpack.c.b16 %v4646, %v4638
    %v5327 = vpack.c.b16 %v4647, %v4639
    %v5328 = vpack.c.b16 %v4648, %v4640
    %v5329 = vpack.c.b16 %v4649, %v4641
    %v5330 = vpack.c.b16 %v4650, %v4642
    %v5331 = vpack.c.b16 %v4651, %v4643
    %v5332 = vpack.c.b16 %v4652, %v4644
    %v5333 = vpack.c.b16 %v4661, %v4653
    %v5334 = vpack.c.b16 %v4662, %v4654
    %v5335 = vpack.c.b16 %v4663, %v4655
    %v5336 = vpack.c.b16 %v4664, %v4656
    %v5337 = vpack.c.b16 %v4665, %v4657
    %v5338 = vpack.c.b16 %v4666, %v4658
    %v5339 = vpack.c.b16 %v4667, %v4659
    %v5340 = vpack.c.b16 %v4668, %v4660
    %v5341 = vpack.c.b16 %v4677, %v4669
    %v5342 = vpack.c.b16 %v4678, %v4670
    %v5343 = vpack.c.b16 %v4679, %v4671
    %v5344 = vpack.c.b16 %v4680, %v4672
    %v5345 = vpack.c.b16 %v4681, %v4673
    %v5346 = vpack.c.b16 %v4682, %v4674
    %v5347 = vpack.c.b16 %v4683, %v4675
    %v5348 = vpack.c.b16 %v4684, %v4676
    %v5349 = vpack.c.b16 %v4693, %v4685
    %v5350 = vpack.c.b16 %v4694, %v4686
    %v5351 = vpack.c.b16 %v4695, %v4687
    %v5352 = vpack.c.b16 %v4696, %v4688
    %v5353 = vpack.c.b16 %v4697, %v4689
    %v5354 = vpack.c.b16 %v4698, %v4690
    %v5355 = vpack.c.b16 %v4699, %v4691
    %v5356 = vpack.c.b16 %v4700, %v4692
    %v5357 = vpack.c.b16 %v4709, %v4701
    %v5358 = vpack.c.b16 %v4710, %v4702
    %v5359 = vpack.c.b16 %v4711, %v4703
    %v5360 = vpack.c.b16 %v4712, %v4704
    %v5361 = vpack.c.b16 %v4713, %v4705
    %v5362 = vpack.c.b16 %v4714, %v4706
    %v5363 = vpack.c.b16 %v4715, %v4707
    %v5364 = vpack.c.b16 %v4716, %v4708
    %v5365 = vpack.c.b16 %v4725, %v4717
    %v5366 = vpack.c.b16 %v4726, %v4718
    %v5367 = vpack.c.b16 %v4727, %v4719
    %v5368 = vpack.c.b16 %v4728, %v4720
    %v5369 = vpack.c.b16 %v4729, %v4721
    %v5370 = vpack.c.b16 %v4730, %v4722
    %v5371 = vpack.c.b16 %v4731, %v4723
    %v5372 = vpack.c.b16 %v4732, %v4724
    %v5373 = vpack.c.b16 %v4741, %v4733
    %v5374 = vpack.c.b16 %v4742, %v4734
    %v5375 = vpack.c.b16 %v4743, %v4735
    %v5376 = vpack.c.b16 %v4744, %v4736
    %v5377 = vpack.c.b16 %v4745, %v4737
    %v5378 = vpack.c.b16 %v4746, %v4738
    %v5379 = vpack.c.b16 %v4747, %v4739
    %v5380 = vpack.c.b16 %v4748, %v4740
    %v5381 = vpack.c.b16 %v4757, %v4749
    %v5382 = vpack.c.b16 %v4758, %v4750
    %v5383 = vpack.c.b16 %v4759, %v4751
    %v5384 = vpack.c.b16 %v4760, %v4752
    %v5385 = vpack.c.b16 %v4761, %v4753
    %v5386 = vpack.c.b16 %v4762, %v4754
    %v5387 = vpack.c.b16 %v4763, %v4755
    %v5388 = vpack.c.b16 %v4764, %v4756
    %v5389 = vpack.c.b16 %v4773, %v4765
    %v5390 = vpack.c.b16 %v4774, %v4766
    %v5391 = vpack.c.b16 %v4775, %v4767
    %v5392 = vpack.c.b16 %v4776, %v4768
    %v5393 = vpack.c.b16 %v4777, %v4769
    %v5394 = vpack.c.b16 %v4778, %v4770
    %v5395 = vpack.c.b16 %v4779, %v4771
    %v5396 = vpack.c.b16 %v4780, %v4772
    %v5397 = vpack.c.b16 %v4789, %v4781
    %v5398 = vpack.c.b16 %v4790, %v4782
    %v5399 = vpack.c.b16 %v4791, %v4783
    %v5400 = vpack.c.b16 %v4792, %v4784
    %v5401 = vpack.c.b16 %v4793, %v4785
    %v5402 = vpack.c.b16 %v4794, %v4786
    %v5403 = vpack.c.b16 %v4795, %v4787
    %v5404 = vpack.c.b16 %v4796, %v4788
    %v5405 = vpack.c.b16 %v4805, %v4797
    %v5406 = vpack.c.b16 %v4806, %v4798
    %v5407 = vpack.c.b16 %v4807, %v4799
    %v5408 = vpack.c.b16 %v4808, %v4800
    %v5409 = vpack.c.b16 %v4809, %v4801
    %v5410 = vpack.c.b16 %v4810, %v4802
    %v5411 = vpack.c.b16 %v4811, %v4803
    %v5412 = vpack.c.b16 %v4812, %v4804
    %v5413 = vpack.c.b16 %v4821, %v4813
    %v5414 = vpack.c.b16 %v4822, %v4814
    %v5415 = vpack.c.b16 %v4823, %v4815
    %v5416 = vpack.c.b16 %v4824, %v4816
    %v5417 = vpack.c.b16 %v4825, %v4817
    %v5418 = vpack.c.b16 %v4826, %v4818
    %v5419 = vpack.c.b16 %v4827, %v4819
    %v5420 = vpack.c.b16 %v4828, %v4820
    %v5421 = vpack.c.b16 %v4837, %v4829
    %v5422 = vpack.c.b16 %v4838, %v4830
    %v5423 = vpack.c.b16 %v4839, %v4831
    %v5424 = vpack.c.b16 %v4840, %v4832
    %v5425 = vpack.c.b16 %v4841, %v4833
    %v5426 = vpack.c.b16 %v4842, %v4834
    %v5427 = vpack.c.b16 %v4843, %v4835
    %v5428 = vpack.c.b16 %v4844, %v4836
    %v5429 = vpack.c.b16 %v4853, %v4845
    %v5430 = vpack.c.b16 %v4854, %v4846
    %v5431 = vpack.c.b16 %v4855, %v4847
    %v5432 = vpack.c.b16 %v4856, %v4848
    %v5433 = vpack.c.b16 %v4857, %v4849
    %v5434 = vpack.c.b16 %v4858, %v4850
    %v5435 = vpack.c.b16 %v4859, %v4851
    %v5436 = vpack.c.b16 %v4860, %v4852
    %v5437 = vpack.c.b16 %v4869, %v4861
    %v5438 = vpack.c.b16 %v4870, %v4862
    %v5439 = vpack.c.b16 %v4871, %v4863
    %v5440 = vpack.c.b16 %v4872, %v4864
    %v5441 = vpack.c.b16 %v4873, %v4865
    %v5442 = vpack.c.b16 %v4874, %v4866
    %v5443 = vpack.c.b16 %v4875, %v4867
    %v5444 = vpack.c.b16 %v4876, %v4868
    %v5445 = vpack.c.b16 %v4885, %v4877
    %v5446 = vpack.c.b16 %v4886, %v4878
    %v5447 = vpack.c.b16 %v4887, %v4879
    %v5448 = vpack.c.b16 %v4888, %v4880
    %v5449 = vpack.c.b16 %v4889, %v4881
    %v5450 = vpack.c.b16 %v4890, %v4882
    %v5451 = vpack.c.b16 %v4891, %v4883
    %v5452 = vpack.c.b16 %v4892, %v4884
    %v5453 = vpack.c.b16 %v4901, %v4893
    %v5454 = vpack.c.b16 %v4902, %v4894
    %v5455 = vpack.c.b16 %v4903, %v4895
    %v5456 = vpack.c.b16 %v4904, %v4896
    %v5457 = vpack.c.b16 %v4905, %v4897
    %v5458 = vpack.c.b16 %v4906, %v4898
    %v5459 = vpack.c.b16 %v4907, %v4899
    %v5460 = vpack.c.b16 %v4908, %v4900
    %v5461 = vpack.c.b16 %v4917, %v4909
    %v5462 = vpack.c.b16 %v4918, %v4910
    %v5463 = vpack.c.b16 %v4919, %v4911
    %v5464 = vpack.c.b16 %v4920, %v4912
    %v5465 = vpack.c.b16 %v4921, %v4913
    %v5466 = vpack.c.b16 %v4922, %v4914
    %v5467 = vpack.c.b16 %v4923, %v4915
    %v5468 = vpack.c.b16 %v4924, %v4916
    %v5469 = vpack.c.b16 %v4933, %v4925
    %v5470 = vpack.c.b16 %v4934, %v4926
    %v5471 = vpack.c.b16 %v4935, %v4927
    %v5472 = vpack.c.b16 %v4936, %v4928
    %v5473 = vpack.c.b16 %v4937, %v4929
    %v5474 = vpack.c.b16 %v4938, %v4930
    %v5475 = vpack.c.b16 %v4939, %v4931
    %v5476 = vpack.c.b16 %v4940, %v4932
    %v5477 = vpack.c.b16 %v4949, %v4941
    %v5478 = vpack.c.b16 %v4950, %v4942
    %v5479 = vpack.c.b16 %v4951, %v4943
    %v5480 = vpack.c.b16 %v4952, %v4944
    %v5481 = vpack.c.b16 %v4953, %v4945
    %v5482 = vpack.c.b16 %v4954, %v4946
    %v5483 = vpack.c.b16 %v4955, %v4947
    %v5484 = vpack.c.b16 %v4956, %v4948
    %v5485 = vpack.c.b16 %v4965, %v4957
    %v5486 = vpack.c.b16 %v4966, %v4958
    %v5487 = vpack.c.b16 %v4967, %v4959
    %v5488 = vpack.c.b16 %v4968, %v4960
    %v5489 = vpack.c.b16 %v4969, %v4961
    %v5490 = vpack.c.b16 %v4970, %v4962
    %v5491 = vpack.c.b16 %v4971, %v4963
    %v5492 = vpack.c.b16 %v4972, %v4964
    %v5493 = vpack.c.b16 %v4981, %v4973
    %v5494 = vpack.c.b16 %v4982, %v4974
    %v5495 = vpack.c.b16 %v4983, %v4975
    %v5496 = vpack.c.b16 %v4984, %v4976
    %v5497 = vpack.c.b16 %v4985, %v4977
    %v5498 = vpack.c.b16 %v4986, %v4978
    %v5499 = vpack.c.b16 %v4987, %v4979
    %v5500 = vpack.c.b16 %v4988, %v4980
    %6013 = vmatprep.subr.bf16.mxu0 %v5046
    %6014 = vmatpush1.bf16.msra.mxu0 %v5045
    %6015 = vmatprep.subr.bf16.mxu0 %v5038
    %6016 = vmatpush1.bf16.msra.mxu0 %v5037
    %6017 = vmatprep.subr.bf16.mxu0 %v5030
    %6018 = vmatpush1.bf16.msra.mxu0 %v5029
    %6019 = vmatprep.subr.bf16.mxu0 %v5022
    %6020 = vmatpush1.bf16.msra.mxu0 %v5021
    %6021 = vmatprep.subr.bf16.mxu0 %v5014
    %6022 = vmatpush1.bf16.msra.mxu0 %v5013
    %6023 = vmatprep.subr.bf16.mxu0 %v5006
    %6024 = vmatpush1.bf16.msra.mxu0 %v5005
    %6025 = vmatprep.subr.bf16.mxu0 %v4998
    %6026 = vmatpush1.bf16.msra.mxu0 %v4997
    %6027 = vmatprep.subr.bf16.mxu0 %v4990
    %6028 = vmatpush1.bf16.msra.mxu0 %v4989
    %6029 = vmatprep.subr.bf16.mxu0 %v5110
    %6030 = vmatpush2.bf16.msra.mxu0 %v5109
    %6031 = vmatprep.subr.bf16.mxu0 %v5102
    %6032 = vmatpush2.bf16.msra.mxu0 %v5101
    %6033 = vmatprep.subr.bf16.mxu0 %v5094
    %6034 = vmatpush2.bf16.msra.mxu0 %v5093
    %6035 = vmatprep.subr.bf16.mxu0 %v5086
    %6036 = vmatpush2.bf16.msra.mxu0 %v5085
    %6037 = vmatprep.subr.bf16.mxu0 %v5078
    %6038 = vmatpush2.bf16.msra.mxu0 %v5077
    %6039 = vmatprep.subr.bf16.mxu0 %v5070
    %6040 = vmatpush2.bf16.msra.mxu0 %v5069
    %6041 = vmatprep.subr.bf16.mxu0 %v5062
    %6042 = vmatpush2.bf16.msra.mxu0 %v5061
    %6043 = vmatprep.subr.bf16.mxu0 %v5054
    %6044 = vmatpush2.bf16.msra.mxu0 %v5053
    %6045 = vmatprep.mubr.bf16.mxu0 %v3438
    %6046 = vmatmul.mubr.bf16.gmra.mxu0 %v3437
    %v6047 = vpop.f32.mrf.mxu0
    %v6048 = vadd.f32 %v1711, %v6047
    %v6049 = vpop.f32.mrf.mxu0
    %v6050 = vadd.f32 %v1715, %v6049
    %v6051 = vpop.f32.mrf.mxu0
    %v6052 = vpop.f32.mrf.mxu0
    %6053 = vdwg.mxu0
    %6054 = vmatprep.subr.bf16.mxu0 %v5174
    %6055 = vmatpush1.bf16.msra.mxu0 %v5173
    %6056 = vmatprep.subr.bf16.mxu0 %v5166
    %6057 = vmatpush1.bf16.msra.mxu0 %v5165
    %6058 = vmatprep.subr.bf16.mxu0 %v5158
    %6059 = vmatpush1.bf16.msra.mxu0 %v5157
    %6060 = vmatprep.subr.bf16.mxu0 %v5150
    %6061 = vmatpush1.bf16.msra.mxu0 %v5149
    %6062 = vmatprep.subr.bf16.mxu0 %v5142
    %6063 = vmatpush1.bf16.msra.mxu0 %v5141
    %6064 = vmatprep.subr.bf16.mxu0 %v5134
    %6065 = vmatpush1.bf16.msra.mxu0 %v5133
    %6066 = vmatprep.subr.bf16.mxu0 %v5126
    %6067 = vmatpush1.bf16.msra.mxu0 %v5125
    %6068 = vmatprep.subr.bf16.mxu0 %v5118
    %6069 = vmatpush1.bf16.msra.mxu0 %v5117
    %6070 = vmatprep.subr.bf16.mxu0 %v5238
    %6071 = vmatpush2.bf16.msra.mxu0 %v5237
    %6072 = vmatprep.subr.bf16.mxu0 %v5230
    %6073 = vmatpush2.bf16.msra.mxu0 %v5229
    %6074 = vmatprep.subr.bf16.mxu0 %v5222
    %6075 = vmatpush2.bf16.msra.mxu0 %v5221
    %6076 = vmatprep.subr.bf16.mxu0 %v5214
    %6077 = vmatpush2.bf16.msra.mxu0 %v5213
    %6078 = vmatprep.subr.bf16.mxu0 %v5206
    %6079 = vmatpush2.bf16.msra.mxu0 %v5205
    %6080 = vmatprep.subr.bf16.mxu0 %v5198
    %6081 = vmatpush2.bf16.msra.mxu0 %v5197
    %6082 = vmatprep.subr.bf16.mxu0 %v5190
    %6083 = vmatpush2.bf16.msra.mxu0 %v5189
    %6084 = vmatprep.subr.bf16.mxu0 %v5182
    %6085 = vmatpush2.bf16.msra.mxu0 %v5181
    %6086 = vmatprep.mubr.bf16.mxu0 %v3440
    %6087 = vmatmul.mubr.bf16.gmra.mxu0 %v3439
    %v6088 = vpop.f32.mrf.mxu0
    %v6089 = vadd.f32 %v6048, %v6088
    %v6090 = vpop.f32.mrf.mxu0
    %v6091 = vadd.f32 %v6050, %v6090
    %v6092 = vpop.f32.mrf.mxu0
    %v6093 = vpop.f32.mrf.mxu0
    %6094 = vdwg.mxu0
    %6095 = vmatprep.subr.bf16.mxu0 %v5302
    %6096 = vmatpush1.bf16.msra.mxu0 %v5301
    %6097 = vmatprep.subr.bf16.mxu0 %v5294
    %6098 = vmatpush1.bf16.msra.mxu0 %v5293
    %6099 = vmatprep.subr.bf16.mxu0 %v5286
    %6100 = vmatpush1.bf16.msra.mxu0 %v5285
    %6101 = vmatprep.subr.bf16.mxu0 %v5278
    %6102 = vmatpush1.bf16.msra.mxu0 %v5277
    %6103 = vmatprep.subr.bf16.mxu0 %v5270
    %6104 = vmatpush1.bf16.msra.mxu0 %v5269
    %6105 = vmatprep.subr.bf16.mxu0 %v5262
    %6106 = vmatpush1.bf16.msra.mxu0 %v5261
    %6107 = vmatprep.subr.bf16.mxu0 %v5254
    %6108 = vmatpush1.bf16.msra.mxu0 %v5253
    %6109 = vmatprep.subr.bf16.mxu0 %v5246
    %6110 = vmatpush1.bf16.msra.mxu0 %v5245
    %6111 = vmatprep.subr.bf16.mxu0 %v5366
    %6112 = vmatpush2.bf16.msra.mxu0 %v5365
    %6113 = vmatprep.subr.bf16.mxu0 %v5358
    %6114 = vmatpush2.bf16.msra.mxu0 %v5357
    %6115 = vmatprep.subr.bf16.mxu0 %v5350
    %6116 = vmatpush2.bf16.msra.mxu0 %v5349
    %6117 = vmatprep.subr.bf16.mxu0 %v5342
    %6118 = vmatpush2.bf16.msra.mxu0 %v5341
    %6119 = vmatprep.subr.bf16.mxu0 %v5334
    %6120 = vmatpush2.bf16.msra.mxu0 %v5333
    %6121 = vmatprep.subr.bf16.mxu0 %v5326
    %6122 = vmatpush2.bf16.msra.mxu0 %v5325
    %6123 = vmatprep.subr.bf16.mxu0 %v5318
    %6124 = vmatpush2.bf16.msra.mxu0 %v5317
    %6125 = vmatprep.subr.bf16.mxu0 %v5310
    %6126 = vmatpush2.bf16.msra.mxu0 %v5309
    %6127 = vmatprep.mubr.bf16.mxu0 %v3442
    %6128 = vmatmul.mubr.bf16.gmra.mxu0 %v3441
    %v6129 = vpop.f32.mrf.mxu0
    %v6130 = vadd.f32 %v6089, %v6129
    %v6131 = vpop.f32.mrf.mxu0
    %v6132 = vadd.f32 %v6091, %v6131
    %v6133 = vpop.f32.mrf.mxu0
    %v6134 = vpop.f32.mrf.mxu0
    %6135 = vdwg.mxu0
    %6136 = vmatprep.subr.bf16.mxu0 %v5430
    %6137 = vmatpush1.bf16.msra.mxu0 %v5429
    %6138 = vmatprep.subr.bf16.mxu0 %v5422
    %6139 = vmatpush1.bf16.msra.mxu0 %v5421
    %6140 = vmatprep.subr.bf16.mxu0 %v5414
    %6141 = vmatpush1.bf16.msra.mxu0 %v5413
    %6142 = vmatprep.subr.bf16.mxu0 %v5406
    %6143 = vmatpush1.bf16.msra.mxu0 %v5405
    %6144 = vmatprep.subr.bf16.mxu0 %v5398
    %6145 = vmatpush1.bf16.msra.mxu0 %v5397
    %6146 = vmatprep.subr.bf16.mxu0 %v5390
    %6147 = vmatpush1.bf16.msra.mxu0 %v5389
    %6148 = vmatprep.subr.bf16.mxu0 %v5382
    %6149 = vmatpush1.bf16.msra.mxu0 %v5381
    %6150 = vmatprep.subr.bf16.mxu0 %v5374
    %6151 = vmatpush1.bf16.msra.mxu0 %v5373
    %6152 = vmatprep.subr.bf16.mxu0 %v5494
    %6153 = vmatpush2.bf16.msra.mxu0 %v5493
    %6154 = vmatprep.subr.bf16.mxu0 %v5486
    %6155 = vmatpush2.bf16.msra.mxu0 %v5485
    %6156 = vmatprep.subr.bf16.mxu0 %v5478
    %6157 = vmatpush2.bf16.msra.mxu0 %v5477
    %6158 = vmatprep.subr.bf16.mxu0 %v5470
    %6159 = vmatpush2.bf16.msra.mxu0 %v5469
    %6160 = vmatprep.subr.bf16.mxu0 %v5462
    %6161 = vmatpush2.bf16.msra.mxu0 %v5461
    %6162 = vmatprep.subr.bf16.mxu0 %v5454
    %6163 = vmatpush2.bf16.msra.mxu0 %v5453
    %6164 = vmatprep.subr.bf16.mxu0 %v5446
    %6165 = vmatpush2.bf16.msra.mxu0 %v5445
    %6166 = vmatprep.subr.bf16.mxu0 %v5438
    %6167 = vmatpush2.bf16.msra.mxu0 %v5437
    %6168 = vmatprep.mubr.bf16.mxu0 %v3444
    %6169 = vmatmul.mubr.bf16.gmra.mxu0 %v3443
    %v6170 = vpop.f32.mrf.mxu0
    %v6171 = vadd.f32 %v6130, %v6170
    %v6172 = vpop.f32.mrf.mxu0
    %v6173 = vadd.f32 %v6132, %v6172
    %v6174 = vpop.f32.mrf.mxu0
    %v6175 = vpop.f32.mrf.mxu0
    %6176 = vdwg.mxu0
    %6177 = vmatprep.subr.bf16.mxu0 %v5048
    %6178 = vmatpush1.bf16.msra.mxu0 %v5047
    %6179 = vmatprep.subr.bf16.mxu0 %v5040
    %6180 = vmatpush1.bf16.msra.mxu0 %v5039
    %6181 = vmatprep.subr.bf16.mxu0 %v5032
    %6182 = vmatpush1.bf16.msra.mxu0 %v5031
    %6183 = vmatprep.subr.bf16.mxu0 %v5024
    %6184 = vmatpush1.bf16.msra.mxu0 %v5023
    %6185 = vmatprep.subr.bf16.mxu0 %v5016
    %6186 = vmatpush1.bf16.msra.mxu0 %v5015
    %6187 = vmatprep.subr.bf16.mxu0 %v5008
    %6188 = vmatpush1.bf16.msra.mxu0 %v5007
    %6189 = vmatprep.subr.bf16.mxu0 %v5000
    %6190 = vmatpush1.bf16.msra.mxu0 %v4999
    %6191 = vmatprep.subr.bf16.mxu0 %v4992
    %6192 = vmatpush1.bf16.msra.mxu0 %v4991
    %6193 = vmatprep.subr.bf16.mxu0 %v5112
    %6194 = vmatpush2.bf16.msra.mxu0 %v5111
    %6195 = vmatprep.subr.bf16.mxu0 %v5104
    %6196 = vmatpush2.bf16.msra.mxu0 %v5103
    %6197 = vmatprep.subr.bf16.mxu0 %v5096
    %6198 = vmatpush2.bf16.msra.mxu0 %v5095
    %6199 = vmatprep.subr.bf16.mxu0 %v5088
    %6200 = vmatpush2.bf16.msra.mxu0 %v5087
    %6201 = vmatprep.subr.bf16.mxu0 %v5080
    %6202 = vmatpush2.bf16.msra.mxu0 %v5079
    %6203 = vmatprep.subr.bf16.mxu0 %v5072
    %6204 = vmatpush2.bf16.msra.mxu0 %v5071
    %6205 = vmatprep.subr.bf16.mxu0 %v5064
    %6206 = vmatpush2.bf16.msra.mxu0 %v5063
    %6207 = vmatprep.subr.bf16.mxu0 %v5056
    %6208 = vmatpush2.bf16.msra.mxu0 %v5055
    %6209 = vmatprep.mubr.bf16.mxu0 %v3438
    %6210 = vmatmul.mubr.bf16.gmra.mxu0 %v3437
    %v6211 = vpop.f32.mrf.mxu0
    %v6212 = vadd.f32 %v1719, %v6211
    %v6213 = vpop.f32.mrf.mxu0
    %v6214 = vadd.f32 %v1723, %v6213
    %v6215 = vpop.f32.mrf.mxu0
    %v6216 = vpop.f32.mrf.mxu0
    %6217 = vdwg.mxu0
    %6218 = vmatprep.subr.bf16.mxu0 %v5176
    %6219 = vmatpush1.bf16.msra.mxu0 %v5175
    %6220 = vmatprep.subr.bf16.mxu0 %v5168
    %6221 = vmatpush1.bf16.msra.mxu0 %v5167
    %6222 = vmatprep.subr.bf16.mxu0 %v5160
    %6223 = vmatpush1.bf16.msra.mxu0 %v5159
    %6224 = vmatprep.subr.bf16.mxu0 %v5152
    %6225 = vmatpush1.bf16.msra.mxu0 %v5151
    %6226 = vmatprep.subr.bf16.mxu0 %v5144
    %6227 = vmatpush1.bf16.msra.mxu0 %v5143
    %6228 = vmatprep.subr.bf16.mxu0 %v5136
    %6229 = vmatpush1.bf16.msra.mxu0 %v5135
    %6230 = vmatprep.subr.bf16.mxu0 %v5128
    %6231 = vmatpush1.bf16.msra.mxu0 %v5127
    %6232 = vmatprep.subr.bf16.mxu0 %v5120
    %6233 = vmatpush1.bf16.msra.mxu0 %v5119
    %6234 = vmatprep.subr.bf16.mxu0 %v5240
    %6235 = vmatpush2.bf16.msra.mxu0 %v5239
    %6236 = vmatprep.subr.bf16.mxu0 %v5232
    %6237 = vmatpush2.bf16.msra.mxu0 %v5231
    %6238 = vmatprep.subr.bf16.mxu0 %v5224
    %6239 = vmatpush2.bf16.msra.mxu0 %v5223
    %6240 = vmatprep.subr.bf16.mxu0 %v5216
    %6241 = vmatpush2.bf16.msra.mxu0 %v5215
    %6242 = vmatprep.subr.bf16.mxu0 %v5208
    %6243 = vmatpush2.bf16.msra.mxu0 %v5207
    %6244 = vmatprep.subr.bf16.mxu0 %v5200
    %6245 = vmatpush2.bf16.msra.mxu0 %v5199
    %6246 = vmatprep.subr.bf16.mxu0 %v5192
    %6247 = vmatpush2.bf16.msra.mxu0 %v5191
    %6248 = vmatprep.subr.bf16.mxu0 %v5184
    %6249 = vmatpush2.bf16.msra.mxu0 %v5183
    %6250 = vmatprep.mubr.bf16.mxu0 %v3440
    %6251 = vmatmul.mubr.bf16.gmra.mxu0 %v3439
    %v6252 = vpop.f32.mrf.mxu0
    %v6253 = vadd.f32 %v6212, %v6252
    %v6254 = vpop.f32.mrf.mxu0
    %v6255 = vadd.f32 %v6214, %v6254
    %v6256 = vpop.f32.mrf.mxu0
    %v6257 = vpop.f32.mrf.mxu0
    %6258 = vdwg.mxu0
    %6259 = vmatprep.subr.bf16.mxu0 %v5304
    %6260 = vmatpush1.bf16.msra.mxu0 %v5303
    %6261 = vmatprep.subr.bf16.mxu0 %v5296
    %6262 = vmatpush1.bf16.msra.mxu0 %v5295
    %6263 = vmatprep.subr.bf16.mxu0 %v5288
    %6264 = vmatpush1.bf16.msra.mxu0 %v5287
    %6265 = vmatprep.subr.bf16.mxu0 %v5280
    %6266 = vmatpush1.bf16.msra.mxu0 %v5279
    %6267 = vmatprep.subr.bf16.mxu0 %v5272
    %6268 = vmatpush1.bf16.msra.mxu0 %v5271
    %6269 = vmatprep.subr.bf16.mxu0 %v5264
    %6270 = vmatpush1.bf16.msra.mxu0 %v5263
    %6271 = vmatprep.subr.bf16.mxu0 %v5256
    %6272 = vmatpush1.bf16.msra.mxu0 %v5255
    %6273 = vmatprep.subr.bf16.mxu0 %v5248
    %6274 = vmatpush1.bf16.msra.mxu0 %v5247
    %6275 = vmatprep.subr.bf16.mxu0 %v5368
    %6276 = vmatpush2.bf16.msra.mxu0 %v5367
    %6277 = vmatprep.subr.bf16.mxu0 %v5360
    %6278 = vmatpush2.bf16.msra.mxu0 %v5359
    %6279 = vmatprep.subr.bf16.mxu0 %v5352
    %6280 = vmatpush2.bf16.msra.mxu0 %v5351
    %6281 = vmatprep.subr.bf16.mxu0 %v5344
    %6282 = vmatpush2.bf16.msra.mxu0 %v5343
    %6283 = vmatprep.subr.bf16.mxu0 %v5336
    %6284 = vmatpush2.bf16.msra.mxu0 %v5335
    %6285 = vmatprep.subr.bf16.mxu0 %v5328
    %6286 = vmatpush2.bf16.msra.mxu0 %v5327
    %6287 = vmatprep.subr.bf16.mxu0 %v5320
    %6288 = vmatpush2.bf16.msra.mxu0 %v5319
    %6289 = vmatprep.subr.bf16.mxu0 %v5312
    %6290 = vmatpush2.bf16.msra.mxu0 %v5311
    %6291 = vmatprep.mubr.bf16.mxu0 %v3442
    %6292 = vmatmul.mubr.bf16.gmra.mxu0 %v3441
    %v6293 = vpop.f32.mrf.mxu0
    %v6294 = vadd.f32 %v6253, %v6293
    %v6295 = vpop.f32.mrf.mxu0
    %v6296 = vadd.f32 %v6255, %v6295
    %v6297 = vpop.f32.mrf.mxu0
    %v6298 = vpop.f32.mrf.mxu0
    %6299 = vdwg.mxu0
    %6300 = vmatprep.subr.bf16.mxu0 %v5432
    %6301 = vmatpush1.bf16.msra.mxu0 %v5431
    %6302 = vmatprep.subr.bf16.mxu0 %v5424
    %6303 = vmatpush1.bf16.msra.mxu0 %v5423
    %6304 = vmatprep.subr.bf16.mxu0 %v5416
    %6305 = vmatpush1.bf16.msra.mxu0 %v5415
    %6306 = vmatprep.subr.bf16.mxu0 %v5408
    %6307 = vmatpush1.bf16.msra.mxu0 %v5407
    %6308 = vmatprep.subr.bf16.mxu0 %v5400
    %6309 = vmatpush1.bf16.msra.mxu0 %v5399
    %6310 = vmatprep.subr.bf16.mxu0 %v5392
    %6311 = vmatpush1.bf16.msra.mxu0 %v5391
    %6312 = vmatprep.subr.bf16.mxu0 %v5384
    %6313 = vmatpush1.bf16.msra.mxu0 %v5383
    %6314 = vmatprep.subr.bf16.mxu0 %v5376
    %6315 = vmatpush1.bf16.msra.mxu0 %v5375
    %6316 = vmatprep.subr.bf16.mxu0 %v5496
    %6317 = vmatpush2.bf16.msra.mxu0 %v5495
    %6318 = vmatprep.subr.bf16.mxu0 %v5488
    %6319 = vmatpush2.bf16.msra.mxu0 %v5487
    %6320 = vmatprep.subr.bf16.mxu0 %v5480
    %6321 = vmatpush2.bf16.msra.mxu0 %v5479
    %6322 = vmatprep.subr.bf16.mxu0 %v5472
    %6323 = vmatpush2.bf16.msra.mxu0 %v5471
    %6324 = vmatprep.subr.bf16.mxu0 %v5464
    %6325 = vmatpush2.bf16.msra.mxu0 %v5463
    %6326 = vmatprep.subr.bf16.mxu0 %v5456
    %6327 = vmatpush2.bf16.msra.mxu0 %v5455
    %6328 = vmatprep.subr.bf16.mxu0 %v5448
    %6329 = vmatpush2.bf16.msra.mxu0 %v5447
    %6330 = vmatprep.subr.bf16.mxu0 %v5440
    %6331 = vmatpush2.bf16.msra.mxu0 %v5439
    %6332 = vmatprep.mubr.bf16.mxu0 %v3444
    %6333 = vmatmul.mubr.bf16.gmra.mxu0 %v3443
    %v6334 = vpop.f32.mrf.mxu0
    %v6335 = vadd.f32 %v6294, %v6334
    %v6336 = vpop.f32.mrf.mxu0
    %v6337 = vadd.f32 %v6296, %v6336
    %v6338 = vpop.f32.mrf.mxu0
    %v6339 = vpop.f32.mrf.mxu0
    %6340 = vdwg.mxu0
    %6341 = vmatprep.subr.bf16.mxu0 %v5050
    %6342 = vmatpush1.bf16.msra.mxu0 %v5049
    %6343 = vmatprep.subr.bf16.mxu0 %v5042
    %6344 = vmatpush1.bf16.msra.mxu0 %v5041
    %6345 = vmatprep.subr.bf16.mxu0 %v5034
    %6346 = vmatpush1.bf16.msra.mxu0 %v5033
    %6347 = vmatprep.subr.bf16.mxu0 %v5026
    %6348 = vmatpush1.bf16.msra.mxu0 %v5025
    %6349 = vmatprep.subr.bf16.mxu0 %v5018
    %6350 = vmatpush1.bf16.msra.mxu0 %v5017
    %6351 = vmatprep.subr.bf16.mxu0 %v5010
    %6352 = vmatpush1.bf16.msra.mxu0 %v5009
    %6353 = vmatprep.subr.bf16.mxu0 %v5002
    %6354 = vmatpush1.bf16.msra.mxu0 %v5001
    %6355 = vmatprep.subr.bf16.mxu0 %v4994
    %6356 = vmatpush1.bf16.msra.mxu0 %v4993
    %6357 = vmatprep.subr.bf16.mxu0 %v5114
    %6358 = vmatpush2.bf16.msra.mxu0 %v5113
    %6359 = vmatprep.subr.bf16.mxu0 %v5106
    %6360 = vmatpush2.bf16.msra.mxu0 %v5105
    %6361 = vmatprep.subr.bf16.mxu0 %v5098
    %6362 = vmatpush2.bf16.msra.mxu0 %v5097
    %6363 = vmatprep.subr.bf16.mxu0 %v5090
    %6364 = vmatpush2.bf16.msra.mxu0 %v5089
    %6365 = vmatprep.subr.bf16.mxu0 %v5082
    %6366 = vmatpush2.bf16.msra.mxu0 %v5081
    %6367 = vmatprep.subr.bf16.mxu0 %v5074
    %6368 = vmatpush2.bf16.msra.mxu0 %v5073
    %6369 = vmatprep.subr.bf16.mxu0 %v5066
    %6370 = vmatpush2.bf16.msra.mxu0 %v5065
    %6371 = vmatprep.subr.bf16.mxu0 %v5058
    %6372 = vmatpush2.bf16.msra.mxu0 %v5057
    %6373 = vmatprep.mubr.bf16.mxu0 %v3438
    %6374 = vmatmul.mubr.bf16.gmra.mxu0 %v3437
    %v6375 = vpop.f32.mrf.mxu0
    %v6376 = vadd.f32 %v1727, %v6375
    %v6377 = vpop.f32.mrf.mxu0
    %v6378 = vadd.f32 %v1731, %v6377
    %v6379 = vpop.f32.mrf.mxu0
    %v6380 = vpop.f32.mrf.mxu0
    %6381 = vdwg.mxu0
    %6382 = vmatprep.subr.bf16.mxu0 %v5178
    %6383 = vmatpush1.bf16.msra.mxu0 %v5177
    %6384 = vmatprep.subr.bf16.mxu0 %v5170
    %6385 = vmatpush1.bf16.msra.mxu0 %v5169
    %6386 = vmatprep.subr.bf16.mxu0 %v5162
    %6387 = vmatpush1.bf16.msra.mxu0 %v5161
    %6388 = vmatprep.subr.bf16.mxu0 %v5154
    %6389 = vmatpush1.bf16.msra.mxu0 %v5153
    %6390 = vmatprep.subr.bf16.mxu0 %v5146
    %6391 = vmatpush1.bf16.msra.mxu0 %v5145
    %6392 = vmatprep.subr.bf16.mxu0 %v5138
    %6393 = vmatpush1.bf16.msra.mxu0 %v5137
    %6394 = vmatprep.subr.bf16.mxu0 %v5130
    %6395 = vmatpush1.bf16.msra.mxu0 %v5129
    %6396 = vmatprep.subr.bf16.mxu0 %v5122
    %6397 = vmatpush1.bf16.msra.mxu0 %v5121
    %6398 = vmatprep.subr.bf16.mxu0 %v5242
    %6399 = vmatpush2.bf16.msra.mxu0 %v5241
    %6400 = vmatprep.subr.bf16.mxu0 %v5234
    %6401 = vmatpush2.bf16.msra.mxu0 %v5233
    %6402 = vmatprep.subr.bf16.mxu0 %v5226
    %6403 = vmatpush2.bf16.msra.mxu0 %v5225
    %6404 = vmatprep.subr.bf16.mxu0 %v5218
    %6405 = vmatpush2.bf16.msra.mxu0 %v5217
    %6406 = vmatprep.subr.bf16.mxu0 %v5210
    %6407 = vmatpush2.bf16.msra.mxu0 %v5209
    %6408 = vmatprep.subr.bf16.mxu0 %v5202
    %6409 = vmatpush2.bf16.msra.mxu0 %v5201
    %6410 = vmatprep.subr.bf16.mxu0 %v5194
    %6411 = vmatpush2.bf16.msra.mxu0 %v5193
    %6412 = vmatprep.subr.bf16.mxu0 %v5186
    %6413 = vmatpush2.bf16.msra.mxu0 %v5185
    %6414 = vmatprep.mubr.bf16.mxu0 %v3440
    %6415 = vmatmul.mubr.bf16.gmra.mxu0 %v3439
    %v6416 = vpop.f32.mrf.mxu0
    %v6417 = vadd.f32 %v6376, %v6416
    %v6418 = vpop.f32.mrf.mxu0
    %v6419 = vadd.f32 %v6378, %v6418
    %v6420 = vpop.f32.mrf.mxu0
    %v6421 = vpop.f32.mrf.mxu0
    %6422 = vdwg.mxu0
    %6423 = vmatprep.subr.bf16.mxu0 %v5306
    %6424 = vmatpush1.bf16.msra.mxu0 %v5305
    %6425 = vmatprep.subr.bf16.mxu0 %v5298
    %6426 = vmatpush1.bf16.msra.mxu0 %v5297
    %6427 = vmatprep.subr.bf16.mxu0 %v5290
    %6428 = vmatpush1.bf16.msra.mxu0 %v5289
    %6429 = vmatprep.subr.bf16.mxu0 %v5282
    %6430 = vmatpush1.bf16.msra.mxu0 %v5281
    %6431 = vmatprep.subr.bf16.mxu0 %v5274
    %6432 = vmatpush1.bf16.msra.mxu0 %v5273
    %6433 = vmatprep.subr.bf16.mxu0 %v5266
    %6434 = vmatpush1.bf16.msra.mxu0 %v5265
    %6435 = vmatprep.subr.bf16.mxu0 %v5258
    %6436 = vmatpush1.bf16.msra.mxu0 %v5257
    %6437 = vmatprep.subr.bf16.mxu0 %v5250
    %6438 = vmatpush1.bf16.msra.mxu0 %v5249
    %6439 = vmatprep.subr.bf16.mxu0 %v5370
    %6440 = vmatpush2.bf16.msra.mxu0 %v5369
    %6441 = vmatprep.subr.bf16.mxu0 %v5362
    %6442 = vmatpush2.bf16.msra.mxu0 %v5361
    %6443 = vmatprep.subr.bf16.mxu0 %v5354
    %6444 = vmatpush2.bf16.msra.mxu0 %v5353
    %6445 = vmatprep.subr.bf16.mxu0 %v5346
    %6446 = vmatpush2.bf16.msra.mxu0 %v5345
    %6447 = vmatprep.subr.bf16.mxu0 %v5338
    %6448 = vmatpush2.bf16.msra.mxu0 %v5337
    %6449 = vmatprep.subr.bf16.mxu0 %v5330
    %6450 = vmatpush2.bf16.msra.mxu0 %v5329
    %6451 = vmatprep.subr.bf16.mxu0 %v5322
    %6452 = vmatpush2.bf16.msra.mxu0 %v5321
    %6453 = vmatprep.subr.bf16.mxu0 %v5314
    %6454 = vmatpush2.bf16.msra.mxu0 %v5313
    %6455 = vmatprep.mubr.bf16.mxu0 %v3442
    %6456 = vmatmul.mubr.bf16.gmra.mxu0 %v3441
    %v6457 = vpop.f32.mrf.mxu0
    %v6458 = vadd.f32 %v6417, %v6457
    %v6459 = vpop.f32.mrf.mxu0
    %v6460 = vadd.f32 %v6419, %v6459
    %v6461 = vpop.f32.mrf.mxu0
    %v6462 = vpop.f32.mrf.mxu0
    %6463 = vdwg.mxu0
    %6464 = vmatprep.subr.bf16.mxu0 %v5434
    %6465 = vmatpush1.bf16.msra.mxu0 %v5433
    %6466 = vmatprep.subr.bf16.mxu0 %v5426
    %6467 = vmatpush1.bf16.msra.mxu0 %v5425
    %6468 = vmatprep.subr.bf16.mxu0 %v5418
    %6469 = vmatpush1.bf16.msra.mxu0 %v5417
    %6470 = vmatprep.subr.bf16.mxu0 %v5410
    %6471 = vmatpush1.bf16.msra.mxu0 %v5409
    %6472 = vmatprep.subr.bf16.mxu0 %v5402
    %6473 = vmatpush1.bf16.msra.mxu0 %v5401
    %6474 = vmatprep.subr.bf16.mxu0 %v5394
    %6475 = vmatpush1.bf16.msra.mxu0 %v5393
    %6476 = vmatprep.subr.bf16.mxu0 %v5386
    %6477 = vmatpush1.bf16.msra.mxu0 %v5385
    %6478 = vmatprep.subr.bf16.mxu0 %v5378
    %6479 = vmatpush1.bf16.msra.mxu0 %v5377
    %6480 = vmatprep.subr.bf16.mxu0 %v5498
    %6481 = vmatpush2.bf16.msra.mxu0 %v5497
    %6482 = vmatprep.subr.bf16.mxu0 %v5490
    %6483 = vmatpush2.bf16.msra.mxu0 %v5489
    %6484 = vmatprep.subr.bf16.mxu0 %v5482
    %6485 = vmatpush2.bf16.msra.mxu0 %v5481
    %6486 = vmatprep.subr.bf16.mxu0 %v5474
    %6487 = vmatpush2.bf16.msra.mxu0 %v5473
    %6488 = vmatprep.subr.bf16.mxu0 %v5466
    %6489 = vmatpush2.bf16.msra.mxu0 %v5465
    %6490 = vmatprep.subr.bf16.mxu0 %v5458
    %6491 = vmatpush2.bf16.msra.mxu0 %v5457
    %6492 = vmatprep.subr.bf16.mxu0 %v5450
    %6493 = vmatpush2.bf16.msra.mxu0 %v5449
    %6494 = vmatprep.subr.bf16.mxu0 %v5442
    %6495 = vmatpush2.bf16.msra.mxu0 %v5441
    %6496 = vmatprep.mubr.bf16.mxu0 %v3444
    %6497 = vmatmul.mubr.bf16.gmra.mxu0 %v3443
    %v6498 = vpop.f32.mrf.mxu0
    %v6499 = vadd.f32 %v6458, %v6498
    %v6500 = vpop.f32.mrf.mxu0
    %v6501 = vadd.f32 %v6460, %v6500
    %v6502 = vpop.f32.mrf.mxu0
    %v6503 = vpop.f32.mrf.mxu0
    %6504 = vdwg.mxu0
    %6505 = vmatprep.subr.bf16.mxu0 %v5052
    %6506 = vmatpush1.bf16.msra.mxu0 %v5051
    %6507 = vmatprep.subr.bf16.mxu0 %v5044
    %6508 = vmatpush1.bf16.msra.mxu0 %v5043
    %6509 = vmatprep.subr.bf16.mxu0 %v5036
    %6510 = vmatpush1.bf16.msra.mxu0 %v5035
    %6511 = vmatprep.subr.bf16.mxu0 %v5028
    %6512 = vmatpush1.bf16.msra.mxu0 %v5027
    %6513 = vmatprep.subr.bf16.mxu0 %v5020
    %6514 = vmatpush1.bf16.msra.mxu0 %v5019
    %6515 = vmatprep.subr.bf16.mxu0 %v5012
    %6516 = vmatpush1.bf16.msra.mxu0 %v5011
    %6517 = vmatprep.subr.bf16.mxu0 %v5004
    %6518 = vmatpush1.bf16.msra.mxu0 %v5003
    %6519 = vmatprep.subr.bf16.mxu0 %v4996
    %6520 = vmatpush1.bf16.msra.mxu0 %v4995
    %6521 = vmatprep.subr.bf16.mxu0 %v5116
    %6522 = vmatpush2.bf16.msra.mxu0 %v5115
    %6523 = vmatprep.subr.bf16.mxu0 %v5108
    %6524 = vmatpush2.bf16.msra.mxu0 %v5107
    %6525 = vmatprep.subr.bf16.mxu0 %v5100
    %6526 = vmatpush2.bf16.msra.mxu0 %v5099
    %6527 = vmatprep.subr.bf16.mxu0 %v5092
    %6528 = vmatpush2.bf16.msra.mxu0 %v5091
    %6529 = vmatprep.subr.bf16.mxu0 %v5084
    %6530 = vmatpush2.bf16.msra.mxu0 %v5083
    %6531 = vmatprep.subr.bf16.mxu0 %v5076
    %6532 = vmatpush2.bf16.msra.mxu0 %v5075
    %6533 = vmatprep.subr.bf16.mxu0 %v5068
    %6534 = vmatpush2.bf16.msra.mxu0 %v5067
    %6535 = vmatprep.subr.bf16.mxu0 %v5060
    %6536 = vmatpush2.bf16.msra.mxu0 %v5059
    %6537 = vmatprep.mubr.bf16.mxu0 %v3438
    %6538 = vmatmul.mubr.bf16.gmra.mxu0 %v3437
    %v6539 = vpop.f32.mrf.mxu0
    %v6540 = vadd.f32 %v1735, %v6539
    %v6541 = vpop.f32.mrf.mxu0
    %v6542 = vadd.f32 %v1739, %v6541
    %v6543 = vpop.f32.mrf.mxu0
    %v6544 = vpop.f32.mrf.mxu0
    %6545 = vdwg.mxu0
    %6546 = vmatprep.subr.bf16.mxu0 %v5180
    %6547 = vmatpush1.bf16.msra.mxu0 %v5179
    %6548 = vmatprep.subr.bf16.mxu0 %v5172
    %6549 = vmatpush1.bf16.msra.mxu0 %v5171
    %6550 = vmatprep.subr.bf16.mxu0 %v5164
    %6551 = vmatpush1.bf16.msra.mxu0 %v5163
    %6552 = vmatprep.subr.bf16.mxu0 %v5156
    %6553 = vmatpush1.bf16.msra.mxu0 %v5155
    %6554 = vmatprep.subr.bf16.mxu0 %v5148
    %6555 = vmatpush1.bf16.msra.mxu0 %v5147
    %6556 = vmatprep.subr.bf16.mxu0 %v5140
    %6557 = vmatpush1.bf16.msra.mxu0 %v5139
    %6558 = vmatprep.subr.bf16.mxu0 %v5132
    %6559 = vmatpush1.bf16.msra.mxu0 %v5131
    %6560 = vmatprep.subr.bf16.mxu0 %v5124
    %6561 = vmatpush1.bf16.msra.mxu0 %v5123
    %6562 = vmatprep.subr.bf16.mxu0 %v5244
    %6563 = vmatpush2.bf16.msra.mxu0 %v5243
    %6564 = vmatprep.subr.bf16.mxu0 %v5236
    %6565 = vmatpush2.bf16.msra.mxu0 %v5235
    %6566 = vmatprep.subr.bf16.mxu0 %v5228
    %6567 = vmatpush2.bf16.msra.mxu0 %v5227
    %6568 = vmatprep.subr.bf16.mxu0 %v5220
    %6569 = vmatpush2.bf16.msra.mxu0 %v5219
    %6570 = vmatprep.subr.bf16.mxu0 %v5212
    %6571 = vmatpush2.bf16.msra.mxu0 %v5211
    %6572 = vmatprep.subr.bf16.mxu0 %v5204
    %6573 = vmatpush2.bf16.msra.mxu0 %v5203
    %6574 = vmatprep.subr.bf16.mxu0 %v5196
    %6575 = vmatpush2.bf16.msra.mxu0 %v5195
    %6576 = vmatprep.subr.bf16.mxu0 %v5188
    %6577 = vmatpush2.bf16.msra.mxu0 %v5187
    %6578 = vmatprep.mubr.bf16.mxu0 %v3440
    %6579 = vmatmul.mubr.bf16.gmra.mxu0 %v3439
    %v6580 = vpop.f32.mrf.mxu0
    %v6581 = vadd.f32 %v6540, %v6580
    %v6582 = vpop.f32.mrf.mxu0
    %v6583 = vadd.f32 %v6542, %v6582
    %v6584 = vpop.f32.mrf.mxu0
    %v6585 = vpop.f32.mrf.mxu0
    %6586 = vdwg.mxu0
    %6587 = vmatprep.subr.bf16.mxu0 %v5308
    %6588 = vmatpush1.bf16.msra.mxu0 %v5307
    %6589 = vmatprep.subr.bf16.mxu0 %v5300
    %6590 = vmatpush1.bf16.msra.mxu0 %v5299
    %6591 = vmatprep.subr.bf16.mxu0 %v5292
    %6592 = vmatpush1.bf16.msra.mxu0 %v5291
    %6593 = vmatprep.subr.bf16.mxu0 %v5284
    %6594 = vmatpush1.bf16.msra.mxu0 %v5283
    %6595 = vmatprep.subr.bf16.mxu0 %v5276
    %6596 = vmatpush1.bf16.msra.mxu0 %v5275
    %6597 = vmatprep.subr.bf16.mxu0 %v5268
    %6598 = vmatpush1.bf16.msra.mxu0 %v5267
    %6599 = vmatprep.subr.bf16.mxu0 %v5260
    %6600 = vmatpush1.bf16.msra.mxu0 %v5259
    %6601 = vmatprep.subr.bf16.mxu0 %v5252
    %6602 = vmatpush1.bf16.msra.mxu0 %v5251
    %6603 = vmatprep.subr.bf16.mxu0 %v5372
    %6604 = vmatpush2.bf16.msra.mxu0 %v5371
    %6605 = vmatprep.subr.bf16.mxu0 %v5364
    %6606 = vmatpush2.bf16.msra.mxu0 %v5363
    %6607 = vmatprep.subr.bf16.mxu0 %v5356
    %6608 = vmatpush2.bf16.msra.mxu0 %v5355
    %6609 = vmatprep.subr.bf16.mxu0 %v5348
    %6610 = vmatpush2.bf16.msra.mxu0 %v5347
    %6611 = vmatprep.subr.bf16.mxu0 %v5340
    %6612 = vmatpush2.bf16.msra.mxu0 %v5339
    %6613 = vmatprep.subr.bf16.mxu0 %v5332
    %6614 = vmatpush2.bf16.msra.mxu0 %v5331
    %6615 = vmatprep.subr.bf16.mxu0 %v5324
    %6616 = vmatpush2.bf16.msra.mxu0 %v5323
    %6617 = vmatprep.subr.bf16.mxu0 %v5316
    %6618 = vmatpush2.bf16.msra.mxu0 %v5315
    %6619 = vmatprep.mubr.bf16.mxu0 %v3442
    %6620 = vmatmul.mubr.bf16.gmra.mxu0 %v3441
    %v6621 = vpop.f32.mrf.mxu0
    %v6622 = vadd.f32 %v6581, %v6621
    %v6623 = vpop.f32.mrf.mxu0
    %v6624 = vadd.f32 %v6583, %v6623
    %v6625 = vpop.f32.mrf.mxu0
    %v6626 = vpop.f32.mrf.mxu0
    %6627 = vdwg.mxu0
    %6628 = vmatprep.subr.bf16.mxu0 %v5436
    %6629 = vmatpush1.bf16.msra.mxu0 %v5435
    %6630 = vmatprep.subr.bf16.mxu0 %v5428
    %6631 = vmatpush1.bf16.msra.mxu0 %v5427
    %6632 = vmatprep.subr.bf16.mxu0 %v5420
    %6633 = vmatpush1.bf16.msra.mxu0 %v5419
    %6634 = vmatprep.subr.bf16.mxu0 %v5412
    %6635 = vmatpush1.bf16.msra.mxu0 %v5411
    %6636 = vmatprep.subr.bf16.mxu0 %v5404
    %6637 = vmatpush1.bf16.msra.mxu0 %v5403
    %6638 = vmatprep.subr.bf16.mxu0 %v5396
    %6639 = vmatpush1.bf16.msra.mxu0 %v5395
    %6640 = vmatprep.subr.bf16.mxu0 %v5388
    %6641 = vmatpush1.bf16.msra.mxu0 %v5387
    %6642 = vmatprep.subr.bf16.mxu0 %v5380
    %6643 = vmatpush1.bf16.msra.mxu0 %v5379
    %6644 = vmatprep.subr.bf16.mxu0 %v5500
    %6645 = vmatpush2.bf16.msra.mxu0 %v5499
    %6646 = vmatprep.subr.bf16.mxu0 %v5492
    %6647 = vmatpush2.bf16.msra.mxu0 %v5491
    %6648 = vmatprep.subr.bf16.mxu0 %v5484
    %6649 = vmatpush2.bf16.msra.mxu0 %v5483
    %6650 = vmatprep.subr.bf16.mxu0 %v5476
    %6651 = vmatpush2.bf16.msra.mxu0 %v5475
    %6652 = vmatprep.subr.bf16.mxu0 %v5468
    %6653 = vmatpush2.bf16.msra.mxu0 %v5467
    %6654 = vmatprep.subr.bf16.mxu0 %v5460
    %6655 = vmatpush2.bf16.msra.mxu0 %v5459
    %6656 = vmatprep.subr.bf16.mxu0 %v5452
    %6657 = vmatpush2.bf16.msra.mxu0 %v5451
    %6658 = vmatprep.subr.bf16.mxu0 %v5444
    %6659 = vmatpush2.bf16.msra.mxu0 %v5443
    %6660 = vmatprep.mubr.bf16.mxu0 %v3444
    %6661 = vmatmul.mubr.bf16.gmra.mxu0 %v3443
    %v6662 = vpop.f32.mrf.mxu0
    %v6663 = vadd.f32 %v6622, %v6662
    %v6664 = vpop.f32.mrf.mxu0
    %v6665 = vadd.f32 %v6624, %v6664
    %v6666 = vpop.f32.mrf.mxu0
    %v6667 = vpop.f32.mrf.mxu0
    %6668 = vdwg.mxu0
    %v6677 = vcombine.low %v6171, %v6173
    %v6678 = vcombine.low %v6335, %v6337
    %v6680 = vunpack.c.l.s4 1983009808
    %v6681 = vunpack.c.0.s8 %v6680
    %v6682 = vlaneseq
    %v6683 = vshrl.u32 %v6682, 7
    %v6684 = vsub.s32 %v6681, %v6683
    %v6685 = vrot.slane %v6677, %v6684
    %v6687 = vunpack.c.l.s4 1983009808
    %v6688 = vunpack.c.0.s8 %v6687
    %v6689 = vlaneseq
    %v6690 = vshrl.u32 %v6689, 7
    %v6691 = vsub.s32 %v6688, %v6690
    %v6692 = vrot.slane %v6678, %v6691
    %v6693 = vcombine.low %v6685, %v6692
    %v6694 = vcombine.low %v6499, %v6501
    %v6695 = vcombine.low %v6663, %v6665
    %v6697 = vunpack.c.l.s4 1983009808
    %v6698 = vunpack.c.0.s8 %v6697
    %v6699 = vlaneseq
    %v6700 = vshrl.u32 %v6699, 7
    %v6701 = vsub.s32 %v6698, %v6700
    %v6702 = vrot.slane %v6694, %v6701
    %v6704 = vunpack.c.l.s4 1983009808
    %v6705 = vunpack.c.0.s8 %v6704
    %v6706 = vlaneseq
    %v6707 = vshrl.u32 %v6706, 7
    %v6708 = vsub.s32 %v6705, %v6707
    %v6709 = vrot.slane %v6695, %v6708
    %v6710 = vcombine.low %v6702, %v6709
    %6713 = vst [vmem:[#allocation7] sm:$0xff] %v6693
    %6714 = vst [vmem:[#allocation7 + $0x8] sm:$0xff] %v6710
    // Predicated region
    $region22: #{head4imagenet_forward.1} parent=1 // pred_check
      _
    $region23: #{head4imagenet_forward.1} parent=1 // pred_check_branch
      %6716 = sbr.rel (0) target = $region25
    $region24: #{head4imagenet_forward.1} parent=1 // pred_region
      %s6718 = ssub.s32 256, 256
      %6719 = vsyncadd [#allocation4], %s6718
      %s6721 = sshll.u32 [#allocation7], 4
      %s6722 = int_to_ptr.vmem [resolvable:$true] %s6721
      %6724 = dma.vmem_to_hbm [thread:$0]  %s6722, 256, %s3, [#allocation4]
    $region25: #{head4imagenet_forward.1} parent=1 // pred_fallthru
      _
    // Predicated region
    $region26: #{head4imagenet_forward.1} parent=1 // pred_check
      _
    $region27: #{head4imagenet_forward.1} parent=1 // pred_check_branch
      %6726 = sbr.rel (0) target = $region29
    $region28: #{head4imagenet_forward.1} parent=1 // pred_region
      %6727 = dma.done [#allocation4], 256
    $region29: #{head4imagenet_forward.1} parent=1 // pred_fallthru
      _
    %6728 = vsyncpa [#allocation3], 1
    %6729 = vsyncpa [#allocation6], 1
    %6730 = vsyncpa [#allocation4], 1

</llo_original>
